<compile_context>
chip_gen: v5e
topology: v5e:2x2
jax: 0.10.0
libtpu: 0.0.40
codegen_flags: <defaults>
</compile_context>

<pallas_src>
import numpy as np

import jax
import jax.numpy as jnp
from jax.experimental import pallas as pl
from jax.experimental.pallas import tpu as pltpu


# ------------------------------ model dimensions ------------------------------
H0, W0, C0 = 32, 32, 3                      # CIFAR input (NCHW at the API)
K = 5                                       # conv kernel size, 'valid', stride 1
C1, C2 = 6, 16                              # conv output channels
OH1, OW1 = H0 - K + 1, W0 - K + 1           # 28, 28
PH1, PW1 = OH1 // 2, OW1 // 2               # 14, 14
OH2, OW2 = PH1 - K + 1, PW1 - K + 1         # 10, 10
PH2, PW2 = OH2 // 2, OW2 // 2               # 5, 5
NFC1, NFC2, NL1, NL2, NL3 = 120, 84, 84, 256, 10
LANE = 128


# ------------------------------ one-time param prep ----------------------------

def _pad2(a, rows, cols):
    out = jnp.zeros((rows, cols), jnp.float32)
    return out.at[: a.shape[0], : a.shape[1]].set(a)


def _pad_bias(b, cols):
    return jnp.zeros((1, cols), jnp.float32).at[0, : b.shape[0]].set(b)


def _conv_toeplitz(w, w_in, parity):
    """Banded-Toeplitz GEMM operand for a 'valid' KxK conv whose output columns
    are restricted to even (parity=0) or odd (parity=1) spatial positions, so the
    width half of the 2x2 max-pool fuses into the conv epilogue.

    w: (KH, KW, Cin, Cout) ->  T: (KH, 128, 128) f32 with
       T[ki, win*Cin + ci, owp*Cout + co] = w[ki, win - 2*owp - parity, ci, co]
    """
    KH, KW, Cin, Cout = w.shape
    OWp = (w_in - KW + 1) // 2
    win = np.arange(w_in)[:, None, None]
    owp = np.arange(OWp)[None, :, None]
    kj = np.arange(KW)[None, None, :]
    sel = jnp.asarray((win == 2 * owp + parity + kj).astype(np.float32))  # (w_in, OWp, KW)
    t = jnp.einsum("wok,akcd->awcod", sel, w.astype(jnp.float32))
    t = t.reshape(KH, w_in * Cin, OWp * Cout)
    out = jnp.zeros((KH, LANE, LANE), jnp.float32)
    return out.at[:, : w_in * Cin, : OWp * Cout].set(t)


def prepare_params(p):
    """One-time transform of raw parameters into kernel-ready, padded operands."""
    pp = {}
    # conv1 / conv2 as even/odd Toeplitz GEMM weights + lane-tiled biases
    pp["w1e"] = _conv_toeplitz(p["conv1_w"], W0, 0)
    pp["w1o"] = _conv_toeplitz(p["conv1_w"], W0, 1)
    pp["b1"] = _pad_bias(jnp.tile(p["conv1_b"], PW1), LANE)
    pp["w2e"] = _conv_toeplitz(p["conv2_w"], PW1, 0)
    pp["w2o"] = _conv_toeplitz(p["conv2_w"], PW1, 1)
    pp["b2"] = _pad_bias(jnp.tile(p["conv2_b"], PW2), LANE)
    # fc1: permute rows from the torch NCHW flatten order (c*25 + h*5 + w) to the
    # kernel's per-pooled-row (w, c) order, then split into PH2 row chunks.
    hh = np.arange(PH2)[:, None, None]
    ww = np.arange(PW2)[None, :, None]
    cc = np.arange(C2)[None, None, :]
    idx = (cc * (PH2 * PW2) + hh * PW2 + ww).reshape(PH2, PW2 * C2)     # (5, 80)
    wf1 = jnp.take(p["fc1_w"], jnp.asarray(idx), axis=0)                # (5, 80, 120)
    pp["wf1"] = (jnp.zeros((PH2, LANE, LANE), jnp.float32)
                 .at[:, : PW2 * C2, :NFC1].set(wf1))
    pp["bf1"] = _pad_bias(p["fc1_b"], LANE)
    pp["wf2"] = _pad2(p["fc2_w"], LANE, LANE)
    pp["bf2"] = _pad_bias(p["fc2_b"], LANE)
    pp["wl1"] = _pad2(p["l1_w"], LANE, LANE)
    pp["bl1"] = _pad_bias(p["l1_b"], LANE)
    pp["wl2"] = _pad2(p["l2_w"], LANE, NL2)
    pp["bl2"] = _pad_bias(p["l2_b"], NL2)
    pp["wl3"] = _pad2(p["l3_w"], NL2, LANE)
    pp["bl3"] = _pad_bias(p["l3_b"], LANE)
    return pp


# ---------------------------------- kernel -------------------------------------

def _mooncnn_kernel(x_ref, w1e, w1o, b1, w2e, w2o, b2,
                    wf1, bf1, wf2, bf2, wl1, bl1, wl2, bl2, wl3, bl3,
                    h_ref, x2_ref, y_ref,
                    c1_sc, p1_sc, c2_sc, p2_sc):
    f32 = jnp.float32

    # ---- conv1 (5x5 valid, 3->6) + bias + ReLU, width-pool fused via even/odd GEMMs
    acc_e = jnp.zeros((OH1, LANE), f32)
    acc_o = jnp.zeros((OH1, LANE), f32)
    for ki in range(K):
        xs = x_ref[0, ki:ki + OH1, :]                                   # (28, 128)
        acc_e = acc_e + jnp.dot(xs, w1e[ki], preferred_element_type=f32)
        acc_o = acc_o + jnp.dot(xs, w1o[ki], preferred_element_type=f32)
    a_e = jnp.maximum(acc_e + b1[...], 0.0)
    a_o = jnp.maximum(acc_o + b1[...], 0.0)
    c1_sc[...] = jnp.maximum(a_e, a_o)                                  # (28, 128)
    for r in range(PH1):                                                # height pool
        p1_sc[r:r + 1, :] = jnp.maximum(c1_sc[2 * r:2 * r + 1, :],
                                        c1_sc[2 * r + 1:2 * r + 2, :])

    # ---- conv2 (5x5 valid, 6->16) + bias + ReLU + fused 2x2 pool (same scheme)
    acc_e = jnp.zeros((OH2, LANE), f32)
    acc_o = jnp.zeros((OH2, LANE), f32)
    for ki in range(K):
        xs = p1_sc[ki:ki + OH2, :]                                      # (10, 128)
        acc_e = acc_e + jnp.dot(xs, w2e[ki], preferred_element_type=f32)
        acc_o = acc_o + jnp.dot(xs, w2o[ki], preferred_element_type=f32)
    a_e = jnp.maximum(acc_e + b2[...], 0.0)
    a_o = jnp.maximum(acc_o + b2[...], 0.0)
    c2_sc[...] = jnp.maximum(a_e, a_o)                                  # (10, 128)
    for r in range(PH2):
        p2_sc[r:r + 1, :] = jnp.maximum(c2_sc[2 * r:2 * r + 1, :],
                                        c2_sc[2 * r + 1:2 * r + 2, :])

    # ---- fc1 (400->120): contraction split over the PH2 pooled rows, so no
    # in-kernel flatten/reshape is required (fc1 rows were pre-permuted).
    acc = jnp.zeros((1, LANE), f32)
    for r in range(PH2):
        acc = acc + jnp.dot(p2_sc[r:r + 1, :], wf1[r], preferred_element_type=f32)
    f1 = jnp.maximum(acc + bf1[...], 0.0)

    # ---- fc2 -> h ; l1 -> relu ; l2 -> x ; l3 -> y  (all on padded 128/256 lanes)
    h = jnp.maximum(jnp.dot(f1, wf2[...], preferred_element_type=f32) + bf2[...], 0.0)
    x1 = jnp.maximum(jnp.dot(h, wl1[...], preferred_element_type=f32) + bl1[...], 0.0)
    x2 = jnp.dot(x1, wl2[...], preferred_element_type=f32) + bl2[...]
    y = jnp.dot(x2, wl3[...], preferred_element_type=f32) + bl3[...]

    h_ref[0] = h
    x2_ref[0] = x2
    y_ref[0] = y


# --------------------------------- forward -------------------------------------

def _compiler_kwargs():
    cp_cls = getattr(pltpu, "CompilerParams", None) or getattr(pltpu, "TPUCompilerParams", None)
    if cp_cls is None:
        return {}
    return {"compiler_params": cp_cls(dimension_semantics=("parallel",))}


@jax.jit
def mooncnn_forward(pp, x_nchw):
    """MOONCNNCifar.forward.  x_nchw: (B, 3, 32, 32) -> (h, x, y)."""
    B = x_nchw.shape[0]
    assert x_nchw.shape[1:] == (C0, H0, W0), x_nchw.shape
    # one-time input layout fix: NCHW -> (B, H, W*C), zero-padded to 128 lanes
    x = jnp.transpose(x_nchw, (0, 2, 3, 1)).astype(jnp.float32)
    x = x.reshape(B, H0, W0 * C0)
    x = jnp.pad(x, ((0, 0), (0, 0), (0, LANE - W0 * C0)))

    full3 = lambda i: (0, 0, 0)
    full2 = lambda i: (0, 0)
    h_p, x_p, y_p = pl.pallas_call(
        _mooncnn_kernel,
        out_shape=(
            jax.ShapeDtypeStruct((B, 1, LANE), jnp.float32),   # h  (84 real cols)
            jax.ShapeDtypeStruct((B, 1, NL2), jnp.float32),    # x  (256, exact)
            jax.ShapeDtypeStruct((B, 1, LANE), jnp.float32),   # y  (10 real cols)
        ),
        grid=(B,),
        in_specs=[
            pl.BlockSpec((1, H0, LANE), lambda i: (i, 0, 0)),   # image i
            pl.BlockSpec((K, LANE, LANE), full3),               # w1e
            pl.BlockSpec((K, LANE, LANE), full3),               # w1o
            pl.BlockSpec((1, LANE), full2),                     # b1
            pl.BlockSpec((K, LANE, LANE), full3),               # w2e
            pl.BlockSpec((K, LANE, LANE), full3),               # w2o
            pl.BlockSpec((1, LANE), full2),                     # b2
            pl.BlockSpec((PH2, LANE, LANE), full3),             # wf1 (row-chunked)
            pl.BlockSpec((1, LANE), full2),                     # bf1
            pl.BlockSpec((LANE, LANE), full2),                  # wf2
            pl.BlockSpec((1, LANE), full2),                     # bf2
            pl.BlockSpec((LANE, LANE), full2),                  # wl1
            pl.BlockSpec((1, LANE), full2),                     # bl1
            pl.BlockSpec((LANE, NL2), full2),                   # wl2
            pl.BlockSpec((1, NL2), full2),                      # bl2
            pl.BlockSpec((NL2, LANE), full2),                   # wl3
            pl.BlockSpec((1, LANE), full2),                     # bl3
        ],
        out_specs=(
            pl.BlockSpec((1, 1, LANE), lambda i: (i, 0, 0)),
            pl.BlockSpec((1, 1, NL2), lambda i: (i, 0, 0)),
            pl.BlockSpec((1, 1, LANE), lambda i: (i, 0, 0)),
        ),
        scratch_shapes=[
            pltpu.VMEM((OH1, LANE), jnp.float32),   # conv1 width-pooled
            pltpu.VMEM((PH1, LANE), jnp.float32),   # pool1 output (= conv2 input)
            pltpu.VMEM((OH2, LANE), jnp.float32),   # conv2 width-pooled
            pltpu.VMEM((PH2, LANE), jnp.float32),   # pool2 output
        ],
        **_compiler_kwargs(),
    )(x, pp["w1e"], pp["w1o"], pp["b1"], pp["w2e"], pp["w2o"], pp["b2"],
      pp["wf1"], pp["bf1"], pp["wf2"], pp["bf2"], pp["wl1"], pp["bl1"],
      pp["wl2"], pp["bl2"], pp["wl3"], pp["bl3"])

    # slice the real columns out of the padding once, at the very end
    h = h_p[:, 0, :NFC2]
    x_out = x_p[:, 0, :]
    y = y_p[:, 0, :NL3]
    if B == 1:                      # mirror torch .squeeze() semantics
        h, x_out, y = h[0], x_out[0], y[0]
    return h, x_out, y


# ------------------------------ parameter init ---------------------------------

def init_params(key):
    """Synthetic parameters mirroring PyTorch's default init.  fc1's input axis
    follows the torch NCHW flatten order (c*25 + h*5 + w)."""
    def lin(k, fan_in, fan_out):
        kw, kb = jax.random.split(k)
        bound = 1.0 / np.sqrt(fan_in)
        w = jax.random.uniform(kw, (fan_in, fan_out), jnp.float32, -bound, bound)
        b = jax.random.uniform(kb, (fan_out,), jnp.float32, -bound, bound)
        return w, b

    def conv(k, kh, kw_, cin, cout):
        kw1, kb = jax.random.split(k)
        fan_in = kh * kw_ * cin
        bound = 1.0 / np.sqrt(fan_in)
        w = jax.random.uniform(kw1, (kh, kw_, cin, cout), jnp.float32, -bound, bound)
        b = jax.random.uniform(kb, (cout,), jnp.float32, -bound, bound)
        return w, b

    keys = jax.random.split(key, 8)
    p = {}
    p["conv1_w"], p["conv1_b"] = conv(keys[0], K, K, C0, C1)
    p["conv2_w"], p["conv2_b"] = conv(keys[1], K, K, C1, C2)
    p["fc1_w"], p["fc1_b"] = lin(keys[2], PH2 * PW2 * C2, NFC1)
    p["fc2_w"], p["fc2_b"] = lin(keys[3], NFC1, NFC2)
    # fc3 is defined in the PyTorch module but never used in forward(); omitted.
    p["l1_w"], p["l1_b"] = lin(keys[5], NFC2, NL1)
    p["l2_w"], p["l2_b"] = lin(keys[6], NL1, NL2)
    p["l3_w"], p["l3_b"] = lin(keys[7], NL2, NL3)
    return p


# --------------------------- pure-JAX reference (check) -------------------------

def reference_forward(params, x_nchw):
    hp = jax.lax.Precision.HIGHEST
    x = jnp.transpose(x_nchw, (0, 2, 3, 1)).astype(jnp.float32)

    def conv_relu(v, w, b):
        y = jax.lax.conv_general_dilated(
            v, w, window_strides=(1, 1), padding="VALID",
            dimension_numbers=("NHWC", "HWIO", "NHWC"), precision=hp)
        return jax.nn.relu(y + b)

    def pool(v):
        b_, h_, w_, c_ = v.shape
        return v.reshape(b_, h_ // 2, 2, w_ // 2, 2, c_).max(axis=(2, 4))

    h = pool(conv_relu(x, params["conv1_w"], params["conv1_b"]))
    h = pool(conv_relu(h, params["conv2_w"], params["conv2_b"]))
    B = h.shape[0]
    h = jnp.transpose(h, (0, 3, 1, 2)).reshape(B, C2 * PH2 * PW2)   # torch NCHW flatten
    h = jax.nn.relu(jnp.dot(h, params["fc1_w"], precision=hp) + params["fc1_b"])
    h = jax.nn.relu(jnp.dot(h, params["fc2_w"], precision=hp) + params["fc2_b"])
    h = jnp.squeeze(h)
    h2 = h if h.ndim == 2 else h[None, :]
    x1 = jax.nn.relu(jnp.dot(h2, params["l1_w"], precision=hp) + params["l1_b"])
    x2 = jnp.dot(x1, params["l2_w"], precision=hp) + params["l2_b"]
    y = jnp.dot(x2, params["l3_w"], precision=hp) + params["l3_b"]
    if h.ndim == 1:
        x2, y = x2[0], y[0]
    return h, x2, y


# ----------------------------------- main ---------------------------------------

if __name__ == "__main__":
    key = jax.random.PRNGKey(0)
    k_params, k_x = jax.random.split(key)
    raw = init_params(k_params)
    params = prepare_params(raw)             # one-time weight Toeplitz/permute/pad
    # CIFAR-sized input is required by fc1 (= 16*5*5); batch=2.
    x = jax.random.normal(k_x, (2, 3, 32, 32), jnp.float32)

    h, xr, y = mooncnn_forward(params, x)
    jax.block_until_ready((h, xr, y))
    assert h.shape == (2, NFC2), h.shape
    assert xr.shape == (2, NL2), xr.shape
    assert y.shape == (2, NL3), y.shape

    # validate against a pure-JAX reference of the same module
    h_r, x_r, y_r = jax.jit(reference_forward)(raw, x)
    for got, want in ((h, h_r), (xr, x_r), (y, y_r)):
        np.testing.assert_allclose(np.asarray(got), np.asarray(want),
                                   rtol=5e-2, atol=5e-2)

    print("KERNEL_OK")
</pallas_src>

<mosaic_0001>
module attributes {stable_mosaic.version = 11 : i64} {
  func.func @_mooncnn_kernel(%arg0: i32, %arg1: memref<1x32x128xf32, #tpu.memory_space<vmem>>, %arg2: memref<5x128x128xf32, #tpu.memory_space<vmem>>, %arg3: memref<5x128x128xf32, #tpu.memory_space<vmem>>, %arg4: memref<1x128xf32, #tpu.memory_space<vmem>>, %arg5: memref<5x128x128xf32, #tpu.memory_space<vmem>>, %arg6: memref<5x128x128xf32, #tpu.memory_space<vmem>>, %arg7: memref<1x128xf32, #tpu.memory_space<vmem>>, %arg8: memref<5x128x128xf32, #tpu.memory_space<vmem>>, %arg9: memref<1x128xf32, #tpu.memory_space<vmem>>, %arg10: memref<128x128xf32, #tpu.memory_space<vmem>>, %arg11: memref<1x128xf32, #tpu.memory_space<vmem>>, %arg12: memref<128x128xf32, #tpu.memory_space<vmem>>, %arg13: memref<1x128xf32, #tpu.memory_space<vmem>>, %arg14: memref<128x256xf32, #tpu.memory_space<vmem>>, %arg15: memref<1x256xf32, #tpu.memory_space<vmem>>, %arg16: memref<256x128xf32, #tpu.memory_space<vmem>>, %arg17: memref<1x128xf32, #tpu.memory_space<vmem>>, %arg18: memref<1x1x128xf32, #tpu.memory_space<vmem>>, %arg19: memref<1x1x256xf32, #tpu.memory_space<vmem>>, %arg20: memref<1x1x128xf32, #tpu.memory_space<vmem>>, %arg21: memref<28x128xf32, #tpu.memory_space<vmem>>, %arg22: memref<14x128xf32, #tpu.memory_space<vmem>>, %arg23: memref<10x128xf32, #tpu.memory_space<vmem>>, %arg24: memref<5x128xf32, #tpu.memory_space<vmem>>) attributes {dimension_semantics = [#tpu.dimension_semantics<parallel>], iteration_bounds = array<i64: 2>, scalar_prefetch = 0 : i64, scratch_operands = 4 : i64, tpu.core_type = #tpu.core_type<tc>, window_params = [{transform_indices = @transform_0, window_bounds = array<i64: 1, 32, 128>}, {pipeline_mode = #tpu.pipeline_mode<synchronous>, transform_indices = @transform_1, window_bounds = array<i64: 5, 128, 128>}, {pipeline_mode = #tpu.pipeline_mode<synchronous>, transform_indices = @transform_2, window_bounds = array<i64: 5, 128, 128>}, {pipeline_mode = #tpu.pipeline_mode<synchronous>, transform_indices = @transform_3, window_bounds = array<i64: 1, 128>}, {pipeline_mode = #tpu.pipeline_mode<synchronous>, transform_indices = @transform_4, window_bounds = array<i64: 5, 128, 128>}, {pipeline_mode = #tpu.pipeline_mode<synchronous>, transform_indices = @transform_5, window_bounds = array<i64: 5, 128, 128>}, {pipeline_mode = #tpu.pipeline_mode<synchronous>, transform_indices = @transform_6, window_bounds = array<i64: 1, 128>}, {pipeline_mode = #tpu.pipeline_mode<synchronous>, transform_indices = @transform_7, window_bounds = array<i64: 5, 128, 128>}, {pipeline_mode = #tpu.pipeline_mode<synchronous>, transform_indices = @transform_8, window_bounds = array<i64: 1, 128>}, {pipeline_mode = #tpu.pipeline_mode<synchronous>, transform_indices = @transform_9, window_bounds = array<i64: 128, 128>}, {pipeline_mode = #tpu.pipeline_mode<synchronous>, transform_indices = @transform_10, window_bounds = array<i64: 1, 128>}, {pipeline_mode = #tpu.pipeline_mode<synchronous>, transform_indices = @transform_11, window_bounds = array<i64: 128, 128>}, {pipeline_mode = #tpu.pipeline_mode<synchronous>, transform_indices = @transform_12, window_bounds = array<i64: 1, 128>}, {pipeline_mode = #tpu.pipeline_mode<synchronous>, transform_indices = @transform_13, window_bounds = array<i64: 128, 256>}, {pipeline_mode = #tpu.pipeline_mode<synchronous>, transform_indices = @transform_14, window_bounds = array<i64: 1, 256>}, {pipeline_mode = #tpu.pipeline_mode<synchronous>, transform_indices = @transform_15, window_bounds = array<i64: 256, 128>}, {pipeline_mode = #tpu.pipeline_mode<synchronous>, transform_indices = @transform_16, window_bounds = array<i64: 1, 128>}, {transform_indices = @transform_17, window_bounds = array<i64: 1, 1, 128>}, {transform_indices = @transform_18, window_bounds = array<i64: 1, 1, 256>}, {transform_indices = @transform_19, window_bounds = array<i64: 1, 1, 128>}]} {
    %cst = arith.constant 0.000000e+00 : f32
    %0 = vector.broadcast %cst : f32 to vector<28x128xf32>
    %cst_0 = arith.constant 0.000000e+00 : f32
    %1 = vector.broadcast %cst_0 : f32 to vector<28x128xf32>
    %c0 = arith.constant 0 : index
    %c0_1 = arith.constant 0 : index
    %c0_2 = arith.constant 0 : index
    %2 = vector.load %arg1[%c0, %c0_1, %c0_2] : memref<1x32x128xf32, #tpu.memory_space<vmem>>, vector<1x28x128xf32>
    %3 = vector.shape_cast %2 : vector<1x28x128xf32> to vector<28x128xf32>
    %c0_3 = arith.constant 0 : index
    %c0_4 = arith.constant 0 : index
    %c0_5 = arith.constant 0 : index
    %4 = vector.load %arg2[%c0_3, %c0_4, %c0_5] : memref<5x128x128xf32, #tpu.memory_space<vmem>>, vector<1x128x128xf32>
    %5 = vector.shape_cast %4 : vector<1x128x128xf32> to vector<128x128xf32>
    %cst_6 = arith.constant dense<0.000000e+00> : vector<28x128xf32>
    %6 = tpu.matmul %3, %5, %cst_6 {dimension_numbers = #tpu.dot_dimension_numbers<[1], [0], [0], [1], [0, 0, 1, 1], [], []>} : vector<28x128xf32>, vector<128x128xf32>, vector<28x128xf32> -> vector<28x128xf32>
    %7 = arith.addf %0, %6 : vector<28x128xf32>
    %c0_7 = arith.constant 0 : index
    %c0_8 = arith.constant 0 : index
    %c0_9 = arith.constant 0 : index
    %8 = vector.load %arg3[%c0_7, %c0_8, %c0_9] : memref<5x128x128xf32, #tpu.memory_space<vmem>>, vector<1x128x128xf32>
    %9 = vector.shape_cast %8 : vector<1x128x128xf32> to vector<128x128xf32>
    %cst_10 = arith.constant dense<0.000000e+00> : vector<28x128xf32>
    %10 = tpu.matmul %3, %9, %cst_10 {dimension_numbers = #tpu.dot_dimension_numbers<[1], [0], [0], [1], [0, 0, 1, 1], [], []>} : vector<28x128xf32>, vector<128x128xf32>, vector<28x128xf32> -> vector<28x128xf32>
    %11 = arith.addf %1, %10 : vector<28x128xf32>
    %c0_11 = arith.constant 0 : index
    %c1 = arith.constant 1 : index
    %c0_12 = arith.constant 0 : index
    %12 = vector.load %arg1[%c0_11, %c1, %c0_12] : memref<1x32x128xf32, #tpu.memory_space<vmem>>, vector<1x28x128xf32>
    %13 = vector.shape_cast %12 : vector<1x28x128xf32> to vector<28x128xf32>
    %c1_13 = arith.constant 1 : index
    %c0_14 = arith.constant 0 : index
    %c0_15 = arith.constant 0 : index
    %14 = vector.load %arg2[%c1_13, %c0_14, %c0_15] : memref<5x128x128xf32, #tpu.memory_space<vmem>>, vector<1x128x128xf32>
    %15 = vector.shape_cast %14 : vector<1x128x128xf32> to vector<128x128xf32>
    %cst_16 = arith.constant dense<0.000000e+00> : vector<28x128xf32>
    %16 = tpu.matmul %13, %15, %cst_16 {dimension_numbers = #tpu.dot_dimension_numbers<[1], [0], [0], [1], [0, 0, 1, 1], [], []>} : vector<28x128xf32>, vector<128x128xf32>, vector<28x128xf32> -> vector<28x128xf32>
    %17 = arith.addf %7, %16 : vector<28x128xf32>
    %c1_17 = arith.constant 1 : index
    %c0_18 = arith.constant 0 : index
    %c0_19 = arith.constant 0 : index
    %18 = vector.load %arg3[%c1_17, %c0_18, %c0_19] : memref<5x128x128xf32, #tpu.memory_space<vmem>>, vector<1x128x128xf32>
    %19 = vector.shape_cast %18 : vector<1x128x128xf32> to vector<128x128xf32>
    %cst_20 = arith.constant dense<0.000000e+00> : vector<28x128xf32>
    %20 = tpu.matmul %13, %19, %cst_20 {dimension_numbers = #tpu.dot_dimension_numbers<[1], [0], [0], [1], [0, 0, 1, 1], [], []>} : vector<28x128xf32>, vector<128x128xf32>, vector<28x128xf32> -> vector<28x128xf32>
    %21 = arith.addf %11, %20 : vector<28x128xf32>
    %c0_21 = arith.constant 0 : index
    %c2 = arith.constant 2 : index
    %c0_22 = arith.constant 0 : index
    %22 = vector.load %arg1[%c0_21, %c2, %c0_22] : memref<1x32x128xf32, #tpu.memory_space<vmem>>, vector<1x28x128xf32>
    %23 = vector.shape_cast %22 : vector<1x28x128xf32> to vector<28x128xf32>
    %c2_23 = arith.constant 2 : index
    %c0_24 = arith.constant 0 : index
    %c0_25 = arith.constant 0 : index
    %24 = vector.load %arg2[%c2_23, %c0_24, %c0_25] : memref<5x128x128xf32, #tpu.memory_space<vmem>>, vector<1x128x128xf32>
    %25 = vector.shape_cast %24 : vector<1x128x128xf32> to vector<128x128xf32>
    %cst_26 = arith.constant dense<0.000000e+00> : vector<28x128xf32>
    %26 = tpu.matmul %23, %25, %cst_26 {dimension_numbers = #tpu.dot_dimension_numbers<[1], [0], [0], [1], [0, 0, 1, 1], [], []>} : vector<28x128xf32>, vector<128x128xf32>, vector<28x128xf32> -> vector<28x128xf32>
    %27 = arith.addf %17, %26 : vector<28x128xf32>
    %c2_27 = arith.constant 2 : index
    %c0_28 = arith.constant 0 : index
    %c0_29 = arith.constant 0 : index
    %28 = vector.load %arg3[%c2_27, %c0_28, %c0_29] : memref<5x128x128xf32, #tpu.memory_space<vmem>>, vector<1x128x128xf32>
    %29 = vector.shape_cast %28 : vector<1x128x128xf32> to vector<128x128xf32>
    %cst_30 = arith.constant dense<0.000000e+00> : vector<28x128xf32>
    %30 = tpu.matmul %23, %29, %cst_30 {dimension_numbers = #tpu.dot_dimension_numbers<[1], [0], [0], [1], [0, 0, 1, 1], [], []>} : vector<28x128xf32>, vector<128x128xf32>, vector<28x128xf32> -> vector<28x128xf32>
    %31 = arith.addf %21, %30 : vector<28x128xf32>
    %c0_31 = arith.constant 0 : index
    %c3 = arith.constant 3 : index
    %c0_32 = arith.constant 0 : index
    %32 = vector.load %arg1[%c0_31, %c3, %c0_32] : memref<1x32x128xf32, #tpu.memory_space<vmem>>, vector<1x28x128xf32>
    %33 = vector.shape_cast %32 : vector<1x28x128xf32> to vector<28x128xf32>
    %c3_33 = arith.constant 3 : index
    %c0_34 = arith.constant 0 : index
    %c0_35 = arith.constant 0 : index
    %34 = vector.load %arg2[%c3_33, %c0_34, %c0_35] : memref<5x128x128xf32, #tpu.memory_space<vmem>>, vector<1x128x128xf32>
    %35 = vector.shape_cast %34 : vector<1x128x128xf32> to vector<128x128xf32>
    %cst_36 = arith.constant dense<0.000000e+00> : vector<28x128xf32>
    %36 = tpu.matmul %33, %35, %cst_36 {dimension_numbers = #tpu.dot_dimension_numbers<[1], [0], [0], [1], [0, 0, 1, 1], [], []>} : vector<28x128xf32>, vector<128x128xf32>, vector<28x128xf32> -> vector<28x128xf32>
    %37 = arith.addf %27, %36 : vector<28x128xf32>
    %c3_37 = arith.constant 3 : index
    %c0_38 = arith.constant 0 : index
    %c0_39 = arith.constant 0 : index
    %38 = vector.load %arg3[%c3_37, %c0_38, %c0_39] : memref<5x128x128xf32, #tpu.memory_space<vmem>>, vector<1x128x128xf32>
    %39 = vector.shape_cast %38 : vector<1x128x128xf32> to vector<128x128xf32>
    %cst_40 = arith.constant dense<0.000000e+00> : vector<28x128xf32>
    %40 = tpu.matmul %33, %39, %cst_40 {dimension_numbers = #tpu.dot_dimension_numbers<[1], [0], [0], [1], [0, 0, 1, 1], [], []>} : vector<28x128xf32>, vector<128x128xf32>, vector<28x128xf32> -> vector<28x128xf32>
    %41 = arith.addf %31, %40 : vector<28x128xf32>
    %c0_41 = arith.constant 0 : index
    %c4 = arith.constant 4 : index
    %c0_42 = arith.constant 0 : index
    %42 = vector.load %arg1[%c0_41, %c4, %c0_42] : memref<1x32x128xf32, #tpu.memory_space<vmem>>, vector<1x28x128xf32>
    %43 = vector.shape_cast %42 : vector<1x28x128xf32> to vector<28x128xf32>
    %c4_43 = arith.constant 4 : index
    %c0_44 = arith.constant 0 : index
    %c0_45 = arith.constant 0 : index
    %44 = vector.load %arg2[%c4_43, %c0_44, %c0_45] : memref<5x128x128xf32, #tpu.memory_space<vmem>>, vector<1x128x128xf32>
    %45 = vector.shape_cast %44 : vector<1x128x128xf32> to vector<128x128xf32>
    %cst_46 = arith.constant dense<0.000000e+00> : vector<28x128xf32>
    %46 = tpu.matmul %43, %45, %cst_46 {dimension_numbers = #tpu.dot_dimension_numbers<[1], [0], [0], [1], [0, 0, 1, 1], [], []>} : vector<28x128xf32>, vector<128x128xf32>, vector<28x128xf32> -> vector<28x128xf32>
    %47 = arith.addf %37, %46 : vector<28x128xf32>
    %c4_47 = arith.constant 4 : index
    %c0_48 = arith.constant 0 : index
    %c0_49 = arith.constant 0 : index
    %48 = vector.load %arg3[%c4_47, %c0_48, %c0_49] : memref<5x128x128xf32, #tpu.memory_space<vmem>>, vector<1x128x128xf32>
    %49 = vector.shape_cast %48 : vector<1x128x128xf32> to vector<128x128xf32>
    %cst_50 = arith.constant dense<0.000000e+00> : vector<28x128xf32>
    %50 = tpu.matmul %43, %49, %cst_50 {dimension_numbers = #tpu.dot_dimension_numbers<[1], [0], [0], [1], [0, 0, 1, 1], [], []>} : vector<28x128xf32>, vector<128x128xf32>, vector<28x128xf32> -> vector<28x128xf32>
    %51 = arith.addf %41, %50 : vector<28x128xf32>
    %c0_51 = arith.constant 0 : index
    %c0_52 = arith.constant 0 : index
    %52 = vector.load %arg4[%c0_51, %c0_52] : memref<1x128xf32, #tpu.memory_space<vmem>>, vector<1x128xf32>
    %53 = vector.broadcast %52 : vector<1x128xf32> to vector<28x128xf32>
    %54 = arith.addf %47, %53 : vector<28x128xf32>
    %cst_53 = arith.constant 0.000000e+00 : f32
    %55 = vector.broadcast %cst_53 : f32 to vector<28x128xf32>
    %56 = arith.maximumf %54, %55 : vector<28x128xf32>
    %c0_54 = arith.constant 0 : index
    %c0_55 = arith.constant 0 : index
    %57 = vector.load %arg4[%c0_54, %c0_55] : memref<1x128xf32, #tpu.memory_space<vmem>>, vector<1x128xf32>
    %58 = vector.broadcast %57 : vector<1x128xf32> to vector<28x128xf32>
    %59 = arith.addf %51, %58 : vector<28x128xf32>
    %cst_56 = arith.constant 0.000000e+00 : f32
    %60 = vector.broadcast %cst_56 : f32 to vector<28x128xf32>
    %61 = arith.maximumf %59, %60 : vector<28x128xf32>
    %62 = arith.maximumf %56, %61 : vector<28x128xf32>
    %c0_57 = arith.constant 0 : index
    %c0_58 = arith.constant 0 : index
    %63 = vector.load %arg21[%c0_57, %c0_58] : memref<28x128xf32, #tpu.memory_space<vmem>>, vector<28x128xf32>
    tpu.vector_store %arg21[%c0_57, %c0_58], %62 {strides = array<i32>} : memref<28x128xf32, #tpu.memory_space<vmem>>, vector<28x128xf32>,
    %c0_59 = arith.constant 0 : index
    %c0_60 = arith.constant 0 : index
    %64 = vector.load %arg21[%c0_59, %c0_60] : memref<28x128xf32, #tpu.memory_space<vmem>>, vector<1x128xf32>
    %c1_61 = arith.constant 1 : index
    %c0_62 = arith.constant 0 : index
    %65 = vector.load %arg21[%c1_61, %c0_62] : memref<28x128xf32, #tpu.memory_space<vmem>>, vector<1x128xf32>
    %66 = arith.maximumf %64, %65 : vector<1x128xf32>
    %c0_63 = arith.constant 0 : index
    %c0_64 = arith.constant 0 : index
    %67 = vector.load %arg22[%c0_63, %c0_64] : memref<14x128xf32, #tpu.memory_space<vmem>>, vector<1x128xf32>
    tpu.vector_store %arg22[%c0_63, %c0_64], %66 {strides = array<i32>} : memref<14x128xf32, #tpu.memory_space<vmem>>, vector<1x128xf32>,
    %c2_65 = arith.constant 2 : index
    %c0_66 = arith.constant 0 : index
    %68 = vector.load %arg21[%c2_65, %c0_66] : memref<28x128xf32, #tpu.memory_space<vmem>>, vector<1x128xf32>
    %c3_67 = arith.constant 3 : index
    %c0_68 = arith.constant 0 : index
    %69 = vector.load %arg21[%c3_67, %c0_68] : memref<28x128xf32, #tpu.memory_space<vmem>>, vector<1x128xf32>
    %70 = arith.maximumf %68, %69 : vector<1x128xf32>
    %c1_69 = arith.constant 1 : index
    %c0_70 = arith.constant 0 : index
    %71 = vector.load %arg22[%c1_69, %c0_70] : memref<14x128xf32, #tpu.memory_space<vmem>>, vector<1x128xf32>
    tpu.vector_store %arg22[%c1_69, %c0_70], %70 {strides = array<i32>} : memref<14x128xf32, #tpu.memory_space<vmem>>, vector<1x128xf32>,
    %c4_71 = arith.constant 4 : index
    %c0_72 = arith.constant 0 : index
    %72 = vector.load %arg21[%c4_71, %c0_72] : memref<28x128xf32, #tpu.memory_space<vmem>>, vector<1x128xf32>
    %c5 = arith.constant 5 : index
    %c0_73 = arith.constant 0 : index
    %73 = vector.load %arg21[%c5, %c0_73] : memref<28x128xf32, #tpu.memory_space<vmem>>, vector<1x128xf32>
    %74 = arith.maximumf %72, %73 : vector<1x128xf32>
    %c2_74 = arith.constant 2 : index
    %c0_75 = arith.constant 0 : index
    %75 = vector.load %arg22[%c2_74, %c0_75] : memref<14x128xf32, #tpu.memory_space<vmem>>, vector<1x128xf32>
    tpu.vector_store %arg22[%c2_74, %c0_75], %74 {strides = array<i32>} : memref<14x128xf32, #tpu.memory_space<vmem>>, vector<1x128xf32>,
    %c6 = arith.constant 6 : index
    %c0_76 = arith.constant 0 : index
    %76 = vector.load %arg21[%c6, %c0_76] : memref<28x128xf32, #tpu.memory_space<vmem>>, vector<1x128xf32>
    %c7 = arith.constant 7 : index
    %c0_77 = arith.constant 0 : index
    %77 = vector.load %arg21[%c7, %c0_77] : memref<28x128xf32, #tpu.memory_space<vmem>>, vector<1x128xf32>
    %78 = arith.maximumf %76, %77 : vector<1x128xf32>
    %c3_78 = arith.constant 3 : index
    %c0_79 = arith.constant 0 : index
    %79 = vector.load %arg22[%c3_78, %c0_79] : memref<14x128xf32, #tpu.memory_space<vmem>>, vector<1x128xf32>
    tpu.vector_store %arg22[%c3_78, %c0_79], %78 {strides = array<i32>} : memref<14x128xf32, #tpu.memory_space<vmem>>, vector<1x128xf32>,
    %c8 = arith.constant 8 : index
    %c0_80 = arith.constant 0 : index
    %80 = vector.load %arg21[%c8, %c0_80] : memref<28x128xf32, #tpu.memory_space<vmem>>, vector<1x128xf32>
    %c9 = arith.constant 9 : index
    %c0_81 = arith.constant 0 : index
    %81 = vector.load %arg21[%c9, %c0_81] : memref<28x128xf32, #tpu.memory_space<vmem>>, vector<1x128xf32>
    %82 = arith.maximumf %80, %81 : vector<1x128xf32>
    %c4_82 = arith.constant 4 : index
    %c0_83 = arith.constant 0 : index
    %83 = vector.load %arg22[%c4_82, %c0_83] : memref<14x128xf32, #tpu.memory_space<vmem>>, vector<1x128xf32>
    tpu.vector_store %arg22[%c4_82, %c0_83], %82 {strides = array<i32>} : memref<14x128xf32, #tpu.memory_space<vmem>>, vector<1x128xf32>,
    %c10 = arith.constant 10 : index
    %c0_84 = arith.constant 0 : index
    %84 = vector.load %arg21[%c10, %c0_84] : memref<28x128xf32, #tpu.memory_space<vmem>>, vector<1x128xf32>
    %c11 = arith.constant 11 : index
    %c0_85 = arith.constant 0 : index
    %85 = vector.load %arg21[%c11, %c0_85] : memref<28x128xf32, #tpu.memory_space<vmem>>, vector<1x128xf32>
    %86 = arith.maximumf %84, %85 : vector<1x128xf32>
    %c5_86 = arith.constant 5 : index
    %c0_87 = arith.constant 0 : index
    %87 = vector.load %arg22[%c5_86, %c0_87] : memref<14x128xf32, #tpu.memory_space<vmem>>, vector<1x128xf32>
    tpu.vector_store %arg22[%c5_86, %c0_87], %86 {strides = array<i32>} : memref<14x128xf32, #tpu.memory_space<vmem>>, vector<1x128xf32>,
    %c12 = arith.constant 12 : index
    %c0_88 = arith.constant 0 : index
    %88 = vector.load %arg21[%c12, %c0_88] : memref<28x128xf32, #tpu.memory_space<vmem>>, vector<1x128xf32>
    %c13 = arith.constant 13 : index
    %c0_89 = arith.constant 0 : index
    %89 = vector.load %arg21[%c13, %c0_89] : memref<28x128xf32, #tpu.memory_space<vmem>>, vector<1x128xf32>
    %90 = arith.maximumf %88, %89 : vector<1x128xf32>
    %c6_90 = arith.constant 6 : index
    %c0_91 = arith.constant 0 : index
    %91 = vector.load %arg22[%c6_90, %c0_91] : memref<14x128xf32, #tpu.memory_space<vmem>>, vector<1x128xf32>
    tpu.vector_store %arg22[%c6_90, %c0_91], %90 {strides = array<i32>} : memref<14x128xf32, #tpu.memory_space<vmem>>, vector<1x128xf32>,
    %c14 = arith.constant 14 : index
    %c0_92 = arith.constant 0 : index
    %92 = vector.load %arg21[%c14, %c0_92] : memref<28x128xf32, #tpu.memory_space<vmem>>, vector<1x128xf32>
    %c15 = arith.constant 15 : index
    %c0_93 = arith.constant 0 : index
    %93 = vector.load %arg21[%c15, %c0_93] : memref<28x128xf32, #tpu.memory_space<vmem>>, vector<1x128xf32>
    %94 = arith.maximumf %92, %93 : vector<1x128xf32>
    %c7_94 = arith.constant 7 : index
    %c0_95 = arith.constant 0 : index
    %95 = vector.load %arg22[%c7_94, %c0_95] : memref<14x128xf32, #tpu.memory_space<vmem>>, vector<1x128xf32>
    tpu.vector_store %arg22[%c7_94, %c0_95], %94 {strides = array<i32>} : memref<14x128xf32, #tpu.memory_space<vmem>>, vector<1x128xf32>,
    %c16 = arith.constant 16 : index
    %c0_96 = arith.constant 0 : index
    %96 = vector.load %arg21[%c16, %c0_96] : memref<28x128xf32, #tpu.memory_space<vmem>>, vector<1x128xf32>
    %c17 = arith.constant 17 : index
    %c0_97 = arith.constant 0 : index
    %97 = vector.load %arg21[%c17, %c0_97] : memref<28x128xf32, #tpu.memory_space<vmem>>, vector<1x128xf32>
    %98 = arith.maximumf %96, %97 : vector<1x128xf32>
    %c8_98 = arith.constant 8 : index
    %c0_99 = arith.constant 0 : index
    %99 = vector.load %arg22[%c8_98, %c0_99] : memref<14x128xf32, #tpu.memory_space<vmem>>, vector<1x128xf32>
    tpu.vector_store %arg22[%c8_98, %c0_99], %98 {strides = array<i32>} : memref<14x128xf32, #tpu.memory_space<vmem>>, vector<1x128xf32>,
    %c18 = arith.constant 18 : index
    %c0_100 = arith.constant 0 : index
    %100 = vector.load %arg21[%c18, %c0_100] : memref<28x128xf32, #tpu.memory_space<vmem>>, vector<1x128xf32>
    %c19 = arith.constant 19 : index
    %c0_101 = arith.constant 0 : index
    %101 = vector.load %arg21[%c19, %c0_101] : memref<28x128xf32, #tpu.memory_space<vmem>>, vector<1x128xf32>
    %102 = arith.maximumf %100, %101 : vector<1x128xf32>
    %c9_102 = arith.constant 9 : index
    %c0_103 = arith.constant 0 : index
    %103 = vector.load %arg22[%c9_102, %c0_103] : memref<14x128xf32, #tpu.memory_space<vmem>>, vector<1x128xf32>
    tpu.vector_store %arg22[%c9_102, %c0_103], %102 {strides = array<i32>} : memref<14x128xf32, #tpu.memory_space<vmem>>, vector<1x128xf32>,
    %c20 = arith.constant 20 : index
    %c0_104 = arith.constant 0 : index
    %104 = vector.load %arg21[%c20, %c0_104] : memref<28x128xf32, #tpu.memory_space<vmem>>, vector<1x128xf32>
    %c21 = arith.constant 21 : index
    %c0_105 = arith.constant 0 : index
    %105 = vector.load %arg21[%c21, %c0_105] : memref<28x128xf32, #tpu.memory_space<vmem>>, vector<1x128xf32>
    %106 = arith.maximumf %104, %105 : vector<1x128xf32>
    %c10_106 = arith.constant 10 : index
    %c0_107 = arith.constant 0 : index
    %107 = vector.load %arg22[%c10_106, %c0_107] : memref<14x128xf32, #tpu.memory_space<vmem>>, vector<1x128xf32>
    tpu.vector_store %arg22[%c10_106, %c0_107], %106 {strides = array<i32>} : memref<14x128xf32, #tpu.memory_space<vmem>>, vector<1x128xf32>,
    %c22 = arith.constant 22 : index
    %c0_108 = arith.constant 0 : index
    %108 = vector.load %arg21[%c22, %c0_108] : memref<28x128xf32, #tpu.memory_space<vmem>>, vector<1x128xf32>
    %c23 = arith.constant 23 : index
    %c0_109 = arith.constant 0 : index
    %109 = vector.load %arg21[%c23, %c0_109] : memref<28x128xf32, #tpu.memory_space<vmem>>, vector<1x128xf32>
    %110 = arith.maximumf %108, %109 : vector<1x128xf32>
    %c11_110 = arith.constant 11 : index
    %c0_111 = arith.constant 0 : index
    %111 = vector.load %arg22[%c11_110, %c0_111] : memref<14x128xf32, #tpu.memory_space<vmem>>, vector<1x128xf32>
    tpu.vector_store %arg22[%c11_110, %c0_111], %110 {strides = array<i32>} : memref<14x128xf32, #tpu.memory_space<vmem>>, vector<1x128xf32>,
    %c24 = arith.constant 24 : index
    %c0_112 = arith.constant 0 : index
    %112 = vector.load %arg21[%c24, %c0_112] : memref<28x128xf32, #tpu.memory_space<vmem>>, vector<1x128xf32>
    %c25 = arith.constant 25 : index
    %c0_113 = arith.constant 0 : index
    %113 = vector.load %arg21[%c25, %c0_113] : memref<28x128xf32, #tpu.memory_space<vmem>>, vector<1x128xf32>
    %114 = arith.maximumf %112, %113 : vector<1x128xf32>
    %c12_114 = arith.constant 12 : index
    %c0_115 = arith.constant 0 : index
    %115 = vector.load %arg22[%c12_114, %c0_115] : memref<14x128xf32, #tpu.memory_space<vmem>>, vector<1x128xf32>
    tpu.vector_store %arg22[%c12_114, %c0_115], %114 {strides = array<i32>} : memref<14x128xf32, #tpu.memory_space<vmem>>, vector<1x128xf32>,
    %c26 = arith.constant 26 : index
    %c0_116 = arith.constant 0 : index
    %116 = vector.load %arg21[%c26, %c0_116] : memref<28x128xf32, #tpu.memory_space<vmem>>, vector<1x128xf32>
    %c27 = arith.constant 27 : index
    %c0_117 = arith.constant 0 : index
    %117 = vector.load %arg21[%c27, %c0_117] : memref<28x128xf32, #tpu.memory_space<vmem>>, vector<1x128xf32>
    %118 = arith.maximumf %116, %117 : vector<1x128xf32>
    %c13_118 = arith.constant 13 : index
    %c0_119 = arith.constant 0 : index
    %119 = vector.load %arg22[%c13_118, %c0_119] : memref<14x128xf32, #tpu.memory_space<vmem>>, vector<1x128xf32>
    tpu.vector_store %arg22[%c13_118, %c0_119], %118 {strides = array<i32>} : memref<14x128xf32, #tpu.memory_space<vmem>>, vector<1x128xf32>,
    %cst_120 = arith.constant 0.000000e+00 : f32
    %120 = vector.broadcast %cst_120 : f32 to vector<10x128xf32>
    %cst_121 = arith.constant 0.000000e+00 : f32
    %121 = vector.broadcast %cst_121 : f32 to vector<10x128xf32>
    %c0_122 = arith.constant 0 : index
    %c0_123 = arith.constant 0 : index
    %122 = vector.load %arg22[%c0_122, %c0_123] : memref<14x128xf32, #tpu.memory_space<vmem>>, vector<10x128xf32>
    %c0_124 = arith.constant 0 : index
    %c0_125 = arith.constant 0 : index
    %c0_126 = arith.constant 0 : index
    %123 = vector.load %arg5[%c0_124, %c0_125, %c0_126] : memref<5x128x128xf32, #tpu.memory_space<vmem>>, vector<1x128x128xf32>
    %124 = vector.shape_cast %123 : vector<1x128x128xf32> to vector<128x128xf32>
    %cst_127 = arith.constant dense<0.000000e+00> : vector<10x128xf32>
    %125 = tpu.matmul %122, %124, %cst_127 {dimension_numbers = #tpu.dot_dimension_numbers<[1], [0], [0], [1], [0, 0, 1, 1], [], []>} : vector<10x128xf32>, vector<128x128xf32>, vector<10x128xf32> -> vector<10x128xf32>
    %126 = arith.addf %120, %125 : vector<10x128xf32>
    %c0_128 = arith.constant 0 : index
    %c0_129 = arith.constant 0 : index
    %c0_130 = arith.constant 0 : index
    %127 = vector.load %arg6[%c0_128, %c0_129, %c0_130] : memref<5x128x128xf32, #tpu.memory_space<vmem>>, vector<1x128x128xf32>
    %128 = vector.shape_cast %127 : vector<1x128x128xf32> to vector<128x128xf32>
    %cst_131 = arith.constant dense<0.000000e+00> : vector<10x128xf32>
    %129 = tpu.matmul %122, %128, %cst_131 {dimension_numbers = #tpu.dot_dimension_numbers<[1], [0], [0], [1], [0, 0, 1, 1], [], []>} : vector<10x128xf32>, vector<128x128xf32>, vector<10x128xf32> -> vector<10x128xf32>
    %130 = arith.addf %121, %129 : vector<10x128xf32>
    %c1_132 = arith.constant 1 : index
    %c0_133 = arith.constant 0 : index
    %131 = vector.load %arg22[%c1_132, %c0_133] : memref<14x128xf32, #tpu.memory_space<vmem>>, vector<10x128xf32>
    %c1_134 = arith.constant 1 : index
    %c0_135 = arith.constant 0 : index
    %c0_136 = arith.constant 0 : index
    %132 = vector.load %arg5[%c1_134, %c0_135, %c0_136] : memref<5x128x128xf32, #tpu.memory_space<vmem>>, vector<1x128x128xf32>
    %133 = vector.shape_cast %132 : vector<1x128x128xf32> to vector<128x128xf32>
    %cst_137 = arith.constant dense<0.000000e+00> : vector<10x128xf32>
    %134 = tpu.matmul %131, %133, %cst_137 {dimension_numbers = #tpu.dot_dimension_numbers<[1], [0], [0], [1], [0, 0, 1, 1], [], []>} : vector<10x128xf32>, vector<128x128xf32>, vector<10x128xf32> -> vector<10x128xf32>
    %135 = arith.addf %126, %134 : vector<10x128xf32>
    %c1_138 = arith.constant 1 : index
    %c0_139 = arith.constant 0 : index
    %c0_140 = arith.constant 0 : index
    %136 = vector.load %arg6[%c1_138, %c0_139, %c0_140] : memref<5x128x128xf32, #tpu.memory_space<vmem>>, vector<1x128x128xf32>
    %137 = vector.shape_cast %136 : vector<1x128x128xf32> to vector<128x128xf32>
    %cst_141 = arith.constant dense<0.000000e+00> : vector<10x128xf32>
    %138 = tpu.matmul %131, %137, %cst_141 {dimension_numbers = #tpu.dot_dimension_numbers<[1], [0], [0], [1], [0, 0, 1, 1], [], []>} : vector<10x128xf32>, vector<128x128xf32>, vector<10x128xf32> -> vector<10x128xf32>
    %139 = arith.addf %130, %138 : vector<10x128xf32>
    %c2_142 = arith.constant 2 : index
    %c0_143 = arith.constant 0 : index
    %140 = vector.load %arg22[%c2_142, %c0_143] : memref<14x128xf32, #tpu.memory_space<vmem>>, vector<10x128xf32>
    %c2_144 = arith.constant 2 : index
    %c0_145 = arith.constant 0 : index
    %c0_146 = arith.constant 0 : index
    %141 = vector.load %arg5[%c2_144, %c0_145, %c0_146] : memref<5x128x128xf32, #tpu.memory_space<vmem>>, vector<1x128x128xf32>
    %142 = vector.shape_cast %141 : vector<1x128x128xf32> to vector<128x128xf32>
    %cst_147 = arith.constant dense<0.000000e+00> : vector<10x128xf32>
    %143 = tpu.matmul %140, %142, %cst_147 {dimension_numbers = #tpu.dot_dimension_numbers<[1], [0], [0], [1], [0, 0, 1, 1], [], []>} : vector<10x128xf32>, vector<128x128xf32>, vector<10x128xf32> -> vector<10x128xf32>
    %144 = arith.addf %135, %143 : vector<10x128xf32>
    %c2_148 = arith.constant 2 : index
    %c0_149 = arith.constant 0 : index
    %c0_150 = arith.constant 0 : index
    %145 = vector.load %arg6[%c2_148, %c0_149, %c0_150] : memref<5x128x128xf32, #tpu.memory_space<vmem>>, vector<1x128x128xf32>
    %146 = vector.shape_cast %145 : vector<1x128x128xf32> to vector<128x128xf32>
    %cst_151 = arith.constant dense<0.000000e+00> : vector<10x128xf32>
    %147 = tpu.matmul %140, %146, %cst_151 {dimension_numbers = #tpu.dot_dimension_numbers<[1], [0], [0], [1], [0, 0, 1, 1], [], []>} : vector<10x128xf32>, vector<128x128xf32>, vector<10x128xf32> -> vector<10x128xf32>
    %148 = arith.addf %139, %147 : vector<10x128xf32>
    %c3_152 = arith.constant 3 : index
    %c0_153 = arith.constant 0 : index
    %149 = vector.load %arg22[%c3_152, %c0_153] : memref<14x128xf32, #tpu.memory_space<vmem>>, vector<10x128xf32>
    %c3_154 = arith.constant 3 : index
    %c0_155 = arith.constant 0 : index
    %c0_156 = arith.constant 0 : index
    %150 = vector.load %arg5[%c3_154, %c0_155, %c0_156] : memref<5x128x128xf32, #tpu.memory_space<vmem>>, vector<1x128x128xf32>
    %151 = vector.shape_cast %150 : vector<1x128x128xf32> to vector<128x128xf32>
    %cst_157 = arith.constant dense<0.000000e+00> : vector<10x128xf32>
    %152 = tpu.matmul %149, %151, %cst_157 {dimension_numbers = #tpu.dot_dimension_numbers<[1], [0], [0], [1], [0, 0, 1, 1], [], []>} : vector<10x128xf32>, vector<128x128xf32>, vector<10x128xf32> -> vector<10x128xf32>
    %153 = arith.addf %144, %152 : vector<10x128xf32>
    %c3_158 = arith.constant 3 : index
    %c0_159 = arith.constant 0 : index
    %c0_160 = arith.constant 0 : index
    %154 = vector.load %arg6[%c3_158, %c0_159, %c0_160] : memref<5x128x128xf32, #tpu.memory_space<vmem>>, vector<1x128x128xf32>
    %155 = vector.shape_cast %154 : vector<1x128x128xf32> to vector<128x128xf32>
    %cst_161 = arith.constant dense<0.000000e+00> : vector<10x128xf32>
    %156 = tpu.matmul %149, %155, %cst_161 {dimension_numbers = #tpu.dot_dimension_numbers<[1], [0], [0], [1], [0, 0, 1, 1], [], []>} : vector<10x128xf32>, vector<128x128xf32>, vector<10x128xf32> -> vector<10x128xf32>
    %157 = arith.addf %148, %156 : vector<10x128xf32>
    %c4_162 = arith.constant 4 : index
    %c0_163 = arith.constant 0 : index
    %158 = vector.load %arg22[%c4_162, %c0_163] : memref<14x128xf32, #tpu.memory_space<vmem>>, vector<10x128xf32>
    %c4_164 = arith.constant 4 : index
    %c0_165 = arith.constant 0 : index
    %c0_166 = arith.constant 0 : index
    %159 = vector.load %arg5[%c4_164, %c0_165, %c0_166] : memref<5x128x128xf32, #tpu.memory_space<vmem>>, vector<1x128x128xf32>
    %160 = vector.shape_cast %159 : vector<1x128x128xf32> to vector<128x128xf32>
    %cst_167 = arith.constant dense<0.000000e+00> : vector<10x128xf32>
    %161 = tpu.matmul %158, %160, %cst_167 {dimension_numbers = #tpu.dot_dimension_numbers<[1], [0], [0], [1], [0, 0, 1, 1], [], []>} : vector<10x128xf32>, vector<128x128xf32>, vector<10x128xf32> -> vector<10x128xf32>
    %162 = arith.addf %153, %161 : vector<10x128xf32>
    %c4_168 = arith.constant 4 : index
    %c0_169 = arith.constant 0 : index
    %c0_170 = arith.constant 0 : index
    %163 = vector.load %arg6[%c4_168, %c0_169, %c0_170] : memref<5x128x128xf32, #tpu.memory_space<vmem>>, vector<1x128x128xf32>
    %164 = vector.shape_cast %163 : vector<1x128x128xf32> to vector<128x128xf32>
    %cst_171 = arith.constant dense<0.000000e+00> : vector<10x128xf32>
    %165 = tpu.matmul %158, %164, %cst_171 {dimension_numbers = #tpu.dot_dimension_numbers<[1], [0], [0], [1], [0, 0, 1, 1], [], []>} : vector<10x128xf32>, vector<128x128xf32>, vector<10x128xf32> -> vector<10x128xf32>
    %166 = arith.addf %157, %165 : vector<10x128xf32>
    %c0_172 = arith.constant 0 : index
    %c0_173 = arith.constant 0 : index
    %167 = vector.load %arg7[%c0_172, %c0_173] : memref<1x128xf32, #tpu.memory_space<vmem>>, vector<1x128xf32>
    %168 = vector.broadcast %167 : vector<1x128xf32> to vector<10x128xf32>
    %169 = arith.addf %162, %168 : vector<10x128xf32>
    %cst_174 = arith.constant 0.000000e+00 : f32
    %170 = vector.broadcast %cst_174 : f32 to vector<10x128xf32>
    %171 = arith.maximumf %169, %170 : vector<10x128xf32>
    %c0_175 = arith.constant 0 : index
    %c0_176 = arith.constant 0 : index
    %172 = vector.load %arg7[%c0_175, %c0_176] : memref<1x128xf32, #tpu.memory_space<vmem>>, vector<1x128xf32>
    %173 = vector.broadcast %172 : vector<1x128xf32> to vector<10x128xf32>
    %174 = arith.addf %166, %173 : vector<10x128xf32>
    %cst_177 = arith.constant 0.000000e+00 : f32
    %175 = vector.broadcast %cst_177 : f32 to vector<10x128xf32>
    %176 = arith.maximumf %174, %175 : vector<10x128xf32>
    %177 = arith.maximumf %171, %176 : vector<10x128xf32>
    %c0_178 = arith.constant 0 : index
    %c0_179 = arith.constant 0 : index
    %178 = vector.load %arg23[%c0_178, %c0_179] : memref<10x128xf32, #tpu.memory_space<vmem>>, vector<10x128xf32>
    tpu.vector_store %arg23[%c0_178, %c0_179], %177 {strides = array<i32>} : memref<10x128xf32, #tpu.memory_space<vmem>>, vector<10x128xf32>,
    %c0_180 = arith.constant 0 : index
    %c0_181 = arith.constant 0 : index
    %179 = vector.load %arg23[%c0_180, %c0_181] : memref<10x128xf32, #tpu.memory_space<vmem>>, vector<1x128xf32>
    %c1_182 = arith.constant 1 : index
    %c0_183 = arith.constant 0 : index
    %180 = vector.load %arg23[%c1_182, %c0_183] : memref<10x128xf32, #tpu.memory_space<vmem>>, vector<1x128xf32>
    %181 = arith.maximumf %179, %180 : vector<1x128xf32>
    %c0_184 = arith.constant 0 : index
    %c0_185 = arith.constant 0 : index
    %182 = vector.load %arg24[%c0_184, %c0_185] : memref<5x128xf32, #tpu.memory_space<vmem>>, vector<1x128xf32>
    tpu.vector_store %arg24[%c0_184, %c0_185], %181 {strides = array<i32>} : memref<5x128xf32, #tpu.memory_space<vmem>>, vector<1x128xf32>,
    %c2_186 = arith.constant 2 : index
    %c0_187 = arith.constant 0 : index
    %183 = vector.load %arg23[%c2_186, %c0_187] : memref<10x128xf32, #tpu.memory_space<vmem>>, vector<1x128xf32>
    %c3_188 = arith.constant 3 : index
    %c0_189 = arith.constant 0 : index
    %184 = vector.load %arg23[%c3_188, %c0_189] : memref<10x128xf32, #tpu.memory_space<vmem>>, vector<1x128xf32>
    %185 = arith.maximumf %183, %184 : vector<1x128xf32>
    %c1_190 = arith.constant 1 : index
    %c0_191 = arith.constant 0 : index
    %186 = vector.load %arg24[%c1_190, %c0_191] : memref<5x128xf32, #tpu.memory_space<vmem>>, vector<1x128xf32>
    tpu.vector_store %arg24[%c1_190, %c0_191], %185 {strides = array<i32>} : memref<5x128xf32, #tpu.memory_space<vmem>>, vector<1x128xf32>,
    %c4_192 = arith.constant 4 : index
    %c0_193 = arith.constant 0 : index
    %187 = vector.load %arg23[%c4_192, %c0_193] : memref<10x128xf32, #tpu.memory_space<vmem>>, vector<1x128xf32>
    %c5_194 = arith.constant 5 : index
    %c0_195 = arith.constant 0 : index
    %188 = vector.load %arg23[%c5_194, %c0_195] : memref<10x128xf32, #tpu.memory_space<vmem>>, vector<1x128xf32>
    %189 = arith.maximumf %187, %188 : vector<1x128xf32>
    %c2_196 = arith.constant 2 : index
    %c0_197 = arith.constant 0 : index
    %190 = vector.load %arg24[%c2_196, %c0_197] : memref<5x128xf32, #tpu.memory_space<vmem>>, vector<1x128xf32>
    tpu.vector_store %arg24[%c2_196, %c0_197], %189 {strides = array<i32>} : memref<5x128xf32, #tpu.memory_space<vmem>>, vector<1x128xf32>,
    %c6_198 = arith.constant 6 : index
    %c0_199 = arith.constant 0 : index
    %191 = vector.load %arg23[%c6_198, %c0_199] : memref<10x128xf32, #tpu.memory_space<vmem>>, vector<1x128xf32>
    %c7_200 = arith.constant 7 : index
    %c0_201 = arith.constant 0 : index
    %192 = vector.load %arg23[%c7_200, %c0_201] : memref<10x128xf32, #tpu.memory_space<vmem>>, vector<1x128xf32>
    %193 = arith.maximumf %191, %192 : vector<1x128xf32>
    %c3_202 = arith.constant 3 : index
    %c0_203 = arith.constant 0 : index
    %194 = vector.load %arg24[%c3_202, %c0_203] : memref<5x128xf32, #tpu.memory_space<vmem>>, vector<1x128xf32>
    tpu.vector_store %arg24[%c3_202, %c0_203], %193 {strides = array<i32>} : memref<5x128xf32, #tpu.memory_space<vmem>>, vector<1x128xf32>,
    %c8_204 = arith.constant 8 : index
    %c0_205 = arith.constant 0 : index
    %195 = vector.load %arg23[%c8_204, %c0_205] : memref<10x128xf32, #tpu.memory_space<vmem>>, vector<1x128xf32>
    %c9_206 = arith.constant 9 : index
    %c0_207 = arith.constant 0 : index
    %196 = vector.load %arg23[%c9_206, %c0_207] : memref<10x128xf32, #tpu.memory_space<vmem>>, vector<1x128xf32>
    %197 = arith.maximumf %195, %196 : vector<1x128xf32>
    %c4_208 = arith.constant 4 : index
    %c0_209 = arith.constant 0 : index
    %198 = vector.load %arg24[%c4_208, %c0_209] : memref<5x128xf32, #tpu.memory_space<vmem>>, vector<1x128xf32>
    tpu.vector_store %arg24[%c4_208, %c0_209], %197 {strides = array<i32>} : memref<5x128xf32, #tpu.memory_space<vmem>>, vector<1x128xf32>,
    %cst_210 = arith.constant 0.000000e+00 : f32
    %199 = vector.broadcast %cst_210 : f32 to vector<1x128xf32>
    %c0_211 = arith.constant 0 : index
    %c0_212 = arith.constant 0 : index
    %200 = vector.load %arg24[%c0_211, %c0_212] : memref<5x128xf32, #tpu.memory_space<vmem>>, vector<1x128xf32>
    %c0_213 = arith.constant 0 : index
    %c0_214 = arith.constant 0 : index
    %c0_215 = arith.constant 0 : index
    %201 = vector.load %arg8[%c0_213, %c0_214, %c0_215] : memref<5x128x128xf32, #tpu.memory_space<vmem>>, vector<1x128x128xf32>
    %202 = vector.shape_cast %201 : vector<1x128x128xf32> to vector<128x128xf32>
    %cst_216 = arith.constant dense<0.000000e+00> : vector<1x128xf32>
    %203 = tpu.matmul %200, %202, %cst_216 {dimension_numbers = #tpu.dot_dimension_numbers<[1], [0], [0], [1], [0, 0, 1, 1], [], []>} : vector<1x128xf32>, vector<128x128xf32>, vector<1x128xf32> -> vector<1x128xf32>
    %204 = arith.addf %199, %203 : vector<1x128xf32>
    %c1_217 = arith.constant 1 : index
    %c0_218 = arith.constant 0 : index
    %205 = vector.load %arg24[%c1_217, %c0_218] : memref<5x128xf32, #tpu.memory_space<vmem>>, vector<1x128xf32>
    %c1_219 = arith.constant 1 : index
    %c0_220 = arith.constant 0 : index
    %c0_221 = arith.constant 0 : index
    %206 = vector.load %arg8[%c1_219, %c0_220, %c0_221] : memref<5x128x128xf32, #tpu.memory_space<vmem>>, vector<1x128x128xf32>
    %207 = vector.shape_cast %206 : vector<1x128x128xf32> to vector<128x128xf32>
    %cst_222 = arith.constant dense<0.000000e+00> : vector<1x128xf32>
    %208 = tpu.matmul %205, %207, %cst_222 {dimension_numbers = #tpu.dot_dimension_numbers<[1], [0], [0], [1], [0, 0, 1, 1], [], []>} : vector<1x128xf32>, vector<128x128xf32>, vector<1x128xf32> -> vector<1x128xf32>
    %209 = arith.addf %204, %208 : vector<1x128xf32>
    %c2_223 = arith.constant 2 : index
    %c0_224 = arith.constant 0 : index
    %210 = vector.load %arg24[%c2_223, %c0_224] : memref<5x128xf32, #tpu.memory_space<vmem>>, vector<1x128xf32>
    %c2_225 = arith.constant 2 : index
    %c0_226 = arith.constant 0 : index
    %c0_227 = arith.constant 0 : index
    %211 = vector.load %arg8[%c2_225, %c0_226, %c0_227] : memref<5x128x128xf32, #tpu.memory_space<vmem>>, vector<1x128x128xf32>
    %212 = vector.shape_cast %211 : vector<1x128x128xf32> to vector<128x128xf32>
    %cst_228 = arith.constant dense<0.000000e+00> : vector<1x128xf32>
    %213 = tpu.matmul %210, %212, %cst_228 {dimension_numbers = #tpu.dot_dimension_numbers<[1], [0], [0], [1], [0, 0, 1, 1], [], []>} : vector<1x128xf32>, vector<128x128xf32>, vector<1x128xf32> -> vector<1x128xf32>
    %214 = arith.addf %209, %213 : vector<1x128xf32>
    %c3_229 = arith.constant 3 : index
    %c0_230 = arith.constant 0 : index
    %215 = vector.load %arg24[%c3_229, %c0_230] : memref<5x128xf32, #tpu.memory_space<vmem>>, vector<1x128xf32>
    %c3_231 = arith.constant 3 : index
    %c0_232 = arith.constant 0 : index
    %c0_233 = arith.constant 0 : index
    %216 = vector.load %arg8[%c3_231, %c0_232, %c0_233] : memref<5x128x128xf32, #tpu.memory_space<vmem>>, vector<1x128x128xf32>
    %217 = vector.shape_cast %216 : vector<1x128x128xf32> to vector<128x128xf32>
    %cst_234 = arith.constant dense<0.000000e+00> : vector<1x128xf32>
    %218 = tpu.matmul %215, %217, %cst_234 {dimension_numbers = #tpu.dot_dimension_numbers<[1], [0], [0], [1], [0, 0, 1, 1], [], []>} : vector<1x128xf32>, vector<128x128xf32>, vector<1x128xf32> -> vector<1x128xf32>
    %219 = arith.addf %214, %218 : vector<1x128xf32>
    %c4_235 = arith.constant 4 : index
    %c0_236 = arith.constant 0 : index
    %220 = vector.load %arg24[%c4_235, %c0_236] : memref<5x128xf32, #tpu.memory_space<vmem>>, vector<1x128xf32>
    %c4_237 = arith.constant 4 : index
    %c0_238 = arith.constant 0 : index
    %c0_239 = arith.constant 0 : index
    %221 = vector.load %arg8[%c4_237, %c0_238, %c0_239] : memref<5x128x128xf32, #tpu.memory_space<vmem>>, vector<1x128x128xf32>
    %222 = vector.shape_cast %221 : vector<1x128x128xf32> to vector<128x128xf32>
    %cst_240 = arith.constant dense<0.000000e+00> : vector<1x128xf32>
    %223 = tpu.matmul %220, %222, %cst_240 {dimension_numbers = #tpu.dot_dimension_numbers<[1], [0], [0], [1], [0, 0, 1, 1], [], []>} : vector<1x128xf32>, vector<128x128xf32>, vector<1x128xf32> -> vector<1x128xf32>
    %224 = arith.addf %219, %223 : vector<1x128xf32>
    %c0_241 = arith.constant 0 : index
    %c0_242 = arith.constant 0 : index
    %225 = vector.load %arg9[%c0_241, %c0_242] : memref<1x128xf32, #tpu.memory_space<vmem>>, vector<1x128xf32>
    %226 = arith.addf %224, %225 : vector<1x128xf32>
    %cst_243 = arith.constant 0.000000e+00 : f32
    %227 = vector.broadcast %cst_243 : f32 to vector<1x128xf32>
    %228 = arith.maximumf %226, %227 : vector<1x128xf32>
    %c0_244 = arith.constant 0 : index
    %c0_245 = arith.constant 0 : index
    %229 = vector.load %arg10[%c0_244, %c0_245] : memref<128x128xf32, #tpu.memory_space<vmem>>, vector<128x128xf32>
    %cst_246 = arith.constant dense<0.000000e+00> : vector<1x128xf32>
    %230 = tpu.matmul %228, %229, %cst_246 {dimension_numbers = #tpu.dot_dimension_numbers<[1], [0], [0], [1], [0, 0, 1, 1], [], []>} : vector<1x128xf32>, vector<128x128xf32>, vector<1x128xf32> -> vector<1x128xf32>
    %c0_247 = arith.constant 0 : index
    %c0_248 = arith.constant 0 : index
    %231 = vector.load %arg11[%c0_247, %c0_248] : memref<1x128xf32, #tpu.memory_space<vmem>>, vector<1x128xf32>
    %232 = arith.addf %230, %231 : vector<1x128xf32>
    %cst_249 = arith.constant 0.000000e+00 : f32
    %233 = vector.broadcast %cst_249 : f32 to vector<1x128xf32>
    %234 = arith.maximumf %232, %233 : vector<1x128xf32>
    %c0_250 = arith.constant 0 : index
    %c0_251 = arith.constant 0 : index
    %235 = vector.load %arg12[%c0_250, %c0_251] : memref<128x128xf32, #tpu.memory_space<vmem>>, vector<128x128xf32>
    %cst_252 = arith.constant dense<0.000000e+00> : vector<1x128xf32>
    %236 = tpu.matmul %234, %235, %cst_252 {dimension_numbers = #tpu.dot_dimension_numbers<[1], [0], [0], [1], [0, 0, 1, 1], [], []>} : vector<1x128xf32>, vector<128x128xf32>, vector<1x128xf32> -> vector<1x128xf32>
    %c0_253 = arith.constant 0 : index
    %c0_254 = arith.constant 0 : index
    %237 = vector.load %arg13[%c0_253, %c0_254] : memref<1x128xf32, #tpu.memory_space<vmem>>, vector<1x128xf32>
    %238 = arith.addf %236, %237 : vector<1x128xf32>
    %cst_255 = arith.constant 0.000000e+00 : f32
    %239 = vector.broadcast %cst_255 : f32 to vector<1x128xf32>
    %240 = arith.maximumf %238, %239 : vector<1x128xf32>
    %c0_256 = arith.constant 0 : index
    %c0_257 = arith.constant 0 : index
    %241 = vector.load %arg14[%c0_256, %c0_257] : memref<128x256xf32, #tpu.memory_space<vmem>>, vector<128x256xf32>
    %cst_258 = arith.constant dense<0.000000e+00> : vector<1x256xf32>
    %242 = tpu.matmul %240, %241, %cst_258 {dimension_numbers = #tpu.dot_dimension_numbers<[1], [0], [0], [1], [0, 0, 1, 1], [], []>} : vector<1x128xf32>, vector<128x256xf32>, vector<1x256xf32> -> vector<1x256xf32>
    %c0_259 = arith.constant 0 : index
    %c0_260 = arith.constant 0 : index
    %243 = vector.load %arg15[%c0_259, %c0_260] : memref<1x256xf32, #tpu.memory_space<vmem>>, vector<1x256xf32>
    %244 = arith.addf %242, %243 : vector<1x256xf32>
    %c0_261 = arith.constant 0 : index
    %c0_262 = arith.constant 0 : index
    %245 = vector.load %arg16[%c0_261, %c0_262] : memref<256x128xf32, #tpu.memory_space<vmem>>, vector<256x128xf32>
    %cst_263 = arith.constant dense<0.000000e+00> : vector<1x128xf32>
    %246 = tpu.matmul %244, %245, %cst_263 {dimension_numbers = #tpu.dot_dimension_numbers<[1], [0], [0], [1], [0, 0, 1, 1], [], []>} : vector<1x256xf32>, vector<256x128xf32>, vector<1x128xf32> -> vector<1x128xf32>
    %c0_264 = arith.constant 0 : index
    %c0_265 = arith.constant 0 : index
    %247 = vector.load %arg17[%c0_264, %c0_265] : memref<1x128xf32, #tpu.memory_space<vmem>>, vector<1x128xf32>
    %248 = arith.addf %246, %247 : vector<1x128xf32>
    %c0_266 = arith.constant 0 : index
    %c0_267 = arith.constant 0 : index
    %c0_268 = arith.constant 0 : index
    %249 = vector.load %arg18[%c0_266, %c0_267, %c0_268] : memref<1x1x128xf32, #tpu.memory_space<vmem>>, vector<1x1x128xf32>
    %250 = vector.shape_cast %249 : vector<1x1x128xf32> to vector<1x128xf32>
    %251 = vector.shape_cast %234 : vector<1x128xf32> to vector<1x1x128xf32>
    tpu.vector_store %arg18[%c0_266, %c0_267, %c0_268], %251 {strides = array<i32>} : memref<1x1x128xf32, #tpu.memory_space<vmem>>, vector<1x1x128xf32>,
    %c0_269 = arith.constant 0 : index
    %c0_270 = arith.constant 0 : index
    %c0_271 = arith.constant 0 : index
    %252 = vector.load %arg19[%c0_269, %c0_270, %c0_271] : memref<1x1x256xf32, #tpu.memory_space<vmem>>, vector<1x1x256xf32>
    %253 = vector.shape_cast %252 : vector<1x1x256xf32> to vector<1x256xf32>
    %254 = vector.shape_cast %244 : vector<1x256xf32> to vector<1x1x256xf32>
    tpu.vector_store %arg19[%c0_269, %c0_270, %c0_271], %254 {strides = array<i32>} : memref<1x1x256xf32, #tpu.memory_space<vmem>>, vector<1x1x256xf32>,
    %c0_272 = arith.constant 0 : index
    %c0_273 = arith.constant 0 : index
    %c0_274 = arith.constant 0 : index
    %255 = vector.load %arg20[%c0_272, %c0_273, %c0_274] : memref<1x1x128xf32, #tpu.memory_space<vmem>>, vector<1x1x128xf32>
    %256 = vector.shape_cast %255 : vector<1x1x128xf32> to vector<1x128xf32>
    %257 = vector.shape_cast %248 : vector<1x128xf32> to vector<1x1x128xf32>
    tpu.vector_store %arg20[%c0_272, %c0_273, %c0_274], %257 {strides = array<i32>} : memref<1x1x128xf32, #tpu.memory_space<vmem>>, vector<1x1x128xf32>,
    return
  }
  func.func @transform_0(%arg0: i32) -> (i32, i32, i32) {
    %c0_i32 = arith.constant 0 : i32
    %c0_i32_0 = arith.constant 0 : i32
    %c0_i32_1 = arith.constant 0 : i32
    return %arg0, %c0_i32, %c0_i32_0 : i32, i32, i32
  }
  func.func @transform_1(%arg0: i32) -> (i32, i32, i32) {
    %c0_i32 = arith.constant 0 : i32
    %c0_i32_0 = arith.constant 0 : i32
    %c0_i32_1 = arith.constant 0 : i32
    %c0_i32_2 = arith.constant 0 : i32
    return %c0_i32, %c0_i32_0, %c0_i32_1 : i32, i32, i32
  }
  func.func @transform_2(%arg0: i32) -> (i32, i32, i32) {
    %c0_i32 = arith.constant 0 : i32
    %c0_i32_0 = arith.constant 0 : i32
    %c0_i32_1 = arith.constant 0 : i32
    %c0_i32_2 = arith.constant 0 : i32
    return %c0_i32, %c0_i32_0, %c0_i32_1 : i32, i32, i32
  }
  func.func @transform_3(%arg0: i32) -> (i32, i32) {
    %c0_i32 = arith.constant 0 : i32
    %c0_i32_0 = arith.constant 0 : i32
    %c0_i32_1 = arith.constant 0 : i32
    return %c0_i32, %c0_i32_0 : i32, i32
  }
  func.func @transform_4(%arg0: i32) -> (i32, i32, i32) {
    %c0_i32 = arith.constant 0 : i32
    %c0_i32_0 = arith.constant 0 : i32
    %c0_i32_1 = arith.constant 0 : i32
    %c0_i32_2 = arith.constant 0 : i32
    return %c0_i32, %c0_i32_0, %c0_i32_1 : i32, i32, i32
  }
  func.func @transform_5(%arg0: i32) -> (i32, i32, i32) {
    %c0_i32 = arith.constant 0 : i32
    %c0_i32_0 = arith.constant 0 : i32
    %c0_i32_1 = arith.constant 0 : i32
    %c0_i32_2 = arith.constant 0 : i32
    return %c0_i32, %c0_i32_0, %c0_i32_1 : i32, i32, i32
  }
  func.func @transform_6(%arg0: i32) -> (i32, i32) {
    %c0_i32 = arith.constant 0 : i32
    %c0_i32_0 = arith.constant 0 : i32
    %c0_i32_1 = arith.constant 0 : i32
    return %c0_i32, %c0_i32_0 : i32, i32
  }
  func.func @transform_7(%arg0: i32) -> (i32, i32, i32) {
    %c0_i32 = arith.constant 0 : i32
    %c0_i32_0 = arith.constant 0 : i32
    %c0_i32_1 = arith.constant 0 : i32
    %c0_i32_2 = arith.constant 0 : i32
    return %c0_i32, %c0_i32_0, %c0_i32_1 : i32, i32, i32
  }
  func.func @transform_8(%arg0: i32) -> (i32, i32) {
    %c0_i32 = arith.constant 0 : i32
    %c0_i32_0 = arith.constant 0 : i32
    %c0_i32_1 = arith.constant 0 : i32
    return %c0_i32, %c0_i32_0 : i32, i32
  }
  func.func @transform_9(%arg0: i32) -> (i32, i32) {
    %c0_i32 = arith.constant 0 : i32
    %c0_i32_0 = arith.constant 0 : i32
    %c0_i32_1 = arith.constant 0 : i32
    return %c0_i32, %c0_i32_0 : i32, i32
  }
  func.func @transform_10(%arg0: i32) -> (i32, i32) {
    %c0_i32 = arith.constant 0 : i32
    %c0_i32_0 = arith.constant 0 : i32
    %c0_i32_1 = arith.constant 0 : i32
    return %c0_i32, %c0_i32_0 : i32, i32
  }
  func.func @transform_11(%arg0: i32) -> (i32, i32) {
    %c0_i32 = arith.constant 0 : i32
    %c0_i32_0 = arith.constant 0 : i32
    %c0_i32_1 = arith.constant 0 : i32
    return %c0_i32, %c0_i32_0 : i32, i32
  }
  func.func @transform_12(%arg0: i32) -> (i32, i32) {
    %c0_i32 = arith.constant 0 : i32
    %c0_i32_0 = arith.constant 0 : i32
    %c0_i32_1 = arith.constant 0 : i32
    return %c0_i32, %c0_i32_0 : i32, i32
  }
  func.func @transform_13(%arg0: i32) -> (i32, i32) {
    %c0_i32 = arith.constant 0 : i32
    %c0_i32_0 = arith.constant 0 : i32
    %c0_i32_1 = arith.constant 0 : i32
    return %c0_i32, %c0_i32_0 : i32, i32
  }
  func.func @transform_14(%arg0: i32) -> (i32, i32) {
    %c0_i32 = arith.constant 0 : i32
    %c0_i32_0 = arith.constant 0 : i32
    %c0_i32_1 = arith.constant 0 : i32
    return %c0_i32, %c0_i32_0 : i32, i32
  }
  func.func @transform_15(%arg0: i32) -> (i32, i32) {
    %c0_i32 = arith.constant 0 : i32
    %c0_i32_0 = arith.constant 0 : i32
    %c0_i32_1 = arith.constant 0 : i32
    return %c0_i32, %c0_i32_0 : i32, i32
  }
  func.func @transform_16(%arg0: i32) -> (i32, i32) {
    %c0_i32 = arith.constant 0 : i32
    %c0_i32_0 = arith.constant 0 : i32
    %c0_i32_1 = arith.constant 0 : i32
    return %c0_i32, %c0_i32_0 : i32, i32
  }
  func.func @transform_17(%arg0: i32) -> (i32, i32, i32) {
    %c0_i32 = arith.constant 0 : i32
    %c0_i32_0 = arith.constant 0 : i32
    %c0_i32_1 = arith.constant 0 : i32
    return %arg0, %c0_i32, %c0_i32_0 : i32, i32, i32
  }
  func.func @transform_18(%arg0: i32) -> (i32, i32, i32) {
    %c0_i32 = arith.constant 0 : i32
    %c0_i32_0 = arith.constant 0 : i32
    %c0_i32_1 = arith.constant 0 : i32
    return %arg0, %c0_i32, %c0_i32_0 : i32, i32, i32
  }
  func.func @transform_19(%arg0: i32) -> (i32, i32, i32) {
    %c0_i32 = arith.constant 0 : i32
    %c0_i32_0 = arith.constant 0 : i32
    %c0_i32_1 = arith.constant 0 : i32
    return %arg0, %c0_i32, %c0_i32_0 : i32, i32, i32
  }
}

</mosaic_0001>

<llo_original>
// kernel: mooncnn_forward.1
$region0: #{mooncnn_forward.1}
  #allocation0 [shape = 'u32[]', space=smem, size = 0x4, offset = 0x4, fixed_abs, tag = 'smem constant byte address 0x4 - core index']
  #allocation1 [shape = 'u32[72,128]{1,0:T(1,128)}', space=vmem, size = 0x9000, scoped, tag = 'internal scratch']
  #allocation2 [shape = 'f32[28,128]{1,0:T(8,128)}', space=vmem, size = 0x4000, scoped, tag = 'scratch operand']
  #allocation3 [shape = 'f32[14,128]{1,0:T(8,128)}', space=vmem, size = 0x2000, scoped, tag = 'scratch operand']
  #allocation4 [shape = 'f32[10,128]{1,0:T(8,128)}', space=vmem, size = 0x2000, scoped, tag = 'scratch operand']
  #allocation5 [shape = 'f32[5,128]{1,0:T(8,128)}', space=vmem, size = 0x1000, scoped, tag = 'scratch operand']
  %s0 = inlined_call_operand.vmem [shape: f32[2,32,128], index: 0, kind: input, shape index: {}]
  %s1 = inlined_call_operand.vmem [shape: f32[5,128,128], index: 1, kind: input, shape index: {}]
  %s2 = inlined_call_operand.hbm [shape: f32[5,128,128], index: 2, kind: input, shape index: {}]
  %s3 = inlined_call_operand.vmem [shape: f32[1,128], index: 3, kind: input, shape index: {}]
  %s4 = inlined_call_operand.hbm [shape: f32[5,128,128], index: 4, kind: input, shape index: {}]
  %s5 = inlined_call_operand.hbm [shape: f32[5,128,128], index: 5, kind: input, shape index: {}]
  %s6 = inlined_call_operand.vmem [shape: f32[1,128], index: 6, kind: input, shape index: {}]
  %s7 = inlined_call_operand.hbm [shape: f32[5,128,128], index: 7, kind: input, shape index: {}]
  %s8 = inlined_call_operand.vmem [shape: f32[1,128], index: 8, kind: input, shape index: {}]
  %s9 = inlined_call_operand.vmem [shape: f32[128,128], index: 9, kind: input, shape index: {}]
  %s10 = inlined_call_operand.vmem [shape: f32[1,128], index: 10, kind: input, shape index: {}]
  %s11 = inlined_call_operand.hbm [shape: f32[128,128], index: 11, kind: input, shape index: {}]
  %s12 = inlined_call_operand.vmem [shape: f32[1,128], index: 12, kind: input, shape index: {}]
  %s13 = inlined_call_operand.hbm [shape: f32[128,256], index: 13, kind: input, shape index: {}]
  %s14 = inlined_call_operand.vmem [shape: f32[1,256], index: 14, kind: input, shape index: {}]
  %s15 = inlined_call_operand.hbm [shape: f32[256,128], index: 15, kind: input, shape index: {}]
  %s16 = inlined_call_operand.vmem [shape: f32[1,128], index: 16, kind: input, shape index: {}]
  %s17 = inlined_call_operand.hbm [shape: f32[2,1,128], index: 17, kind: output, shape index: {0}]
  %s18 = inlined_call_operand.vmem [shape: f32[2,1,256], index: 18, kind: output, shape index: {1}]
  %s19 = inlined_call_operand.hbm [shape: f32[2,1,128], index: 19, kind: output, shape index: {2}]
  %20 = xla_tuple %s17, %s18, %s19
  %s21 = sld [smem:[#allocation0]]
  $region145: #{mooncnn_forward.1} parent=0
    _
  %s23 = ssub.s32 1, %s21
  %s24 = scalar_select 0, %s23, %s21
  $region1: #{mooncnn_forward.1} parent=0
    #allocation6 [shape = 'u8[327680]{0}', space=vmem, size = 0x50000, scoped, tag = 'input window, operand 2, single buffered']
    #allocation7 [shape = 's32[2]{0}', space=sflag, size = 0x8, scoped, tag = 'scoped memory for mooncnn_forward.1']
    #allocation8 [shape = 's32[2]{0}', space=sflag, size = 0x8, scoped, tag = 'scoped memory for mooncnn_forward.1']
    #allocation9 [shape = 'u8[327680]{0}', space=vmem, size = 0x50000, scoped, tag = 'input window, operand 4, single buffered']
    #allocation10 [shape = 's32[1]{0}', space=sflag, size = 0x4, scoped, tag = 'scoped memory for mooncnn_forward.1']
    #allocation11 [shape = 'u8[327680]{0}', space=vmem, size = 0x50000, scoped, tag = 'input window, operand 5, single buffered']
    #allocation12 [shape = 'u8[327680]{0}', space=vmem, size = 0x50000, scoped, tag = 'input window, operand 7, single buffered']
    #allocation13 [shape = 's32[1]{0}', space=sflag, size = 0x4, scoped, tag = 'scoped memory for mooncnn_forward.1']
    #allocation14 [shape = 'u8[65536]{0}', space=vmem, size = 0x10000, scoped, tag = 'input window, operand 11, single buffered']
    #allocation15 [shape = 'u8[131072]{0}', space=vmem, size = 0x20000, scoped, tag = 'input window, operand 13, single buffered']
    #allocation16 [shape = 's32[1]{0}', space=sflag, size = 0x4, scoped, tag = 'scoped memory for mooncnn_forward.1']
    #allocation17 [shape = 'u8[131072]{0}', space=vmem, size = 0x20000, scoped, tag = 'input window, operand 15, single buffered']
    #allocation18 [shape = 'u8[1024]{0}', space=vmem, size = 0x400, scoped, tag = 'output window, operand 0']
    #allocation19 [shape = 'u8[1024]{0}', space=vmem, size = 0x400, scoped, tag = 'output window, operand 2']
    #allocation20 [shape = 's32[2]{0}', space=sflag, size = 0x8, scoped, tag = 'scoped memory for mooncnn_forward.1']
    %25 = vsyncpa [#allocation7], 0
    %26 = vsyncpa [#allocation10], 0
    %27 = vsyncpa [#allocation13], 0
    %28 = vsyncpa [#allocation16], 0
    %29 = vsyncpa [#allocation8], 0
    %s30 = scalar_lea.sflag [#allocation8], 1
    %31 = vsyncpa %s30, 0
    %32 = vsyncpa [#allocation20], 0
    %s33 = scalar_lea.sflag [#allocation20], 1
    %34 = vsyncpa %s33, 0
    loop: start=0, step=1, limit=4
    $region2: #{mooncnn_forward.1} parent=1 // loop_pre_header
      _
    $region3: #{mooncnn_forward.1} parent=1 // loop_header
      %s36 = sphi 0, %s40
      %p37 = scmp.ge.s32.totalorder %s36, 4
      %s46 = sphi 0, %s48
      %s49 = sphi 0, %s46
      %s50 = sphi 0, %s49
      %s66 = sphi 0, %s50
      %s70 = sphi 0, %s70
      %s72 = sphi 0, %s70
      %s73 = sphi 0, %s72
      %s87 = sphi 0, %s73
      %s91 = sphi 0, %s91
      %s93 = sphi 0, %s91
      %s94 = sphi 0, %s93
      %s108 = sphi 0, %s94
      %s112 = sphi 0, %s112
      %s114 = sphi 0, %s112
      %s115 = sphi 0, %s114
      %s129 = sphi 0, %s115
      %s133 = sphi 0, %s133
      %s135 = sphi 0, %s133
      %s136 = sphi 0, %s135
      %s150 = sphi 0, %s136
      %s154 = sphi 0, %s154
      %s156 = sphi 0, %s154
      %s157 = sphi 0, %s156
      %s171 = sphi 0, %s157
      %s175 = sphi 0, %s175
      %s177 = sphi 0, %s175
      %s178 = sphi 0, %s177
      %s192 = sphi 0, %s178
      %s196 = sphi 0, %s196
      %s198 = sphi 0, %s196
      %s199 = sphi 0, %s198
      %s213 = sphi 0, %s199
      %s217 = sphi 0, %s217
      %s219 = sphi 0, %s217
      %s220 = sphi 0, %s219
      %s234 = sphi 0, %s220
      %s238 = sphi 0, %s238
      %s240 = sphi 0, %s238
      %s241 = sphi 0, %s240
      %s255 = sphi 0, %s241
      %s259 = sphi 0, %s259
      %s261 = sphi 0, %s259
      %s262 = sphi 0, %s261
      %s276 = sphi 0, %s262
      %s280 = sphi 0, %s280
      %s282 = sphi 0, %s280
      %s283 = sphi 0, %s282
      %s297 = sphi 0, %s283
      %s301 = sphi 0, %s301
      %s303 = sphi 0, %s301
      %s304 = sphi 0, %s303
      %s318 = sphi 0, %s304
      %s322 = sphi 0, %s322
      %s324 = sphi 0, %s322
      %s325 = sphi 0, %s324
      %s339 = sphi 0, %s325
      %s343 = sphi 0, %s343
      %s345 = sphi 0, %s343
      %s346 = sphi 0, %s345
      %s360 = sphi 0, %s346
      %s364 = sphi 0, %s364
      %s366 = sphi 0, %s364
      %s367 = sphi 0, %s366
      %s381 = sphi 0, %s367
      %s385 = sphi 0, %s385
      %s387 = sphi 0, %s385
      %s388 = sphi 0, %s387
      %s402 = sphi 0, %s388
      %s408 = sphi 0, %s410
      %s411 = sphi 0, %s408
      %s412 = sphi 0, %s411
      %s428 = sphi 0, %s412
      %s434 = sphi 0, %s436
      %s437 = sphi 0, %s434
      %s438 = sphi 0, %s437
      %s454 = sphi 0, %s438
      %s460 = sphi 0, %s462
      %s463 = sphi 0, %s460
      %s464 = sphi 0, %s463
      %s480 = sphi 0, %s464
    $region4: #{mooncnn_forward.1} parent=1 // loop_header_branch
      %39 = sbr.rel (%p37) target = $region8
    $region5: #{mooncnn_forward.1} parent=1 // loop_body
      %s41 = ssub.s32 %s36, 1
      %s42 = ssub.s32 %s36, 2
      %s43 = sadd.s32 %s36, 1
      %s44 = ssub.s32 %s36, %s43
      %p45 = scmp.eq.s32.totalorder %s44, 0
      %s47 = sadd.s32 %s46, 1
      %s48 = scalar_select %p45, %s46, %s47
      %p51 = pneg %p45
      %p52 = scmp.eq.s32.totalorder %s36, 1
      %p53 = por %p51, %p52
      %p54 = scmp.ne.s32.totalorder %s46, %s49
      %p55 = scmp.eq.s32.totalorder %s36, 0
      %p56 = por %p54, %p55
      %p57 = scmp.ne.s32.totalorder %s46, %s49
      %p58 = scmp.eq.s32.totalorder %s41, 1
      %p59 = por %p57, %p58
      %p60 = scmp.ne.s32.totalorder %s49, %s50
      %p61 = scmp.eq.s32.totalorder %s41, 0
      %p62 = por %p60, %p61
      %p63 = scmp.ne.s32.totalorder %s49, %s50
      %p64 = scmp.eq.s32.totalorder %s42, 1
      %p65 = por %p63, %p64
      %p67 = scmp.ne.s32.totalorder %s50, %s66
      %p68 = scmp.eq.s32.totalorder %s42, 0
      %p69 = por %p67, %p68
      %s71 = sadd.s32 %s70, 1
      %p74 = scmp.eq.s32.totalorder %s36, 1
      %p75 = scmp.ne.s32.totalorder %s70, %s72
      %p76 = scmp.eq.s32.totalorder %s36, 0
      %p77 = por %p75, %p76
      %p78 = scmp.ne.s32.totalorder %s70, %s72
      %p79 = scmp.eq.s32.totalorder %s41, 1
      %p80 = por %p78, %p79
      %p81 = scmp.ne.s32.totalorder %s72, %s73
      %p82 = scmp.eq.s32.totalorder %s41, 0
      %p83 = por %p81, %p82
      %p84 = scmp.ne.s32.totalorder %s72, %s73
      %p85 = scmp.eq.s32.totalorder %s42, 1
      %p86 = por %p84, %p85
      %p88 = scmp.ne.s32.totalorder %s73, %s87
      %p89 = scmp.eq.s32.totalorder %s42, 0
      %p90 = por %p88, %p89
      %s92 = sadd.s32 %s91, 1
      %p95 = scmp.eq.s32.totalorder %s36, 1
      %p96 = scmp.ne.s32.totalorder %s91, %s93
      %p97 = scmp.eq.s32.totalorder %s36, 0
      %p98 = por %p96, %p97
      %p99 = scmp.ne.s32.totalorder %s91, %s93
      %p100 = scmp.eq.s32.totalorder %s41, 1
      %p101 = por %p99, %p100
      %p102 = scmp.ne.s32.totalorder %s93, %s94
      %p103 = scmp.eq.s32.totalorder %s41, 0
      %p104 = por %p102, %p103
      %p105 = scmp.ne.s32.totalorder %s93, %s94
      %p106 = scmp.eq.s32.totalorder %s42, 1
      %p107 = por %p105, %p106
      %p109 = scmp.ne.s32.totalorder %s94, %s108
      %p110 = scmp.eq.s32.totalorder %s42, 0
      %p111 = por %p109, %p110
      %s113 = sadd.s32 %s112, 1
      %p116 = scmp.eq.s32.totalorder %s36, 1
      %p117 = scmp.ne.s32.totalorder %s112, %s114
      %p118 = scmp.eq.s32.totalorder %s36, 0
      %p119 = por %p117, %p118
      %p120 = scmp.ne.s32.totalorder %s112, %s114
      %p121 = scmp.eq.s32.totalorder %s41, 1
      %p122 = por %p120, %p121
      %p123 = scmp.ne.s32.totalorder %s114, %s115
      %p124 = scmp.eq.s32.totalorder %s41, 0
      %p125 = por %p123, %p124
      %p126 = scmp.ne.s32.totalorder %s114, %s115
      %p127 = scmp.eq.s32.totalorder %s42, 1
      %p128 = por %p126, %p127
      %p130 = scmp.ne.s32.totalorder %s115, %s129
      %p131 = scmp.eq.s32.totalorder %s42, 0
      %p132 = por %p130, %p131
      %s134 = sadd.s32 %s133, 1
      %p137 = scmp.eq.s32.totalorder %s36, 1
      %p138 = scmp.ne.s32.totalorder %s133, %s135
      %p139 = scmp.eq.s32.totalorder %s36, 0
      %p140 = por %p138, %p139
      %p141 = scmp.ne.s32.totalorder %s133, %s135
      %p142 = scmp.eq.s32.totalorder %s41, 1
      %p143 = por %p141, %p142
      %p144 = scmp.ne.s32.totalorder %s135, %s136
      %p145 = scmp.eq.s32.totalorder %s41, 0
      %p146 = por %p144, %p145
      %p147 = scmp.ne.s32.totalorder %s135, %s136
      %p148 = scmp.eq.s32.totalorder %s42, 1
      %p149 = por %p147, %p148
      %p151 = scmp.ne.s32.totalorder %s136, %s150
      %p152 = scmp.eq.s32.totalorder %s42, 0
      %p153 = por %p151, %p152
      %s155 = sadd.s32 %s154, 1
      %p158 = scmp.eq.s32.totalorder %s36, 1
      %p159 = scmp.ne.s32.totalorder %s154, %s156
      %p160 = scmp.eq.s32.totalorder %s36, 0
      %p161 = por %p159, %p160
      %p162 = scmp.ne.s32.totalorder %s154, %s156
      %p163 = scmp.eq.s32.totalorder %s41, 1
      %p164 = por %p162, %p163
      %p165 = scmp.ne.s32.totalorder %s156, %s157
      %p166 = scmp.eq.s32.totalorder %s41, 0
      %p167 = por %p165, %p166
      %p168 = scmp.ne.s32.totalorder %s156, %s157
      %p169 = scmp.eq.s32.totalorder %s42, 1
      %p170 = por %p168, %p169
      %p172 = scmp.ne.s32.totalorder %s157, %s171
      %p173 = scmp.eq.s32.totalorder %s42, 0
      %p174 = por %p172, %p173
      %s176 = sadd.s32 %s175, 1
      %p179 = scmp.eq.s32.totalorder %s36, 1
      %p180 = scmp.ne.s32.totalorder %s175, %s177
      %p181 = scmp.eq.s32.totalorder %s36, 0
      %p182 = por %p180, %p181
      %p183 = scmp.ne.s32.totalorder %s175, %s177
      %p184 = scmp.eq.s32.totalorder %s41, 1
      %p185 = por %p183, %p184
      %p186 = scmp.ne.s32.totalorder %s177, %s178
      %p187 = scmp.eq.s32.totalorder %s41, 0
      %p188 = por %p186, %p187
      %p189 = scmp.ne.s32.totalorder %s177, %s178
      %p190 = scmp.eq.s32.totalorder %s42, 1
      %p191 = por %p189, %p190
      %p193 = scmp.ne.s32.totalorder %s178, %s192
      %p194 = scmp.eq.s32.totalorder %s42, 0
      %p195 = por %p193, %p194
      %s197 = sadd.s32 %s196, 1
      %p200 = scmp.eq.s32.totalorder %s36, 1
      %p201 = scmp.ne.s32.totalorder %s196, %s198
      %p202 = scmp.eq.s32.totalorder %s36, 0
      %p203 = por %p201, %p202
      %p204 = scmp.ne.s32.totalorder %s196, %s198
      %p205 = scmp.eq.s32.totalorder %s41, 1
      %p206 = por %p204, %p205
      %p207 = scmp.ne.s32.totalorder %s198, %s199
      %p208 = scmp.eq.s32.totalorder %s41, 0
      %p209 = por %p207, %p208
      %p210 = scmp.ne.s32.totalorder %s198, %s199
      %p211 = scmp.eq.s32.totalorder %s42, 1
      %p212 = por %p210, %p211
      %p214 = scmp.ne.s32.totalorder %s199, %s213
      %p215 = scmp.eq.s32.totalorder %s42, 0
      %p216 = por %p214, %p215
      %s218 = sadd.s32 %s217, 1
      %p221 = scmp.eq.s32.totalorder %s36, 1
      %p222 = scmp.ne.s32.totalorder %s217, %s219
      %p223 = scmp.eq.s32.totalorder %s36, 0
      %p224 = por %p222, %p223
      %p225 = scmp.ne.s32.totalorder %s217, %s219
      %p226 = scmp.eq.s32.totalorder %s41, 1
      %p227 = por %p225, %p226
      %p228 = scmp.ne.s32.totalorder %s219, %s220
      %p229 = scmp.eq.s32.totalorder %s41, 0
      %p230 = por %p228, %p229
      %p231 = scmp.ne.s32.totalorder %s219, %s220
      %p232 = scmp.eq.s32.totalorder %s42, 1
      %p233 = por %p231, %p232
      %p235 = scmp.ne.s32.totalorder %s220, %s234
      %p236 = scmp.eq.s32.totalorder %s42, 0
      %p237 = por %p235, %p236
      %s239 = sadd.s32 %s238, 1
      %p242 = scmp.eq.s32.totalorder %s36, 1
      %p243 = scmp.ne.s32.totalorder %s238, %s240
      %p244 = scmp.eq.s32.totalorder %s36, 0
      %p245 = por %p243, %p244
      %p246 = scmp.ne.s32.totalorder %s238, %s240
      %p247 = scmp.eq.s32.totalorder %s41, 1
      %p248 = por %p246, %p247
      %p249 = scmp.ne.s32.totalorder %s240, %s241
      %p250 = scmp.eq.s32.totalorder %s41, 0
      %p251 = por %p249, %p250
      %p252 = scmp.ne.s32.totalorder %s240, %s241
      %p253 = scmp.eq.s32.totalorder %s42, 1
      %p254 = por %p252, %p253
      %p256 = scmp.ne.s32.totalorder %s241, %s255
      %p257 = scmp.eq.s32.totalorder %s42, 0
      %p258 = por %p256, %p257
      %s260 = sadd.s32 %s259, 1
      %p263 = scmp.eq.s32.totalorder %s36, 1
      %p264 = scmp.ne.s32.totalorder %s259, %s261
      %p265 = scmp.eq.s32.totalorder %s36, 0
      %p266 = por %p264, %p265
      %p267 = scmp.ne.s32.totalorder %s259, %s261
      %p268 = scmp.eq.s32.totalorder %s41, 1
      %p269 = por %p267, %p268
      %p270 = scmp.ne.s32.totalorder %s261, %s262
      %p271 = scmp.eq.s32.totalorder %s41, 0
      %p272 = por %p270, %p271
      %p273 = scmp.ne.s32.totalorder %s261, %s262
      %p274 = scmp.eq.s32.totalorder %s42, 1
      %p275 = por %p273, %p274
      %p277 = scmp.ne.s32.totalorder %s262, %s276
      %p278 = scmp.eq.s32.totalorder %s42, 0
      %p279 = por %p277, %p278
      %s281 = sadd.s32 %s280, 1
      %p284 = scmp.eq.s32.totalorder %s36, 1
      %p285 = scmp.ne.s32.totalorder %s280, %s282
      %p286 = scmp.eq.s32.totalorder %s36, 0
      %p287 = por %p285, %p286
      %p288 = scmp.ne.s32.totalorder %s280, %s282
      %p289 = scmp.eq.s32.totalorder %s41, 1
      %p290 = por %p288, %p289
      %p291 = scmp.ne.s32.totalorder %s282, %s283
      %p292 = scmp.eq.s32.totalorder %s41, 0
      %p293 = por %p291, %p292
      %p294 = scmp.ne.s32.totalorder %s282, %s283
      %p295 = scmp.eq.s32.totalorder %s42, 1
      %p296 = por %p294, %p295
      %p298 = scmp.ne.s32.totalorder %s283, %s297
      %p299 = scmp.eq.s32.totalorder %s42, 0
      %p300 = por %p298, %p299
      %s302 = sadd.s32 %s301, 1
      %p305 = scmp.eq.s32.totalorder %s36, 1
      %p306 = scmp.ne.s32.totalorder %s301, %s303
      %p307 = scmp.eq.s32.totalorder %s36, 0
      %p308 = por %p306, %p307
      %p309 = scmp.ne.s32.totalorder %s301, %s303
      %p310 = scmp.eq.s32.totalorder %s41, 1
      %p311 = por %p309, %p310
      %p312 = scmp.ne.s32.totalorder %s303, %s304
      %p313 = scmp.eq.s32.totalorder %s41, 0
      %p314 = por %p312, %p313
      %p315 = scmp.ne.s32.totalorder %s303, %s304
      %p316 = scmp.eq.s32.totalorder %s42, 1
      %p317 = por %p315, %p316
      %p319 = scmp.ne.s32.totalorder %s304, %s318
      %p320 = scmp.eq.s32.totalorder %s42, 0
      %p321 = por %p319, %p320
      %s323 = sadd.s32 %s322, 1
      %p326 = scmp.eq.s32.totalorder %s36, 1
      %p327 = scmp.ne.s32.totalorder %s322, %s324
      %p328 = scmp.eq.s32.totalorder %s36, 0
      %p329 = por %p327, %p328
      %p330 = scmp.ne.s32.totalorder %s322, %s324
      %p331 = scmp.eq.s32.totalorder %s41, 1
      %p332 = por %p330, %p331
      %p333 = scmp.ne.s32.totalorder %s324, %s325
      %p334 = scmp.eq.s32.totalorder %s41, 0
      %p335 = por %p333, %p334
      %p336 = scmp.ne.s32.totalorder %s324, %s325
      %p337 = scmp.eq.s32.totalorder %s42, 1
      %p338 = por %p336, %p337
      %p340 = scmp.ne.s32.totalorder %s325, %s339
      %p341 = scmp.eq.s32.totalorder %s42, 0
      %p342 = por %p340, %p341
      %s344 = sadd.s32 %s343, 1
      %p347 = scmp.eq.s32.totalorder %s36, 1
      %p348 = scmp.ne.s32.totalorder %s343, %s345
      %p349 = scmp.eq.s32.totalorder %s36, 0
      %p350 = por %p348, %p349
      %p351 = scmp.ne.s32.totalorder %s343, %s345
      %p352 = scmp.eq.s32.totalorder %s41, 1
      %p353 = por %p351, %p352
      %p354 = scmp.ne.s32.totalorder %s345, %s346
      %p355 = scmp.eq.s32.totalorder %s41, 0
      %p356 = por %p354, %p355
      %p357 = scmp.ne.s32.totalorder %s345, %s346
      %p358 = scmp.eq.s32.totalorder %s42, 1
      %p359 = por %p357, %p358
      %p361 = scmp.ne.s32.totalorder %s346, %s360
      %p362 = scmp.eq.s32.totalorder %s42, 0
      %p363 = por %p361, %p362
      %s365 = sadd.s32 %s364, 1
      %p368 = scmp.eq.s32.totalorder %s36, 1
      %p369 = scmp.ne.s32.totalorder %s364, %s366
      %p370 = scmp.eq.s32.totalorder %s36, 0
      %p371 = por %p369, %p370
      %p372 = scmp.ne.s32.totalorder %s364, %s366
      %p373 = scmp.eq.s32.totalorder %s41, 1
      %p374 = por %p372, %p373
      %p375 = scmp.ne.s32.totalorder %s366, %s367
      %p376 = scmp.eq.s32.totalorder %s41, 0
      %p377 = por %p375, %p376
      %p378 = scmp.ne.s32.totalorder %s366, %s367
      %p379 = scmp.eq.s32.totalorder %s42, 1
      %p380 = por %p378, %p379
      %p382 = scmp.ne.s32.totalorder %s367, %s381
      %p383 = scmp.eq.s32.totalorder %s42, 0
      %p384 = por %p382, %p383
      %s386 = sadd.s32 %s385, 1
      %p389 = scmp.eq.s32.totalorder %s36, 1
      %p390 = scmp.ne.s32.totalorder %s385, %s387
      %p391 = scmp.eq.s32.totalorder %s36, 0
      %p392 = por %p390, %p391
      %p393 = scmp.ne.s32.totalorder %s385, %s387
      %p394 = scmp.eq.s32.totalorder %s41, 1
      %p395 = por %p393, %p394
      %p396 = scmp.ne.s32.totalorder %s387, %s388
      %p397 = scmp.eq.s32.totalorder %s41, 0
      %p398 = por %p396, %p397
      %p399 = scmp.ne.s32.totalorder %s387, %s388
      %p400 = scmp.eq.s32.totalorder %s42, 1
      %p401 = por %p399, %p400
      %p403 = scmp.ne.s32.totalorder %s388, %s402
      %p404 = scmp.eq.s32.totalorder %s42, 0
      %p405 = por %p403, %p404
      %s406 = ssub.s32 %s36, %s43
      %p407 = scmp.eq.s32.totalorder %s406, 0
      %s409 = sadd.s32 %s408, 1
      %s410 = scalar_select %p407, %s408, %s409
      %p413 = pneg %p407
      %p414 = scmp.eq.s32.totalorder %s36, 1
      %p415 = por %p413, %p414
      %p416 = scmp.ne.s32.totalorder %s408, %s411
      %p417 = scmp.eq.s32.totalorder %s36, 0
      %p418 = por %p416, %p417
      %p419 = scmp.ne.s32.totalorder %s408, %s411
      %p420 = scmp.eq.s32.totalorder %s41, 1
      %p421 = por %p419, %p420
      %p422 = scmp.ne.s32.totalorder %s411, %s412
      %p423 = scmp.eq.s32.totalorder %s41, 0
      %p424 = por %p422, %p423
      %p425 = scmp.ne.s32.totalorder %s411, %s412
      %p426 = scmp.eq.s32.totalorder %s42, 1
      %p427 = por %p425, %p426
      %p429 = scmp.ne.s32.totalorder %s412, %s428
      %p430 = scmp.eq.s32.totalorder %s42, 0
      %p431 = por %p429, %p430
      %s432 = ssub.s32 %s36, %s43
      %p433 = scmp.eq.s32.totalorder %s432, 0
      %s435 = sadd.s32 %s434, 1
      %s436 = scalar_select %p433, %s434, %s435
      %p439 = pneg %p433
      %p440 = scmp.eq.s32.totalorder %s36, 1
      %p441 = por %p439, %p440
      %p442 = scmp.ne.s32.totalorder %s434, %s437
      %p443 = scmp.eq.s32.totalorder %s36, 0
      %p444 = por %p442, %p443
      %p445 = scmp.ne.s32.totalorder %s434, %s437
      %p446 = scmp.eq.s32.totalorder %s41, 1
      %p447 = por %p445, %p446
      %p448 = scmp.ne.s32.totalorder %s437, %s438
      %p449 = scmp.eq.s32.totalorder %s41, 0
      %p450 = por %p448, %p449
      %p451 = scmp.ne.s32.totalorder %s437, %s438
      %p452 = scmp.eq.s32.totalorder %s42, 1
      %p453 = por %p451, %p452
      %p455 = scmp.ne.s32.totalorder %s438, %s454
      %p456 = scmp.eq.s32.totalorder %s42, 0
      %p457 = por %p455, %p456
      %s458 = ssub.s32 %s36, %s43
      %p459 = scmp.eq.s32.totalorder %s458, 0
      %s461 = sadd.s32 %s460, 1
      %s462 = scalar_select %p459, %s460, %s461
      %p465 = pneg %p459
      %p466 = scmp.eq.s32.totalorder %s36, 1
      %p467 = por %p465, %p466
      %p468 = scmp.ne.s32.totalorder %s460, %s463
      %p469 = scmp.eq.s32.totalorder %s36, 0
      %p470 = por %p468, %p469
      %p471 = scmp.ne.s32.totalorder %s460, %s463
      %p472 = scmp.eq.s32.totalorder %s41, 1
      %p473 = por %p471, %p472
      %p474 = scmp.ne.s32.totalorder %s463, %s464
      %p475 = scmp.eq.s32.totalorder %s41, 0
      %p476 = por %p474, %p475
      %p477 = scmp.ne.s32.totalorder %s463, %s464
      %p478 = scmp.eq.s32.totalorder %s42, 1
      %p479 = por %p477, %p478
      %p481 = scmp.ne.s32.totalorder %s464, %s480
      %p482 = scmp.eq.s32.totalorder %s42, 0
      %p483 = por %p481, %p482
      %p484 = scmp.le.s32.totalorder 1, %s36
      %p485 = scmp.lt.s32.totalorder %s36, 3
      %p486 = pnand %p484, %p485
      %p487 = pneg %p486
      // Predicated region
      $region9: #{mooncnn_forward.1} parent=5 // pred_check
        _
      $region10: #{mooncnn_forward.1} parent=5 // pred_check_branch
        %489 = sbr.rel (%p486) target = $region12
      $region11: #{mooncnn_forward.1} parent=5 // pred_region
        %s490 = ssub.s32 %s36, 1
        // Predicated region
        $region13: #{mooncnn_forward.1} parent=11 // pred_check
          %p491 = pneg %p83
        $region14: #{mooncnn_forward.1} parent=11 // pred_check_branch
          %493 = sbr.rel (%p491) target = $region16
        $region15: #{mooncnn_forward.1} parent=11 // pred_region
          _
        $region16: #{mooncnn_forward.1} parent=11 // pred_fallthru
          _
        // Predicated region
        $region17: #{mooncnn_forward.1} parent=11 // pred_check
          %p494 = pneg %p104
        $region18: #{mooncnn_forward.1} parent=11 // pred_check_branch
          %496 = sbr.rel (%p494) target = $region20
        $region19: #{mooncnn_forward.1} parent=11 // pred_region
          %498 = vsyncadd [#allocation7], 0
          %s499 = sshll.u32 %s2, 4
          %s500 = int_to_ptr.hbm [resolvable:$true] %s499
          %s501 = sshll.u32 [#allocation6], 4
          %s502 = int_to_ptr.vmem [resolvable:$true] %s501
          %507 = dma.hbm_to_vmem [thread:$0]  %s500, 10240, %s502, [#allocation7], 128, 128, 8
        $region20: #{mooncnn_forward.1} parent=11 // pred_fallthru
          _
        // Predicated region
        $region21: #{mooncnn_forward.1} parent=11 // pred_check
          %p508 = pneg %p125
        $region22: #{mooncnn_forward.1} parent=11 // pred_check_branch
          %510 = sbr.rel (%p508) target = $region24
        $region23: #{mooncnn_forward.1} parent=11 // pred_region
          _
        $region24: #{mooncnn_forward.1} parent=11 // pred_fallthru
          _
        // Predicated region
        $region25: #{mooncnn_forward.1} parent=11 // pred_check
          %p511 = pneg %p146
        $region26: #{mooncnn_forward.1} parent=11 // pred_check_branch
          %513 = sbr.rel (%p511) target = $region28
        $region27: #{mooncnn_forward.1} parent=11 // pred_region
          %515 = vsyncadd [#allocation10], 0
          %s516 = sshll.u32 %s4, 4
          %s517 = int_to_ptr.hbm [resolvable:$true] %s516
          %s518 = sshll.u32 [#allocation9], 4
          %s519 = int_to_ptr.vmem [resolvable:$true] %s518
          %524 = dma.hbm_to_vmem [thread:$0]  %s517, 10240, %s519, [#allocation10], 128, 128, 8
        $region28: #{mooncnn_forward.1} parent=11 // pred_fallthru
          _
        // Predicated region
        $region29: #{mooncnn_forward.1} parent=11 // pred_check
          %p525 = pneg %p167
        $region30: #{mooncnn_forward.1} parent=11 // pred_check_branch
          %527 = sbr.rel (%p525) target = $region32
        $region31: #{mooncnn_forward.1} parent=11 // pred_region
          %529 = vsyncadd [#allocation10], 0
          %s530 = sshll.u32 %s5, 4
          %s531 = int_to_ptr.hbm [resolvable:$true] %s530
          %s532 = sshll.u32 [#allocation11], 4
          %s533 = int_to_ptr.vmem [resolvable:$true] %s532
          %538 = dma.hbm_to_vmem [thread:$0]  %s531, 10240, %s533, [#allocation10], 128, 128, 8
        $region32: #{mooncnn_forward.1} parent=11 // pred_fallthru
          _
        // Predicated region
        $region33: #{mooncnn_forward.1} parent=11 // pred_check
          %p539 = pneg %p188
        $region34: #{mooncnn_forward.1} parent=11 // pred_check_branch
          %541 = sbr.rel (%p539) target = $region36
        $region35: #{mooncnn_forward.1} parent=11 // pred_region
          _
        $region36: #{mooncnn_forward.1} parent=11 // pred_fallthru
          _
        // Predicated region
        $region37: #{mooncnn_forward.1} parent=11 // pred_check
          %p542 = pneg %p209
        $region38: #{mooncnn_forward.1} parent=11 // pred_check_branch
          %544 = sbr.rel (%p542) target = $region40
        $region39: #{mooncnn_forward.1} parent=11 // pred_region
          %546 = vsyncadd [#allocation13], 0
          %s547 = sshll.u32 %s7, 4
          %s548 = int_to_ptr.hbm [resolvable:$true] %s547
          %s549 = sshll.u32 [#allocation12], 4
          %s550 = int_to_ptr.vmem [resolvable:$true] %s549
          %555 = dma.hbm_to_vmem [thread:$0]  %s548, 10240, %s550, [#allocation13], 128, 128, 8
        $region40: #{mooncnn_forward.1} parent=11 // pred_fallthru
          _
        // Predicated region
        $region41: #{mooncnn_forward.1} parent=11 // pred_check
          %p556 = pneg %p230
        $region42: #{mooncnn_forward.1} parent=11 // pred_check_branch
          %558 = sbr.rel (%p556) target = $region44
        $region43: #{mooncnn_forward.1} parent=11 // pred_region
          _
        $region44: #{mooncnn_forward.1} parent=11 // pred_fallthru
          _
        // Predicated region
        $region45: #{mooncnn_forward.1} parent=11 // pred_check
          %p559 = pneg %p251
        $region46: #{mooncnn_forward.1} parent=11 // pred_check_branch
          %561 = sbr.rel (%p559) target = $region48
        $region47: #{mooncnn_forward.1} parent=11 // pred_region
          _
        $region48: #{mooncnn_forward.1} parent=11 // pred_fallthru
          _
        // Predicated region
        $region49: #{mooncnn_forward.1} parent=11 // pred_check
          %p562 = pneg %p272
        $region50: #{mooncnn_forward.1} parent=11 // pred_check_branch
          %564 = sbr.rel (%p562) target = $region52
        $region51: #{mooncnn_forward.1} parent=11 // pred_region
          _
        $region52: #{mooncnn_forward.1} parent=11 // pred_fallthru
          _
        // Predicated region
        $region53: #{mooncnn_forward.1} parent=11 // pred_check
          %p565 = pneg %p293
        $region54: #{mooncnn_forward.1} parent=11 // pred_check_branch
          %567 = sbr.rel (%p565) target = $region56
        $region55: #{mooncnn_forward.1} parent=11 // pred_region
          %569 = vsyncadd [#allocation13], 0
          %s570 = sshll.u32 %s11, 4
          %s571 = int_to_ptr.hbm [resolvable:$true] %s570
          %s572 = sshll.u32 [#allocation14], 4
          %s573 = int_to_ptr.vmem [resolvable:$true] %s572
          %578 = dma.hbm_to_vmem [thread:$0]  %s571, 2048, %s573, [#allocation13], 128, 128, 8
        $region56: #{mooncnn_forward.1} parent=11 // pred_fallthru
          _
        // Predicated region
        $region57: #{mooncnn_forward.1} parent=11 // pred_check
          %p579 = pneg %p314
        $region58: #{mooncnn_forward.1} parent=11 // pred_check_branch
          %581 = sbr.rel (%p579) target = $region60
        $region59: #{mooncnn_forward.1} parent=11 // pred_region
          _
        $region60: #{mooncnn_forward.1} parent=11 // pred_fallthru
          _
        // Predicated region
        $region61: #{mooncnn_forward.1} parent=11 // pred_check
          %p582 = pneg %p335
        $region62: #{mooncnn_forward.1} parent=11 // pred_check_branch
          %584 = sbr.rel (%p582) target = $region64
        $region63: #{mooncnn_forward.1} parent=11 // pred_region
          %586 = vsyncadd [#allocation16], 0
          %s587 = sshll.u32 %s13, 4
          %s588 = int_to_ptr.hbm [resolvable:$true] %s587
          %s589 = sshll.u32 [#allocation15], 4
          %s590 = int_to_ptr.vmem [resolvable:$true] %s589
          %595 = dma.hbm_to_vmem [thread:$0]  %s588, 4096, %s590, [#allocation16], 256, 256, 16
        $region64: #{mooncnn_forward.1} parent=11 // pred_fallthru
          _
        // Predicated region
        $region65: #{mooncnn_forward.1} parent=11 // pred_check
          %p596 = pneg %p356
        $region66: #{mooncnn_forward.1} parent=11 // pred_check_branch
          %598 = sbr.rel (%p596) target = $region68
        $region67: #{mooncnn_forward.1} parent=11 // pred_region
          _
        $region68: #{mooncnn_forward.1} parent=11 // pred_fallthru
          _
        // Predicated region
        $region69: #{mooncnn_forward.1} parent=11 // pred_check
          %p599 = pneg %p377
        $region70: #{mooncnn_forward.1} parent=11 // pred_check_branch
          %601 = sbr.rel (%p599) target = $region72
        $region71: #{mooncnn_forward.1} parent=11 // pred_region
          %603 = vsyncadd [#allocation16], 0
          %s604 = sshll.u32 %s15, 4
          %s605 = int_to_ptr.hbm [resolvable:$true] %s604
          %s606 = sshll.u32 [#allocation17], 4
          %s607 = int_to_ptr.vmem [resolvable:$true] %s606
          %612 = dma.hbm_to_vmem [thread:$0]  %s605, 4096, %s607, [#allocation16], 128, 128, 8
        $region72: #{mooncnn_forward.1} parent=11 // pred_fallthru
          _
        // Predicated region
        $region73: #{mooncnn_forward.1} parent=11 // pred_check
          %p613 = pneg %p398
        $region74: #{mooncnn_forward.1} parent=11 // pred_check_branch
          %615 = sbr.rel (%p613) target = $region76
        $region75: #{mooncnn_forward.1} parent=11 // pred_region
          _
        $region76: #{mooncnn_forward.1} parent=11 // pred_fallthru
          _
      $region12: #{mooncnn_forward.1} parent=5 // pred_fallthru
        _
      %p616 = scmp.lt.s32.totalorder %s36, 2
      // Predicated region
      $region77: #{mooncnn_forward.1} parent=5 // pred_check
        %p617 = pneg %p616
      $region78: #{mooncnn_forward.1} parent=5 // pred_check_branch
        %619 = sbr.rel (%p617) target = $region80
      $region79: #{mooncnn_forward.1} parent=5 // pred_region
        // Predicated region
        $region81: #{mooncnn_forward.1} parent=79 // pred_check
          %p620 = pneg %p56
        $region82: #{mooncnn_forward.1} parent=79 // pred_check_branch
          %622 = sbr.rel (%p620) target = $region84
        $region83: #{mooncnn_forward.1} parent=79 // pred_region
          %p623 = scmp.lt.s32.totalorder %s36, 1
          %s624 = scalar_select %p623, %s36, 1
          %s625 = smul.addr %s624, 4
          %s626 = smul.addr %s625, 8
          %s627 = scalar_lea.vmem %s0, %s626
        $region84: #{mooncnn_forward.1} parent=79 // pred_fallthru
          _
      $region80: #{mooncnn_forward.1} parent=5 // pred_fallthru
        _
      %p628 = scmp.le.s32.totalorder 1, %s36
      %p629 = scmp.lt.s32.totalorder %s36, 3
      %p630 = pnand %p628, %p629
      %p631 = pneg %p630
      // Predicated region
      $region85: #{mooncnn_forward.1} parent=5 // pred_check
        _
      $region86: #{mooncnn_forward.1} parent=5 // pred_check_branch
        %633 = sbr.rel (%p630) target = $region88
      $region87: #{mooncnn_forward.1} parent=5 // pred_region
        %s634 = ssub.s32 %s36, 1
        // Predicated region
        $region89: #{mooncnn_forward.1} parent=87 // pred_check
          %p635 = pneg %p104
        $region90: #{mooncnn_forward.1} parent=87 // pred_check_branch
          %637 = sbr.rel (%p635) target = $region92
        $region91: #{mooncnn_forward.1} parent=87 // pred_region
          %639 = dma.done [#allocation7], 10240
        $region92: #{mooncnn_forward.1} parent=87 // pred_fallthru
          _
        // Predicated region
        $region93: #{mooncnn_forward.1} parent=87 // pred_check
          %p640 = pneg %p146
        $region94: #{mooncnn_forward.1} parent=87 // pred_check_branch
          %642 = sbr.rel (%p640) target = $region96
        $region95: #{mooncnn_forward.1} parent=87 // pred_region
          %644 = dma.done [#allocation10], 10240
        $region96: #{mooncnn_forward.1} parent=87 // pred_fallthru
          _
        // Predicated region
        $region97: #{mooncnn_forward.1} parent=87 // pred_check
          %p645 = pneg %p167
        $region98: #{mooncnn_forward.1} parent=87 // pred_check_branch
          %647 = sbr.rel (%p645) target = $region100
        $region99: #{mooncnn_forward.1} parent=87 // pred_region
          %649 = dma.done [#allocation10], 10240
        $region100: #{mooncnn_forward.1} parent=87 // pred_fallthru
          _
        // Predicated region
        $region101: #{mooncnn_forward.1} parent=87 // pred_check
          %p650 = pneg %p209
        $region102: #{mooncnn_forward.1} parent=87 // pred_check_branch
          %652 = sbr.rel (%p650) target = $region104
        $region103: #{mooncnn_forward.1} parent=87 // pred_region
          %654 = dma.done [#allocation13], 10240
        $region104: #{mooncnn_forward.1} parent=87 // pred_fallthru
          _
        // Predicated region
        $region105: #{mooncnn_forward.1} parent=87 // pred_check
          %p655 = pneg %p293
        $region106: #{mooncnn_forward.1} parent=87 // pred_check_branch
          %657 = sbr.rel (%p655) target = $region108
        $region107: #{mooncnn_forward.1} parent=87 // pred_region
          %659 = dma.done [#allocation13], 2048
        $region108: #{mooncnn_forward.1} parent=87 // pred_fallthru
          _
        // Predicated region
        $region109: #{mooncnn_forward.1} parent=87 // pred_check
          %p660 = pneg %p335
        $region110: #{mooncnn_forward.1} parent=87 // pred_check_branch
          %662 = sbr.rel (%p660) target = $region112
        $region111: #{mooncnn_forward.1} parent=87 // pred_region
          %664 = dma.done [#allocation16], 4096
        $region112: #{mooncnn_forward.1} parent=87 // pred_fallthru
          _
        // Predicated region
        $region113: #{mooncnn_forward.1} parent=87 // pred_check
          %p665 = pneg %p377
        $region114: #{mooncnn_forward.1} parent=87 // pred_check_branch
          %667 = sbr.rel (%p665) target = $region116
        $region115: #{mooncnn_forward.1} parent=87 // pred_region
          %669 = dma.done [#allocation16], 4096
        $region116: #{mooncnn_forward.1} parent=87 // pred_fallthru
          _
        %p670 = scmp.lt.s32.totalorder %s41, 1
        %s671 = scalar_select %p670, %s41, 1
        %s672 = smul.addr %s671, 4
        %s673 = smul.addr %s672, 8
        %s674 = scalar_lea.vmem %s0, %s673
        %p675 = pneg %p62
        %p676 = pneg %p59
        %p677 = pneg %p83
        %p678 = pneg %p80
        %p679 = pneg %p104
        %p680 = pneg %p101
        %p681 = pneg %p125
        %p682 = pneg %p122
        %p683 = pneg %p146
        %p684 = pneg %p143
        %p685 = pneg %p167
        %p686 = pneg %p164
        %p687 = pneg %p188
        %p688 = pneg %p185
        %p689 = pneg %p209
        %p690 = pneg %p206
        %p691 = pneg %p230
        %p692 = pneg %p227
        %p693 = pneg %p251
        %p694 = pneg %p248
        %p695 = pneg %p272
        %p696 = pneg %p269
        %p697 = pneg %p293
        %p698 = pneg %p290
        %p699 = pneg %p314
        %p700 = pneg %p311
        %p701 = pneg %p335
        %p702 = pneg %p332
        %p703 = pneg %p356
        %p704 = pneg %p353
        %p705 = pneg %p377
        %p706 = pneg %p374
        %p707 = pneg %p398
        %p708 = pneg %p395
        %p709 = pneg %p424
        %p710 = pneg %p421
        %s711 = sand.u32 %s411, 1
        %s712 = scalar_lea.sflag [#allocation8], %s711
        %s713 = sand.u32 %s411, 1
        %s714 = scalar_lea.vmem [#allocation18], %s713
        %p715 = pneg %p450
        %p716 = pneg %p447
        %p717 = scmp.lt.s32.totalorder %s41, 1
        %s718 = scalar_select %p717, %s41, 1
        %s719 = smul.addr %s718, 2
        %s720 = scalar_lea.vmem %s18, %s719
        %p721 = pneg %p476
        %p722 = pneg %p473
        %s723 = sand.u32 %s463, 1
        %s724 = scalar_lea.sflag [#allocation20], %s723
        %s725 = sand.u32 %s463, 1
        %s726 = scalar_lea.vmem [#allocation19], %s725
        %p727 = scmp.lt.s32.totalorder %s41, 1
        %s728 = scalar_select %p727, %s41, 1
        %s729 = smul.addr %s728, 4
        %s730 = smul.addr %s729, 8
        %s731 = scalar_lea.vmem %s0, %s730
        %p732 = scmp.lt.s32.totalorder %s41, 1
        %s733 = scalar_select %p732, %s41, 1
        %s734 = smul.addr %s733, 2
        %s735 = scalar_lea.vmem %s18, %s734
        %v736 = vld [vmem:[%s731] sm:$0xff]
        %v737 = vld [vmem:[%s731 + $0x8] sm:$0xff]
        %v738 = vld [vmem:[%s731 + $0x10] sm:$0xff]
        %v739 = vld [vmem:[%s731 + $0x18] sm:$0xf]
        %v740 = vld [vmem:[%s1] sm:$0xff]
        %v741 = vld [vmem:[%s1 + $0x8] sm:$0xff]
        %v742 = vld [vmem:[%s1 + $0x10] sm:$0xff]
        %v743 = vld [vmem:[%s1 + $0x18] sm:$0xff]
        %v744 = vld [vmem:[%s1 + $0x20] sm:$0xff]
        %v745 = vld [vmem:[%s1 + $0x28] sm:$0xff]
        %v746 = vld [vmem:[%s1 + $0x30] sm:$0xff]
        %v747 = vld [vmem:[%s1 + $0x38] sm:$0xff]
        %v748 = vld [vmem:[%s1 + $0x40] sm:$0xff]
        %v749 = vld [vmem:[%s1 + $0x48] sm:$0xff]
        %v750 = vld [vmem:[%s1 + $0x50] sm:$0xff]
        %v751 = vld [vmem:[%s1 + $0x58] sm:$0xff]
        %v752 = vld [vmem:[%s1 + $0x60] sm:$0xff]
        %v753 = vld [vmem:[%s1 + $0x68] sm:$0xff]
        %v754 = vld [vmem:[%s1 + $0x70] sm:$0xff]
        %v755 = vld [vmem:[%s1 + $0x78] sm:$0xff]
        %v756 = vld [vmem:[#allocation6] sm:$0xff]
        %v757 = vld [vmem:[#allocation6 + $0x8] sm:$0xff]
        %v758 = vld [vmem:[#allocation6 + $0x10] sm:$0xff]
        %v759 = vld [vmem:[#allocation6 + $0x18] sm:$0xff]
        %v760 = vld [vmem:[#allocation6 + $0x20] sm:$0xff]
        %v761 = vld [vmem:[#allocation6 + $0x28] sm:$0xff]
        %v762 = vld [vmem:[#allocation6 + $0x30] sm:$0xff]
        %v763 = vld [vmem:[#allocation6 + $0x38] sm:$0xff]
        %v764 = vld [vmem:[#allocation6 + $0x40] sm:$0xff]
        %v765 = vld [vmem:[#allocation6 + $0x48] sm:$0xff]
        %v766 = vld [vmem:[#allocation6 + $0x50] sm:$0xff]
        %v767 = vld [vmem:[#allocation6 + $0x58] sm:$0xff]
        %v768 = vld [vmem:[#allocation6 + $0x60] sm:$0xff]
        %v769 = vld [vmem:[#allocation6 + $0x68] sm:$0xff]
        %v770 = vld [vmem:[#allocation6 + $0x70] sm:$0xff]
        %v771 = vld [vmem:[#allocation6 + $0x78] sm:$0xff]
        %v772 = vld [vmem:[%s731 + $0x1] sm:$0xff]
        %v773 = vld [vmem:[%s731 + $0x9] sm:$0xff]
        %v774 = vld [vmem:[%s731 + $0x11] sm:$0xff]
        %v775 = vld [vmem:[%s731 + $0x19] sm:$0xf]
        %s776 = scalar_lea.vmem %s1, 128
        %v777 = vld [vmem:[%s776] sm:$0xff]
        %v778 = vld [vmem:[%s776 + $0x8] sm:$0xff]
        %v779 = vld [vmem:[%s776 + $0x10] sm:$0xff]
        %v780 = vld [vmem:[%s776 + $0x18] sm:$0xff]
        %v781 = vld [vmem:[%s776 + $0x20] sm:$0xff]
        %v782 = vld [vmem:[%s776 + $0x28] sm:$0xff]
        %v783 = vld [vmem:[%s776 + $0x30] sm:$0xff]
        %v784 = vld [vmem:[%s776 + $0x38] sm:$0xff]
        %v785 = vld [vmem:[%s776 + $0x40] sm:$0xff]
        %v786 = vld [vmem:[%s776 + $0x48] sm:$0xff]
        %v787 = vld [vmem:[%s776 + $0x50] sm:$0xff]
        %v788 = vld [vmem:[%s776 + $0x58] sm:$0xff]
        %v789 = vld [vmem:[%s776 + $0x60] sm:$0xff]
        %v790 = vld [vmem:[%s776 + $0x68] sm:$0xff]
        %v791 = vld [vmem:[%s776 + $0x70] sm:$0xff]
        %v792 = vld [vmem:[%s776 + $0x78] sm:$0xff]
        %793 = vmatpush.msra.mxu0 %v792
        %794 = vmatpush.msra.mxu0 %v791
        %795 = vmatpush.msra.mxu0 %v790
        %796 = vmatpush.msra.mxu0 %v789
        %797 = vmatpush.msra.mxu0 %v788
        %798 = vmatpush.msra.mxu0 %v787
        %799 = vmatpush.msra.mxu0 %v786
        %800 = vmatpush.msra.mxu0 %v785
        %801 = vmatpush.msra.mxu0 %v784
        %802 = vmatpush.msra.mxu0 %v783
        %803 = vmatpush.msra.mxu0 %v782
        %804 = vmatpush.msra.mxu0 %v781
        %805 = vmatpush.msra.mxu0 %v780
        %806 = vmatpush.msra.mxu0 %v779
        %807 = vmatpush.msra.mxu0 %v778
        %808 = vmatpush.msra.mxu0 %v777
        %809 = vmatmul.f32.gmra.mxu0 %v772
        %v810 = vpop.f32.mrf.mxu0
        %v811 = vadd.f32 0.0, %v810
        %812 = vmatmul.f32.gmra.mxu0 %v773
        %v813 = vpop.f32.mrf.mxu0
        %v814 = vadd.f32 0.0, %v813
        %815 = vmatmul.f32.gmra.mxu0 %v774
        %v816 = vpop.f32.mrf.mxu0
        %v817 = vadd.f32 0.0, %v816
        %818 = vmatmul.f32.gmra.mxu0 %v775
        %v819 = vpop.f32.mrf.mxu0
        %v820 = vadd.f32 0.0, %v819
        %821 = vdwg.mxu0
        %822 = vmatpush.msra.mxu0 %v755
        %823 = vmatpush.msra.mxu0 %v754
        %824 = vmatpush.msra.mxu0 %v753
        %825 = vmatpush.msra.mxu0 %v752
        %826 = vmatpush.msra.mxu0 %v751
        %827 = vmatpush.msra.mxu0 %v750
        %828 = vmatpush.msra.mxu0 %v749
        %829 = vmatpush.msra.mxu0 %v748
        %830 = vmatpush.msra.mxu0 %v747
        %831 = vmatpush.msra.mxu0 %v746
        %832 = vmatpush.msra.mxu0 %v745
        %833 = vmatpush.msra.mxu0 %v744
        %834 = vmatpush.msra.mxu0 %v743
        %835 = vmatpush.msra.mxu0 %v742
        %836 = vmatpush.msra.mxu0 %v741
        %837 = vmatpush.msra.mxu0 %v740
        %838 = vmatmul.f32.gmra.mxu0 %v736
        %v839 = vpop.f32.mrf.mxu0
        %v840 = vadd.f32 %v811, %v839
        %841 = vmatmul.f32.gmra.mxu0 %v737
        %v842 = vpop.f32.mrf.mxu0
        %v843 = vadd.f32 %v814, %v842
        %844 = vmatmul.f32.gmra.mxu0 %v738
        %v845 = vpop.f32.mrf.mxu0
        %v846 = vadd.f32 %v817, %v845
        %847 = vmatmul.f32.gmra.mxu0 %v739
        %v848 = vpop.f32.mrf.mxu0
        %v849 = vadd.f32 %v820, %v848
        %850 = vdwg.mxu0
        %s851 = scalar_lea.vmem [#allocation6], 128
        %v852 = vld [vmem:[%s851] sm:$0xff]
        %v853 = vld [vmem:[%s851 + $0x8] sm:$0xff]
        %v854 = vld [vmem:[%s851 + $0x10] sm:$0xff]
        %v855 = vld [vmem:[%s851 + $0x18] sm:$0xff]
        %v856 = vld [vmem:[%s851 + $0x20] sm:$0xff]
        %v857 = vld [vmem:[%s851 + $0x28] sm:$0xff]
        %v858 = vld [vmem:[%s851 + $0x30] sm:$0xff]
        %v859 = vld [vmem:[%s851 + $0x38] sm:$0xff]
        %v860 = vld [vmem:[%s851 + $0x40] sm:$0xff]
        %v861 = vld [vmem:[%s851 + $0x48] sm:$0xff]
        %v862 = vld [vmem:[%s851 + $0x50] sm:$0xff]
        %v863 = vld [vmem:[%s851 + $0x58] sm:$0xff]
        %v864 = vld [vmem:[%s851 + $0x60] sm:$0xff]
        %v865 = vld [vmem:[%s851 + $0x68] sm:$0xff]
        %v866 = vld [vmem:[%s851 + $0x70] sm:$0xff]
        %v867 = vld [vmem:[%s851 + $0x78] sm:$0xff]
        %868 = vmatpush.msra.mxu0 %v867
        %869 = vmatpush.msra.mxu0 %v866
        %870 = vmatpush.msra.mxu0 %v865
        %871 = vmatpush.msra.mxu0 %v864
        %872 = vmatpush.msra.mxu0 %v863
        %873 = vmatpush.msra.mxu0 %v862
        %874 = vmatpush.msra.mxu0 %v861
        %875 = vmatpush.msra.mxu0 %v860
        %876 = vmatpush.msra.mxu0 %v859
        %877 = vmatpush.msra.mxu0 %v858
        %878 = vmatpush.msra.mxu0 %v857
        %879 = vmatpush.msra.mxu0 %v856
        %880 = vmatpush.msra.mxu0 %v855
        %881 = vmatpush.msra.mxu0 %v854
        %882 = vmatpush.msra.mxu0 %v853
        %883 = vmatpush.msra.mxu0 %v852
        %884 = vmatmul.f32.gmra.mxu0 %v772
        %v885 = vpop.f32.mrf.mxu0
        %v886 = vadd.f32 0.0, %v885
        %887 = vmatmul.f32.gmra.mxu0 %v773
        %v888 = vpop.f32.mrf.mxu0
        %v889 = vadd.f32 0.0, %v888
        %890 = vmatmul.f32.gmra.mxu0 %v774
        %v891 = vpop.f32.mrf.mxu0
        %v892 = vadd.f32 0.0, %v891
        %893 = vmatmul.f32.gmra.mxu0 %v775
        %v894 = vpop.f32.mrf.mxu0
        %v895 = vadd.f32 0.0, %v894
        %896 = vdwg.mxu0
        %897 = vmatpush.msra.mxu0 %v771
        %898 = vmatpush.msra.mxu0 %v770
        %899 = vmatpush.msra.mxu0 %v769
        %900 = vmatpush.msra.mxu0 %v768
        %901 = vmatpush.msra.mxu0 %v767
        %902 = vmatpush.msra.mxu0 %v766
        %903 = vmatpush.msra.mxu0 %v765
        %904 = vmatpush.msra.mxu0 %v764
        %905 = vmatpush.msra.mxu0 %v763
        %906 = vmatpush.msra.mxu0 %v762
        %907 = vmatpush.msra.mxu0 %v761
        %908 = vmatpush.msra.mxu0 %v760
        %909 = vmatpush.msra.mxu0 %v759
        %910 = vmatpush.msra.mxu0 %v758
        %911 = vmatpush.msra.mxu0 %v757
        %912 = vmatpush.msra.mxu0 %v756
        %913 = vmatmul.f32.gmra.mxu0 %v736
        %v914 = vpop.f32.mrf.mxu0
        %v915 = vadd.f32 %v886, %v914
        %916 = vmatmul.f32.gmra.mxu0 %v737
        %v917 = vpop.f32.mrf.mxu0
        %v918 = vadd.f32 %v889, %v917
        %919 = vmatmul.f32.gmra.mxu0 %v738
        %v920 = vpop.f32.mrf.mxu0
        %v921 = vadd.f32 %v892, %v920
        %922 = vmatmul.f32.gmra.mxu0 %v739
        %v923 = vpop.f32.mrf.mxu0
        %v924 = vadd.f32 %v895, %v923
        %925 = vdwg.mxu0
        %v926 = vld [vmem:[%s731 + $0x2] sm:$0xff]
        %v927 = vld [vmem:[%s731 + $0xa] sm:$0xff]
        %v928 = vld [vmem:[%s731 + $0x12] sm:$0xff]
        %v929 = vld [vmem:[%s731 + $0x1a] sm:$0xf]
        %s930 = scalar_lea.vmem %s1, 256
        %v931 = vld [vmem:[%s930] sm:$0xff]
        %v932 = vld [vmem:[%s930 + $0x8] sm:$0xff]
        %v933 = vld [vmem:[%s930 + $0x10] sm:$0xff]
        %v934 = vld [vmem:[%s930 + $0x18] sm:$0xff]
        %v935 = vld [vmem:[%s930 + $0x20] sm:$0xff]
        %v936 = vld [vmem:[%s930 + $0x28] sm:$0xff]
        %v937 = vld [vmem:[%s930 + $0x30] sm:$0xff]
        %v938 = vld [vmem:[%s930 + $0x38] sm:$0xff]
        %v939 = vld [vmem:[%s930 + $0x40] sm:$0xff]
        %v940 = vld [vmem:[%s930 + $0x48] sm:$0xff]
        %v941 = vld [vmem:[%s930 + $0x50] sm:$0xff]
        %v942 = vld [vmem:[%s930 + $0x58] sm:$0xff]
        %v943 = vld [vmem:[%s930 + $0x60] sm:$0xff]
        %v944 = vld [vmem:[%s930 + $0x68] sm:$0xff]
        %v945 = vld [vmem:[%s930 + $0x70] sm:$0xff]
        %v946 = vld [vmem:[%s930 + $0x78] sm:$0xff]
        %947 = vmatpush.msra.mxu0 %v946
        %948 = vmatpush.msra.mxu0 %v945
        %949 = vmatpush.msra.mxu0 %v944
        %950 = vmatpush.msra.mxu0 %v943
        %951 = vmatpush.msra.mxu0 %v942
        %952 = vmatpush.msra.mxu0 %v941
        %953 = vmatpush.msra.mxu0 %v940
        %954 = vmatpush.msra.mxu0 %v939
        %955 = vmatpush.msra.mxu0 %v938
        %956 = vmatpush.msra.mxu0 %v937
        %957 = vmatpush.msra.mxu0 %v936
        %958 = vmatpush.msra.mxu0 %v935
        %959 = vmatpush.msra.mxu0 %v934
        %960 = vmatpush.msra.mxu0 %v933
        %961 = vmatpush.msra.mxu0 %v932
        %962 = vmatpush.msra.mxu0 %v931
        %963 = vmatmul.f32.gmra.mxu0 %v926
        %v964 = vpop.f32.mrf.mxu0
        %v965 = vadd.f32 0.0, %v964
        %966 = vmatmul.f32.gmra.mxu0 %v927
        %v967 = vpop.f32.mrf.mxu0
        %v968 = vadd.f32 0.0, %v967
        %969 = vmatmul.f32.gmra.mxu0 %v928
        %v970 = vpop.f32.mrf.mxu0
        %v971 = vadd.f32 0.0, %v970
        %972 = vmatmul.f32.gmra.mxu0 %v929
        %v973 = vpop.f32.mrf.mxu0
        %v974 = vadd.f32 0.0, %v973
        %975 = vdwg.mxu0
        %v976 = vadd.f32 %v840, %v965
        %v977 = vadd.f32 %v843, %v968
        %v978 = vadd.f32 %v846, %v971
        %v979 = vadd.f32 %v849, %v974
        %s980 = scalar_lea.vmem [#allocation6], 256
        %v981 = vld [vmem:[%s980] sm:$0xff]
        %v982 = vld [vmem:[%s980 + $0x8] sm:$0xff]
        %v983 = vld [vmem:[%s980 + $0x10] sm:$0xff]
        %v984 = vld [vmem:[%s980 + $0x18] sm:$0xff]
        %v985 = vld [vmem:[%s980 + $0x20] sm:$0xff]
        %v986 = vld [vmem:[%s980 + $0x28] sm:$0xff]
        %v987 = vld [vmem:[%s980 + $0x30] sm:$0xff]
        %v988 = vld [vmem:[%s980 + $0x38] sm:$0xff]
        %v989 = vld [vmem:[%s980 + $0x40] sm:$0xff]
        %v990 = vld [vmem:[%s980 + $0x48] sm:$0xff]
        %v991 = vld [vmem:[%s980 + $0x50] sm:$0xff]
        %v992 = vld [vmem:[%s980 + $0x58] sm:$0xff]
        %v993 = vld [vmem:[%s980 + $0x60] sm:$0xff]
        %v994 = vld [vmem:[%s980 + $0x68] sm:$0xff]
        %v995 = vld [vmem:[%s980 + $0x70] sm:$0xff]
        %v996 = vld [vmem:[%s980 + $0x78] sm:$0xff]
        %997 = vmatpush.msra.mxu0 %v996
        %998 = vmatpush.msra.mxu0 %v995
        %999 = vmatpush.msra.mxu0 %v994
        %1000 = vmatpush.msra.mxu0 %v993
        %1001 = vmatpush.msra.mxu0 %v992
        %1002 = vmatpush.msra.mxu0 %v991
        %1003 = vmatpush.msra.mxu0 %v990
        %1004 = vmatpush.msra.mxu0 %v989
        %1005 = vmatpush.msra.mxu0 %v988
        %1006 = vmatpush.msra.mxu0 %v987
        %1007 = vmatpush.msra.mxu0 %v986
        %1008 = vmatpush.msra.mxu0 %v985
        %1009 = vmatpush.msra.mxu0 %v984
        %1010 = vmatpush.msra.mxu0 %v983
        %1011 = vmatpush.msra.mxu0 %v982
        %1012 = vmatpush.msra.mxu0 %v981
        %1013 = vmatmul.f32.gmra.mxu0 %v926
        %v1014 = vpop.f32.mrf.mxu0
        %v1015 = vadd.f32 0.0, %v1014
        %1016 = vmatmul.f32.gmra.mxu0 %v927
        %v1017 = vpop.f32.mrf.mxu0
        %v1018 = vadd.f32 0.0, %v1017
        %1019 = vmatmul.f32.gmra.mxu0 %v928
        %v1020 = vpop.f32.mrf.mxu0
        %v1021 = vadd.f32 0.0, %v1020
        %1022 = vmatmul.f32.gmra.mxu0 %v929
        %v1023 = vpop.f32.mrf.mxu0
        %v1024 = vadd.f32 0.0, %v1023
        %1025 = vdwg.mxu0
        %v1026 = vadd.f32 %v915, %v1015
        %v1027 = vadd.f32 %v918, %v1018
        %v1028 = vadd.f32 %v921, %v1021
        %v1029 = vadd.f32 %v924, %v1024
        %v1030 = vld [vmem:[%s731 + $0x3] sm:$0xff]
        %v1031 = vld [vmem:[%s731 + $0xb] sm:$0xff]
        %v1032 = vld [vmem:[%s731 + $0x13] sm:$0xff]
        %v1033 = vld [vmem:[%s731 + $0x1b] sm:$0xf]
        %s1034 = scalar_lea.vmem %s1, 384
        %v1035 = vld [vmem:[%s1034] sm:$0xff]
        %v1036 = vld [vmem:[%s1034 + $0x8] sm:$0xff]
        %v1037 = vld [vmem:[%s1034 + $0x10] sm:$0xff]
        %v1038 = vld [vmem:[%s1034 + $0x18] sm:$0xff]
        %v1039 = vld [vmem:[%s1034 + $0x20] sm:$0xff]
        %v1040 = vld [vmem:[%s1034 + $0x28] sm:$0xff]
        %v1041 = vld [vmem:[%s1034 + $0x30] sm:$0xff]
        %v1042 = vld [vmem:[%s1034 + $0x38] sm:$0xff]
        %v1043 = vld [vmem:[%s1034 + $0x40] sm:$0xff]
        %v1044 = vld [vmem:[%s1034 + $0x48] sm:$0xff]
        %v1045 = vld [vmem:[%s1034 + $0x50] sm:$0xff]
        %v1046 = vld [vmem:[%s1034 + $0x58] sm:$0xff]
        %v1047 = vld [vmem:[%s1034 + $0x60] sm:$0xff]
        %v1048 = vld [vmem:[%s1034 + $0x68] sm:$0xff]
        %v1049 = vld [vmem:[%s1034 + $0x70] sm:$0xff]
        %v1050 = vld [vmem:[%s1034 + $0x78] sm:$0xff]
        %1051 = vmatpush.msra.mxu0 %v1050
        %1052 = vmatpush.msra.mxu0 %v1049
        %1053 = vmatpush.msra.mxu0 %v1048
        %1054 = vmatpush.msra.mxu0 %v1047
        %1055 = vmatpush.msra.mxu0 %v1046
        %1056 = vmatpush.msra.mxu0 %v1045
        %1057 = vmatpush.msra.mxu0 %v1044
        %1058 = vmatpush.msra.mxu0 %v1043
        %1059 = vmatpush.msra.mxu0 %v1042
        %1060 = vmatpush.msra.mxu0 %v1041
        %1061 = vmatpush.msra.mxu0 %v1040
        %1062 = vmatpush.msra.mxu0 %v1039
        %1063 = vmatpush.msra.mxu0 %v1038
        %1064 = vmatpush.msra.mxu0 %v1037
        %1065 = vmatpush.msra.mxu0 %v1036
        %1066 = vmatpush.msra.mxu0 %v1035
        %1067 = vmatmul.f32.gmra.mxu0 %v1030
        %v1068 = vpop.f32.mrf.mxu0
        %v1069 = vadd.f32 0.0, %v1068
        %1070 = vmatmul.f32.gmra.mxu0 %v1031
        %v1071 = vpop.f32.mrf.mxu0
        %v1072 = vadd.f32 0.0, %v1071
        %1073 = vmatmul.f32.gmra.mxu0 %v1032
        %v1074 = vpop.f32.mrf.mxu0
        %v1075 = vadd.f32 0.0, %v1074
        %1076 = vmatmul.f32.gmra.mxu0 %v1033
        %v1077 = vpop.f32.mrf.mxu0
        %v1078 = vadd.f32 0.0, %v1077
        %1079 = vdwg.mxu0
        %v1080 = vadd.f32 %v976, %v1069
        %v1081 = vadd.f32 %v977, %v1072
        %v1082 = vadd.f32 %v978, %v1075
        %v1083 = vadd.f32 %v979, %v1078
        %s1084 = scalar_lea.vmem [#allocation6], 384
        %v1085 = vld [vmem:[%s1084] sm:$0xff]
        %v1086 = vld [vmem:[%s1084 + $0x8] sm:$0xff]
        %v1087 = vld [vmem:[%s1084 + $0x10] sm:$0xff]
        %v1088 = vld [vmem:[%s1084 + $0x18] sm:$0xff]
        %v1089 = vld [vmem:[%s1084 + $0x20] sm:$0xff]
        %v1090 = vld [vmem:[%s1084 + $0x28] sm:$0xff]
        %v1091 = vld [vmem:[%s1084 + $0x30] sm:$0xff]
        %v1092 = vld [vmem:[%s1084 + $0x38] sm:$0xff]
        %v1093 = vld [vmem:[%s1084 + $0x40] sm:$0xff]
        %v1094 = vld [vmem:[%s1084 + $0x48] sm:$0xff]
        %v1095 = vld [vmem:[%s1084 + $0x50] sm:$0xff]
        %v1096 = vld [vmem:[%s1084 + $0x58] sm:$0xff]
        %v1097 = vld [vmem:[%s1084 + $0x60] sm:$0xff]
        %v1098 = vld [vmem:[%s1084 + $0x68] sm:$0xff]
        %v1099 = vld [vmem:[%s1084 + $0x70] sm:$0xff]
        %v1100 = vld [vmem:[%s1084 + $0x78] sm:$0xff]
        %1101 = vmatpush.msra.mxu0 %v1100
        %1102 = vmatpush.msra.mxu0 %v1099
        %1103 = vmatpush.msra.mxu0 %v1098
        %1104 = vmatpush.msra.mxu0 %v1097
        %1105 = vmatpush.msra.mxu0 %v1096
        %1106 = vmatpush.msra.mxu0 %v1095
        %1107 = vmatpush.msra.mxu0 %v1094
        %1108 = vmatpush.msra.mxu0 %v1093
        %1109 = vmatpush.msra.mxu0 %v1092
        %1110 = vmatpush.msra.mxu0 %v1091
        %1111 = vmatpush.msra.mxu0 %v1090
        %1112 = vmatpush.msra.mxu0 %v1089
        %1113 = vmatpush.msra.mxu0 %v1088
        %1114 = vmatpush.msra.mxu0 %v1087
        %1115 = vmatpush.msra.mxu0 %v1086
        %1116 = vmatpush.msra.mxu0 %v1085
        %1117 = vmatmul.f32.gmra.mxu0 %v1030
        %v1118 = vpop.f32.mrf.mxu0
        %v1119 = vadd.f32 0.0, %v1118
        %1120 = vmatmul.f32.gmra.mxu0 %v1031
        %v1121 = vpop.f32.mrf.mxu0
        %v1122 = vadd.f32 0.0, %v1121
        %1123 = vmatmul.f32.gmra.mxu0 %v1032
        %v1124 = vpop.f32.mrf.mxu0
        %v1125 = vadd.f32 0.0, %v1124
        %1126 = vmatmul.f32.gmra.mxu0 %v1033
        %v1127 = vpop.f32.mrf.mxu0
        %v1128 = vadd.f32 0.0, %v1127
        %1129 = vdwg.mxu0
        %v1130 = vadd.f32 %v1026, %v1119
        %v1131 = vadd.f32 %v1027, %v1122
        %v1132 = vadd.f32 %v1028, %v1125
        %v1133 = vadd.f32 %v1029, %v1128
        %v1134 = vld [vmem:[%s731 + $0x4] sm:$0xff]
        %v1135 = vld [vmem:[%s731 + $0xc] sm:$0xff]
        %v1136 = vld [vmem:[%s731 + $0x14] sm:$0xff]
        %v1137 = vld [vmem:[%s731 + $0x1c] sm:$0xf]
        %s1138 = scalar_lea.vmem %s1, 512
        %v1139 = vld [vmem:[%s1138] sm:$0xff]
        %v1140 = vld [vmem:[%s1138 + $0x8] sm:$0xff]
        %v1141 = vld [vmem:[%s1138 + $0x10] sm:$0xff]
        %v1142 = vld [vmem:[%s1138 + $0x18] sm:$0xff]
        %v1143 = vld [vmem:[%s1138 + $0x20] sm:$0xff]
        %v1144 = vld [vmem:[%s1138 + $0x28] sm:$0xff]
        %v1145 = vld [vmem:[%s1138 + $0x30] sm:$0xff]
        %v1146 = vld [vmem:[%s1138 + $0x38] sm:$0xff]
        %v1147 = vld [vmem:[%s1138 + $0x40] sm:$0xff]
        %v1148 = vld [vmem:[%s1138 + $0x48] sm:$0xff]
        %v1149 = vld [vmem:[%s1138 + $0x50] sm:$0xff]
        %v1150 = vld [vmem:[%s1138 + $0x58] sm:$0xff]
        %v1151 = vld [vmem:[%s1138 + $0x60] sm:$0xff]
        %v1152 = vld [vmem:[%s1138 + $0x68] sm:$0xff]
        %v1153 = vld [vmem:[%s1138 + $0x70] sm:$0xff]
        %v1154 = vld [vmem:[%s1138 + $0x78] sm:$0xff]
        %1155 = vmatpush.msra.mxu0 %v1154
        %1156 = vmatpush.msra.mxu0 %v1153
        %1157 = vmatpush.msra.mxu0 %v1152
        %1158 = vmatpush.msra.mxu0 %v1151
        %1159 = vmatpush.msra.mxu0 %v1150
        %1160 = vmatpush.msra.mxu0 %v1149
        %1161 = vmatpush.msra.mxu0 %v1148
        %1162 = vmatpush.msra.mxu0 %v1147
        %1163 = vmatpush.msra.mxu0 %v1146
        %1164 = vmatpush.msra.mxu0 %v1145
        %1165 = vmatpush.msra.mxu0 %v1144
        %1166 = vmatpush.msra.mxu0 %v1143
        %1167 = vmatpush.msra.mxu0 %v1142
        %1168 = vmatpush.msra.mxu0 %v1141
        %1169 = vmatpush.msra.mxu0 %v1140
        %1170 = vmatpush.msra.mxu0 %v1139
        %1171 = vmatmul.f32.gmra.mxu0 %v1134
        %v1172 = vpop.f32.mrf.mxu0
        %v1173 = vadd.f32 0.0, %v1172
        %1174 = vmatmul.f32.gmra.mxu0 %v1135
        %v1175 = vpop.f32.mrf.mxu0
        %v1176 = vadd.f32 0.0, %v1175
        %1177 = vmatmul.f32.gmra.mxu0 %v1136
        %v1178 = vpop.f32.mrf.mxu0
        %v1179 = vadd.f32 0.0, %v1178
        %1180 = vmatmul.f32.gmra.mxu0 %v1137
        %v1181 = vpop.f32.mrf.mxu0
        %v1182 = vadd.f32 0.0, %v1181
        %1183 = vdwg.mxu0
        %v1184 = vadd.f32 %v1080, %v1173
        %v1185 = vadd.f32 %v1081, %v1176
        %v1186 = vadd.f32 %v1082, %v1179
        %v1187 = vadd.f32 %v1083, %v1182
        %s1188 = scalar_lea.vmem [#allocation6], 512
        %v1189 = vld [vmem:[%s1188] sm:$0xff]
        %v1190 = vld [vmem:[%s1188 + $0x8] sm:$0xff]
        %v1191 = vld [vmem:[%s1188 + $0x10] sm:$0xff]
        %v1192 = vld [vmem:[%s1188 + $0x18] sm:$0xff]
        %v1193 = vld [vmem:[%s1188 + $0x20] sm:$0xff]
        %v1194 = vld [vmem:[%s1188 + $0x28] sm:$0xff]
        %v1195 = vld [vmem:[%s1188 + $0x30] sm:$0xff]
        %v1196 = vld [vmem:[%s1188 + $0x38] sm:$0xff]
        %v1197 = vld [vmem:[%s1188 + $0x40] sm:$0xff]
        %v1198 = vld [vmem:[%s1188 + $0x48] sm:$0xff]
        %v1199 = vld [vmem:[%s1188 + $0x50] sm:$0xff]
        %v1200 = vld [vmem:[%s1188 + $0x58] sm:$0xff]
        %v1201 = vld [vmem:[%s1188 + $0x60] sm:$0xff]
        %v1202 = vld [vmem:[%s1188 + $0x68] sm:$0xff]
        %v1203 = vld [vmem:[%s1188 + $0x70] sm:$0xff]
        %v1204 = vld [vmem:[%s1188 + $0x78] sm:$0xff]
        %1205 = vmatpush.msra.mxu0 %v1204
        %1206 = vmatpush.msra.mxu0 %v1203
        %1207 = vmatpush.msra.mxu0 %v1202
        %1208 = vmatpush.msra.mxu0 %v1201
        %1209 = vmatpush.msra.mxu0 %v1200
        %1210 = vmatpush.msra.mxu0 %v1199
        %1211 = vmatpush.msra.mxu0 %v1198
        %1212 = vmatpush.msra.mxu0 %v1197
        %1213 = vmatpush.msra.mxu0 %v1196
        %1214 = vmatpush.msra.mxu0 %v1195
        %1215 = vmatpush.msra.mxu0 %v1194
        %1216 = vmatpush.msra.mxu0 %v1193
        %1217 = vmatpush.msra.mxu0 %v1192
        %1218 = vmatpush.msra.mxu0 %v1191
        %1219 = vmatpush.msra.mxu0 %v1190
        %1220 = vmatpush.msra.mxu0 %v1189
        %1221 = vmatmul.f32.gmra.mxu0 %v1134
        %v1222 = vpop.f32.mrf.mxu0
        %v1223 = vadd.f32 0.0, %v1222
        %1224 = vmatmul.f32.gmra.mxu0 %v1135
        %v1225 = vpop.f32.mrf.mxu0
        %v1226 = vadd.f32 0.0, %v1225
        %1227 = vmatmul.f32.gmra.mxu0 %v1136
        %v1228 = vpop.f32.mrf.mxu0
        %v1229 = vadd.f32 0.0, %v1228
        %1230 = vmatmul.f32.gmra.mxu0 %v1137
        %v1231 = vpop.f32.mrf.mxu0
        %v1232 = vadd.f32 0.0, %v1231
        %1233 = vdwg.mxu0
        %v1234 = vadd.f32 %v1130, %v1223
        %v1235 = vadd.f32 %v1131, %v1226
        %v1236 = vadd.f32 %v1132, %v1229
        %v1237 = vadd.f32 %v1133, %v1232
        %v1238 = vld [vmem:[%s3] sm:$0x1]
        %v1240 = vperm.slane %v1238, 0
        %v1242 = vadd.f32 %v1184, %v1240
        %v1243 = vadd.f32 %v1185, %v1240
        %v1244 = vadd.f32 %v1186, %v1240
        %v1245 = vadd.f32 %v1187, %v1240
        %v1246 = vmax.f32 %v1242, 0.0
        %v1247 = vmax.f32 %v1243, 0.0
        %v1248 = vmax.f32 %v1244, 0.0
        %v1249 = vmax.f32 %v1245, 0.0
        %v1250 = vadd.f32 %v1234, %v1240
        %v1251 = vadd.f32 %v1235, %v1240
        %v1252 = vadd.f32 %v1236, %v1240
        %v1253 = vadd.f32 %v1237, %v1240
        %v1254 = vmax.f32 %v1250, 0.0
        %v1255 = vmax.f32 %v1251, 0.0
        %v1256 = vmax.f32 %v1252, 0.0
        %v1257 = vmax.f32 %v1253, 0.0
        %v1258 = vmax.f32 %v1246, %v1254
        %v1259 = vmax.f32 %v1247, %v1255
        %v1260 = vmax.f32 %v1248, %v1256
        %v1261 = vmax.f32 %v1249, %v1257
        %1262 = vst [vmem:[#allocation2] sm:$0xff] %v1258
        %1263 = vst [vmem:[#allocation2 + $0x8] sm:$0xff] %v1259
        %1264 = vst [vmem:[#allocation2 + $0x10] sm:$0xff] %v1260
        %1265 = vst [vmem:[#allocation2 + $0x18] sm:$0xf] %v1261
        %v1266 = vld [vmem:[#allocation2] sm:$0x1]
        %v1267 = vld [vmem:[#allocation2 + $0x1] sm:$0x1]
        %v1268 = vmax.f32 %v1266, %v1267
        %1269 = vst [vmem:[#allocation3] sm:$0x1] %v1268
        %v1270 = vld [vmem:[#allocation2 + $0x2] sm:$0x1]
        %v1271 = vld [vmem:[#allocation2 + $0x3] sm:$0x1]
        %v1272 = vmax.f32 %v1270, %v1271
        %1273 = vst [vmem:[#allocation3 + $0x1] sm:$0x1] %v1272
        %v1274 = vld [vmem:[#allocation2 + $0x4] sm:$0x1]
        %v1275 = vld [vmem:[#allocation2 + $0x5] sm:$0x1]
        %v1276 = vmax.f32 %v1274, %v1275
        %1277 = vst [vmem:[#allocation3 + $0x2] sm:$0x1] %v1276
        %v1278 = vld [vmem:[#allocation2 + $0x6] sm:$0x1]
        %v1279 = vld [vmem:[#allocation2 + $0x7] sm:$0x1]
        %v1280 = vmax.f32 %v1278, %v1279
        %1281 = vst [vmem:[#allocation3 + $0x3] sm:$0x1] %v1280
        %v1282 = vld [vmem:[#allocation2 + $0x8] sm:$0x1]
        %v1283 = vld [vmem:[#allocation2 + $0x9] sm:$0x1]
        %v1284 = vmax.f32 %v1282, %v1283
        %1285 = vst [vmem:[#allocation3 + $0x4] sm:$0x1] %v1284
        %v1286 = vld [vmem:[#allocation2 + $0xa] sm:$0x1]
        %v1287 = vld [vmem:[#allocation2 + $0xb] sm:$0x1]
        %v1288 = vmax.f32 %v1286, %v1287
        %1289 = vst [vmem:[#allocation3 + $0x5] sm:$0x1] %v1288
        %v1290 = vld [vmem:[#allocation2 + $0xc] sm:$0x1]
        %v1291 = vld [vmem:[#allocation2 + $0xd] sm:$0x1]
        %v1292 = vmax.f32 %v1290, %v1291
        %1293 = vst [vmem:[#allocation3 + $0x6] sm:$0x1] %v1292
        %v1294 = vld [vmem:[#allocation2 + $0xe] sm:$0x1]
        %v1295 = vld [vmem:[#allocation2 + $0xf] sm:$0x1]
        %v1296 = vmax.f32 %v1294, %v1295
        %1297 = vst [vmem:[#allocation3 + $0x7] sm:$0x1] %v1296
        %v1298 = vld [vmem:[#allocation2 + $0x10] sm:$0x1]
        %v1299 = vld [vmem:[#allocation2 + $0x11] sm:$0x1]
        %v1300 = vmax.f32 %v1298, %v1299
        %1301 = vst [vmem:[#allocation3 + $0x8] sm:$0x1] %v1300
        %v1302 = vld [vmem:[#allocation2 + $0x12] sm:$0x1]
        %v1303 = vld [vmem:[#allocation2 + $0x13] sm:$0x1]
        %v1304 = vmax.f32 %v1302, %v1303
        %1305 = vst [vmem:[#allocation3 + $0x9] sm:$0x1] %v1304
        %v1306 = vld [vmem:[#allocation2 + $0x14] sm:$0x1]
        %v1307 = vld [vmem:[#allocation2 + $0x15] sm:$0x1]
        %v1308 = vmax.f32 %v1306, %v1307
        %1309 = vst [vmem:[#allocation3 + $0xa] sm:$0x1] %v1308
        %v1310 = vld [vmem:[#allocation2 + $0x16] sm:$0x1]
        %v1311 = vld [vmem:[#allocation2 + $0x17] sm:$0x1]
        %v1312 = vmax.f32 %v1310, %v1311
        %1313 = vst [vmem:[#allocation3 + $0xb] sm:$0x1] %v1312
        %v1314 = vld [vmem:[#allocation2 + $0x18] sm:$0x1]
        %v1315 = vld [vmem:[#allocation2 + $0x19] sm:$0x1]
        %v1316 = vmax.f32 %v1314, %v1315
        %1317 = vst [vmem:[#allocation3 + $0xc] sm:$0x1] %v1316
        %v1318 = vld [vmem:[#allocation2 + $0x1a] sm:$0x1]
        %v1319 = vld [vmem:[#allocation2 + $0x1b] sm:$0x1]
        %v1320 = vmax.f32 %v1318, %v1319
        %1321 = vst [vmem:[#allocation3 + $0xd] sm:$0x1] %v1320
        %v1322 = vld [vmem:[#allocation3] sm:$0xff]
        %v1323 = vld [vmem:[#allocation3 + $0x8] sm:$0x3]
        %v1324 = vld [vmem:[#allocation9] sm:$0xff]
        %v1325 = vld [vmem:[#allocation9 + $0x8] sm:$0xff]
        %v1326 = vld [vmem:[#allocation9 + $0x10] sm:$0xff]
        %v1327 = vld [vmem:[#allocation9 + $0x18] sm:$0xff]
        %v1328 = vld [vmem:[#allocation9 + $0x20] sm:$0xff]
        %v1329 = vld [vmem:[#allocation9 + $0x28] sm:$0xff]
        %v1330 = vld [vmem:[#allocation9 + $0x30] sm:$0xff]
        %v1331 = vld [vmem:[#allocation9 + $0x38] sm:$0xff]
        %v1332 = vld [vmem:[#allocation9 + $0x40] sm:$0xff]
        %v1333 = vld [vmem:[#allocation9 + $0x48] sm:$0xff]
        %v1334 = vld [vmem:[#allocation9 + $0x50] sm:$0xff]
        %v1335 = vld [vmem:[#allocation9 + $0x58] sm:$0xff]
        %v1336 = vld [vmem:[#allocation9 + $0x60] sm:$0xff]
        %v1337 = vld [vmem:[#allocation9 + $0x68] sm:$0xff]
        %v1338 = vld [vmem:[#allocation9 + $0x70] sm:$0xff]
        %v1339 = vld [vmem:[#allocation9 + $0x78] sm:$0xff]
        %v1340 = vld [vmem:[#allocation11] sm:$0xff]
        %v1341 = vld [vmem:[#allocation11 + $0x8] sm:$0xff]
        %v1342 = vld [vmem:[#allocation11 + $0x10] sm:$0xff]
        %v1343 = vld [vmem:[#allocation11 + $0x18] sm:$0xff]
        %v1344 = vld [vmem:[#allocation11 + $0x20] sm:$0xff]
        %v1345 = vld [vmem:[#allocation11 + $0x28] sm:$0xff]
        %v1346 = vld [vmem:[#allocation11 + $0x30] sm:$0xff]
        %v1347 = vld [vmem:[#allocation11 + $0x38] sm:$0xff]
        %v1348 = vld [vmem:[#allocation11 + $0x40] sm:$0xff]
        %v1349 = vld [vmem:[#allocation11 + $0x48] sm:$0xff]
        %v1350 = vld [vmem:[#allocation11 + $0x50] sm:$0xff]
        %v1351 = vld [vmem:[#allocation11 + $0x58] sm:$0xff]
        %v1352 = vld [vmem:[#allocation11 + $0x60] sm:$0xff]
        %v1353 = vld [vmem:[#allocation11 + $0x68] sm:$0xff]
        %v1354 = vld [vmem:[#allocation11 + $0x70] sm:$0xff]
        %v1355 = vld [vmem:[#allocation11 + $0x78] sm:$0xff]
        %v1356 = vld [vmem:[#allocation3 + $0x1] sm:$0xff]
        %v1357 = vld [vmem:[#allocation3 + $0x9] sm:$0x3]
        %s1358 = scalar_lea.vmem [#allocation9], 128
        %v1359 = vld [vmem:[%s1358] sm:$0xff]
        %v1360 = vld [vmem:[%s1358 + $0x8] sm:$0xff]
        %v1361 = vld [vmem:[%s1358 + $0x10] sm:$0xff]
        %v1362 = vld [vmem:[%s1358 + $0x18] sm:$0xff]
        %v1363 = vld [vmem:[%s1358 + $0x20] sm:$0xff]
        %v1364 = vld [vmem:[%s1358 + $0x28] sm:$0xff]
        %v1365 = vld [vmem:[%s1358 + $0x30] sm:$0xff]
        %v1366 = vld [vmem:[%s1358 + $0x38] sm:$0xff]
        %v1367 = vld [vmem:[%s1358 + $0x40] sm:$0xff]
        %v1368 = vld [vmem:[%s1358 + $0x48] sm:$0xff]
        %v1369 = vld [vmem:[%s1358 + $0x50] sm:$0xff]
        %v1370 = vld [vmem:[%s1358 + $0x58] sm:$0xff]
        %v1371 = vld [vmem:[%s1358 + $0x60] sm:$0xff]
        %v1372 = vld [vmem:[%s1358 + $0x68] sm:$0xff]
        %v1373 = vld [vmem:[%s1358 + $0x70] sm:$0xff]
        %v1374 = vld [vmem:[%s1358 + $0x78] sm:$0xff]
        %1375 = vmatpush.msra.mxu0 %v1374
        %1376 = vmatpush.msra.mxu0 %v1373
        %1377 = vmatpush.msra.mxu0 %v1372
        %1378 = vmatpush.msra.mxu0 %v1371
        %1379 = vmatpush.msra.mxu0 %v1370
        %1380 = vmatpush.msra.mxu0 %v1369
        %1381 = vmatpush.msra.mxu0 %v1368
        %1382 = vmatpush.msra.mxu0 %v1367
        %1383 = vmatpush.msra.mxu0 %v1366
        %1384 = vmatpush.msra.mxu0 %v1365
        %1385 = vmatpush.msra.mxu0 %v1364
        %1386 = vmatpush.msra.mxu0 %v1363
        %1387 = vmatpush.msra.mxu0 %v1362
        %1388 = vmatpush.msra.mxu0 %v1361
        %1389 = vmatpush.msra.mxu0 %v1360
        %1390 = vmatpush.msra.mxu0 %v1359
        %1391 = vmatmul.f32.gmra.mxu0 %v1356
        %v1392 = vpop.f32.mrf.mxu0
        %v1393 = vadd.f32 0.0, %v1392
        %1394 = vmatmul.f32.gmra.mxu0 %v1357
        %v1395 = vpop.f32.mrf.mxu0
        %v1396 = vadd.f32 0.0, %v1395
        %1397 = vdwg.mxu0
        %1398 = vmatpush.msra.mxu0 %v1339
        %1399 = vmatpush.msra.mxu0 %v1338
        %1400 = vmatpush.msra.mxu0 %v1337
        %1401 = vmatpush.msra.mxu0 %v1336
        %1402 = vmatpush.msra.mxu0 %v1335
        %1403 = vmatpush.msra.mxu0 %v1334
        %1404 = vmatpush.msra.mxu0 %v1333
        %1405 = vmatpush.msra.mxu0 %v1332
        %1406 = vmatpush.msra.mxu0 %v1331
        %1407 = vmatpush.msra.mxu0 %v1330
        %1408 = vmatpush.msra.mxu0 %v1329
        %1409 = vmatpush.msra.mxu0 %v1328
        %1410 = vmatpush.msra.mxu0 %v1327
        %1411 = vmatpush.msra.mxu0 %v1326
        %1412 = vmatpush.msra.mxu0 %v1325
        %1413 = vmatpush.msra.mxu0 %v1324
        %1414 = vmatmul.f32.gmra.mxu0 %v1322
        %v1415 = vpop.f32.mrf.mxu0
        %v1416 = vadd.f32 %v1393, %v1415
        %1417 = vmatmul.f32.gmra.mxu0 %v1323
        %v1418 = vpop.f32.mrf.mxu0
        %v1419 = vadd.f32 %v1396, %v1418
        %1420 = vdwg.mxu0
        %s1421 = scalar_lea.vmem [#allocation11], 128
        %v1422 = vld [vmem:[%s1421] sm:$0xff]
        %v1423 = vld [vmem:[%s1421 + $0x8] sm:$0xff]
        %v1424 = vld [vmem:[%s1421 + $0x10] sm:$0xff]
        %v1425 = vld [vmem:[%s1421 + $0x18] sm:$0xff]
        %v1426 = vld [vmem:[%s1421 + $0x20] sm:$0xff]
        %v1427 = vld [vmem:[%s1421 + $0x28] sm:$0xff]
        %v1428 = vld [vmem:[%s1421 + $0x30] sm:$0xff]
        %v1429 = vld [vmem:[%s1421 + $0x38] sm:$0xff]
        %v1430 = vld [vmem:[%s1421 + $0x40] sm:$0xff]
        %v1431 = vld [vmem:[%s1421 + $0x48] sm:$0xff]
        %v1432 = vld [vmem:[%s1421 + $0x50] sm:$0xff]
        %v1433 = vld [vmem:[%s1421 + $0x58] sm:$0xff]
        %v1434 = vld [vmem:[%s1421 + $0x60] sm:$0xff]
        %v1435 = vld [vmem:[%s1421 + $0x68] sm:$0xff]
        %v1436 = vld [vmem:[%s1421 + $0x70] sm:$0xff]
        %v1437 = vld [vmem:[%s1421 + $0x78] sm:$0xff]
        %1438 = vmatpush.msra.mxu0 %v1437
        %1439 = vmatpush.msra.mxu0 %v1436
        %1440 = vmatpush.msra.mxu0 %v1435
        %1441 = vmatpush.msra.mxu0 %v1434
        %1442 = vmatpush.msra.mxu0 %v1433
        %1443 = vmatpush.msra.mxu0 %v1432
        %1444 = vmatpush.msra.mxu0 %v1431
        %1445 = vmatpush.msra.mxu0 %v1430
        %1446 = vmatpush.msra.mxu0 %v1429
        %1447 = vmatpush.msra.mxu0 %v1428
        %1448 = vmatpush.msra.mxu0 %v1427
        %1449 = vmatpush.msra.mxu0 %v1426
        %1450 = vmatpush.msra.mxu0 %v1425
        %1451 = vmatpush.msra.mxu0 %v1424
        %1452 = vmatpush.msra.mxu0 %v1423
        %1453 = vmatpush.msra.mxu0 %v1422
        %1454 = vmatmul.f32.gmra.mxu0 %v1356
        %v1455 = vpop.f32.mrf.mxu0
        %v1456 = vadd.f32 0.0, %v1455
        %1457 = vmatmul.f32.gmra.mxu0 %v1357
        %v1458 = vpop.f32.mrf.mxu0
        %v1459 = vadd.f32 0.0, %v1458
        %1460 = vdwg.mxu0
        %1461 = vmatpush.msra.mxu0 %v1355
        %1462 = vmatpush.msra.mxu0 %v1354
        %1463 = vmatpush.msra.mxu0 %v1353
        %1464 = vmatpush.msra.mxu0 %v1352
        %1465 = vmatpush.msra.mxu0 %v1351
        %1466 = vmatpush.msra.mxu0 %v1350
        %1467 = vmatpush.msra.mxu0 %v1349
        %1468 = vmatpush.msra.mxu0 %v1348
        %1469 = vmatpush.msra.mxu0 %v1347
        %1470 = vmatpush.msra.mxu0 %v1346
        %1471 = vmatpush.msra.mxu0 %v1345
        %1472 = vmatpush.msra.mxu0 %v1344
        %1473 = vmatpush.msra.mxu0 %v1343
        %1474 = vmatpush.msra.mxu0 %v1342
        %1475 = vmatpush.msra.mxu0 %v1341
        %1476 = vmatpush.msra.mxu0 %v1340
        %1477 = vmatmul.f32.gmra.mxu0 %v1322
        %v1478 = vpop.f32.mrf.mxu0
        %v1479 = vadd.f32 %v1456, %v1478
        %1480 = vmatmul.f32.gmra.mxu0 %v1323
        %v1481 = vpop.f32.mrf.mxu0
        %v1482 = vadd.f32 %v1459, %v1481
        %1483 = vdwg.mxu0
        %v1484 = vld [vmem:[#allocation3 + $0x2] sm:$0xff]
        %v1485 = vld [vmem:[#allocation3 + $0xa] sm:$0x3]
        %s1486 = scalar_lea.vmem [#allocation9], 256
        %v1487 = vld [vmem:[%s1486] sm:$0xff]
        %v1488 = vld [vmem:[%s1486 + $0x8] sm:$0xff]
        %v1489 = vld [vmem:[%s1486 + $0x10] sm:$0xff]
        %v1490 = vld [vmem:[%s1486 + $0x18] sm:$0xff]
        %v1491 = vld [vmem:[%s1486 + $0x20] sm:$0xff]
        %v1492 = vld [vmem:[%s1486 + $0x28] sm:$0xff]
        %v1493 = vld [vmem:[%s1486 + $0x30] sm:$0xff]
        %v1494 = vld [vmem:[%s1486 + $0x38] sm:$0xff]
        %v1495 = vld [vmem:[%s1486 + $0x40] sm:$0xff]
        %v1496 = vld [vmem:[%s1486 + $0x48] sm:$0xff]
        %v1497 = vld [vmem:[%s1486 + $0x50] sm:$0xff]
        %v1498 = vld [vmem:[%s1486 + $0x58] sm:$0xff]
        %v1499 = vld [vmem:[%s1486 + $0x60] sm:$0xff]
        %v1500 = vld [vmem:[%s1486 + $0x68] sm:$0xff]
        %v1501 = vld [vmem:[%s1486 + $0x70] sm:$0xff]
        %v1502 = vld [vmem:[%s1486 + $0x78] sm:$0xff]
        %1503 = vmatpush.msra.mxu0 %v1502
        %1504 = vmatpush.msra.mxu0 %v1501
        %1505 = vmatpush.msra.mxu0 %v1500
        %1506 = vmatpush.msra.mxu0 %v1499
        %1507 = vmatpush.msra.mxu0 %v1498
        %1508 = vmatpush.msra.mxu0 %v1497
        %1509 = vmatpush.msra.mxu0 %v1496
        %1510 = vmatpush.msra.mxu0 %v1495
        %1511 = vmatpush.msra.mxu0 %v1494
        %1512 = vmatpush.msra.mxu0 %v1493
        %1513 = vmatpush.msra.mxu0 %v1492
        %1514 = vmatpush.msra.mxu0 %v1491
        %1515 = vmatpush.msra.mxu0 %v1490
        %1516 = vmatpush.msra.mxu0 %v1489
        %1517 = vmatpush.msra.mxu0 %v1488
        %1518 = vmatpush.msra.mxu0 %v1487
        %1519 = vmatmul.f32.gmra.mxu0 %v1484
        %v1520 = vpop.f32.mrf.mxu0
        %v1521 = vadd.f32 0.0, %v1520
        %1522 = vmatmul.f32.gmra.mxu0 %v1485
        %v1523 = vpop.f32.mrf.mxu0
        %v1524 = vadd.f32 0.0, %v1523
        %1525 = vdwg.mxu0
        %v1526 = vadd.f32 %v1416, %v1521
        %v1527 = vadd.f32 %v1419, %v1524
        %s1528 = scalar_lea.vmem [#allocation11], 256
        %v1529 = vld [vmem:[%s1528] sm:$0xff]
        %v1530 = vld [vmem:[%s1528 + $0x8] sm:$0xff]
        %v1531 = vld [vmem:[%s1528 + $0x10] sm:$0xff]
        %v1532 = vld [vmem:[%s1528 + $0x18] sm:$0xff]
        %v1533 = vld [vmem:[%s1528 + $0x20] sm:$0xff]
        %v1534 = vld [vmem:[%s1528 + $0x28] sm:$0xff]
        %v1535 = vld [vmem:[%s1528 + $0x30] sm:$0xff]
        %v1536 = vld [vmem:[%s1528 + $0x38] sm:$0xff]
        %v1537 = vld [vmem:[%s1528 + $0x40] sm:$0xff]
        %v1538 = vld [vmem:[%s1528 + $0x48] sm:$0xff]
        %v1539 = vld [vmem:[%s1528 + $0x50] sm:$0xff]
        %v1540 = vld [vmem:[%s1528 + $0x58] sm:$0xff]
        %v1541 = vld [vmem:[%s1528 + $0x60] sm:$0xff]
        %v1542 = vld [vmem:[%s1528 + $0x68] sm:$0xff]
        %v1543 = vld [vmem:[%s1528 + $0x70] sm:$0xff]
        %v1544 = vld [vmem:[%s1528 + $0x78] sm:$0xff]
        %1545 = vmatpush.msra.mxu0 %v1544
        %1546 = vmatpush.msra.mxu0 %v1543
        %1547 = vmatpush.msra.mxu0 %v1542
        %1548 = vmatpush.msra.mxu0 %v1541
        %1549 = vmatpush.msra.mxu0 %v1540
        %1550 = vmatpush.msra.mxu0 %v1539
        %1551 = vmatpush.msra.mxu0 %v1538
        %1552 = vmatpush.msra.mxu0 %v1537
        %1553 = vmatpush.msra.mxu0 %v1536
        %1554 = vmatpush.msra.mxu0 %v1535
        %1555 = vmatpush.msra.mxu0 %v1534
        %1556 = vmatpush.msra.mxu0 %v1533
        %1557 = vmatpush.msra.mxu0 %v1532
        %1558 = vmatpush.msra.mxu0 %v1531
        %1559 = vmatpush.msra.mxu0 %v1530
        %1560 = vmatpush.msra.mxu0 %v1529
        %1561 = vmatmul.f32.gmra.mxu0 %v1484
        %v1562 = vpop.f32.mrf.mxu0
        %v1563 = vadd.f32 0.0, %v1562
        %1564 = vmatmul.f32.gmra.mxu0 %v1485
        %v1565 = vpop.f32.mrf.mxu0
        %v1566 = vadd.f32 0.0, %v1565
        %1567 = vdwg.mxu0
        %v1568 = vadd.f32 %v1479, %v1563
        %v1569 = vadd.f32 %v1482, %v1566
        %v1570 = vld [vmem:[#allocation3 + $0x3] sm:$0xff]
        %v1571 = vld [vmem:[#allocation3 + $0xb] sm:$0x3]
        %s1572 = scalar_lea.vmem [#allocation9], 384
        %v1573 = vld [vmem:[%s1572] sm:$0xff]
        %v1574 = vld [vmem:[%s1572 + $0x8] sm:$0xff]
        %v1575 = vld [vmem:[%s1572 + $0x10] sm:$0xff]
        %v1576 = vld [vmem:[%s1572 + $0x18] sm:$0xff]
        %v1577 = vld [vmem:[%s1572 + $0x20] sm:$0xff]
        %v1578 = vld [vmem:[%s1572 + $0x28] sm:$0xff]
        %v1579 = vld [vmem:[%s1572 + $0x30] sm:$0xff]
        %v1580 = vld [vmem:[%s1572 + $0x38] sm:$0xff]
        %v1581 = vld [vmem:[%s1572 + $0x40] sm:$0xff]
        %v1582 = vld [vmem:[%s1572 + $0x48] sm:$0xff]
        %v1583 = vld [vmem:[%s1572 + $0x50] sm:$0xff]
        %v1584 = vld [vmem:[%s1572 + $0x58] sm:$0xff]
        %v1585 = vld [vmem:[%s1572 + $0x60] sm:$0xff]
        %v1586 = vld [vmem:[%s1572 + $0x68] sm:$0xff]
        %v1587 = vld [vmem:[%s1572 + $0x70] sm:$0xff]
        %v1588 = vld [vmem:[%s1572 + $0x78] sm:$0xff]
        %1589 = vmatpush.msra.mxu0 %v1588
        %1590 = vmatpush.msra.mxu0 %v1587
        %1591 = vmatpush.msra.mxu0 %v1586
        %1592 = vmatpush.msra.mxu0 %v1585
        %1593 = vmatpush.msra.mxu0 %v1584
        %1594 = vmatpush.msra.mxu0 %v1583
        %1595 = vmatpush.msra.mxu0 %v1582
        %1596 = vmatpush.msra.mxu0 %v1581
        %1597 = vmatpush.msra.mxu0 %v1580
        %1598 = vmatpush.msra.mxu0 %v1579
        %1599 = vmatpush.msra.mxu0 %v1578
        %1600 = vmatpush.msra.mxu0 %v1577
        %1601 = vmatpush.msra.mxu0 %v1576
        %1602 = vmatpush.msra.mxu0 %v1575
        %1603 = vmatpush.msra.mxu0 %v1574
        %1604 = vmatpush.msra.mxu0 %v1573
        %1605 = vmatmul.f32.gmra.mxu0 %v1570
        %v1606 = vpop.f32.mrf.mxu0
        %v1607 = vadd.f32 0.0, %v1606
        %1608 = vmatmul.f32.gmra.mxu0 %v1571
        %v1609 = vpop.f32.mrf.mxu0
        %v1610 = vadd.f32 0.0, %v1609
        %1611 = vdwg.mxu0
        %v1612 = vadd.f32 %v1526, %v1607
        %v1613 = vadd.f32 %v1527, %v1610
        %s1614 = scalar_lea.vmem [#allocation11], 384
        %v1615 = vld [vmem:[%s1614] sm:$0xff]
        %v1616 = vld [vmem:[%s1614 + $0x8] sm:$0xff]
        %v1617 = vld [vmem:[%s1614 + $0x10] sm:$0xff]
        %v1618 = vld [vmem:[%s1614 + $0x18] sm:$0xff]
        %v1619 = vld [vmem:[%s1614 + $0x20] sm:$0xff]
        %v1620 = vld [vmem:[%s1614 + $0x28] sm:$0xff]
        %v1621 = vld [vmem:[%s1614 + $0x30] sm:$0xff]
        %v1622 = vld [vmem:[%s1614 + $0x38] sm:$0xff]
        %v1623 = vld [vmem:[%s1614 + $0x40] sm:$0xff]
        %v1624 = vld [vmem:[%s1614 + $0x48] sm:$0xff]
        %v1625 = vld [vmem:[%s1614 + $0x50] sm:$0xff]
        %v1626 = vld [vmem:[%s1614 + $0x58] sm:$0xff]
        %v1627 = vld [vmem:[%s1614 + $0x60] sm:$0xff]
        %v1628 = vld [vmem:[%s1614 + $0x68] sm:$0xff]
        %v1629 = vld [vmem:[%s1614 + $0x70] sm:$0xff]
        %v1630 = vld [vmem:[%s1614 + $0x78] sm:$0xff]
        %1631 = vmatpush.msra.mxu0 %v1630
        %1632 = vmatpush.msra.mxu0 %v1629
        %1633 = vmatpush.msra.mxu0 %v1628
        %1634 = vmatpush.msra.mxu0 %v1627
        %1635 = vmatpush.msra.mxu0 %v1626
        %1636 = vmatpush.msra.mxu0 %v1625
        %1637 = vmatpush.msra.mxu0 %v1624
        %1638 = vmatpush.msra.mxu0 %v1623
        %1639 = vmatpush.msra.mxu0 %v1622
        %1640 = vmatpush.msra.mxu0 %v1621
        %1641 = vmatpush.msra.mxu0 %v1620
        %1642 = vmatpush.msra.mxu0 %v1619
        %1643 = vmatpush.msra.mxu0 %v1618
        %1644 = vmatpush.msra.mxu0 %v1617
        %1645 = vmatpush.msra.mxu0 %v1616
        %1646 = vmatpush.msra.mxu0 %v1615
        %1647 = vmatmul.f32.gmra.mxu0 %v1570
        %v1648 = vpop.f32.mrf.mxu0
        %v1649 = vadd.f32 0.0, %v1648
        %1650 = vmatmul.f32.gmra.mxu0 %v1571
        %v1651 = vpop.f32.mrf.mxu0
        %v1652 = vadd.f32 0.0, %v1651
        %1653 = vdwg.mxu0
        %v1654 = vadd.f32 %v1568, %v1649
        %v1655 = vadd.f32 %v1569, %v1652
        %v1656 = vld [vmem:[#allocation3 + $0x4] sm:$0xff]
        %v1657 = vld [vmem:[#allocation3 + $0xc] sm:$0x3]
        %s1658 = scalar_lea.vmem [#allocation9], 512
        %v1659 = vld [vmem:[%s1658] sm:$0xff]
        %v1660 = vld [vmem:[%s1658 + $0x8] sm:$0xff]
        %v1661 = vld [vmem:[%s1658 + $0x10] sm:$0xff]
        %v1662 = vld [vmem:[%s1658 + $0x18] sm:$0xff]
        %v1663 = vld [vmem:[%s1658 + $0x20] sm:$0xff]
        %v1664 = vld [vmem:[%s1658 + $0x28] sm:$0xff]
        %v1665 = vld [vmem:[%s1658 + $0x30] sm:$0xff]
        %v1666 = vld [vmem:[%s1658 + $0x38] sm:$0xff]
        %v1667 = vld [vmem:[%s1658 + $0x40] sm:$0xff]
        %v1668 = vld [vmem:[%s1658 + $0x48] sm:$0xff]
        %v1669 = vld [vmem:[%s1658 + $0x50] sm:$0xff]
        %v1670 = vld [vmem:[%s1658 + $0x58] sm:$0xff]
        %v1671 = vld [vmem:[%s1658 + $0x60] sm:$0xff]
        %v1672 = vld [vmem:[%s1658 + $0x68] sm:$0xff]
        %v1673 = vld [vmem:[%s1658 + $0x70] sm:$0xff]
        %v1674 = vld [vmem:[%s1658 + $0x78] sm:$0xff]
        %1675 = vmatpush.msra.mxu0 %v1674
        %1676 = vmatpush.msra.mxu0 %v1673
        %1677 = vmatpush.msra.mxu0 %v1672
        %1678 = vmatpush.msra.mxu0 %v1671
        %1679 = vmatpush.msra.mxu0 %v1670
        %1680 = vmatpush.msra.mxu0 %v1669
        %1681 = vmatpush.msra.mxu0 %v1668
        %1682 = vmatpush.msra.mxu0 %v1667
        %1683 = vmatpush.msra.mxu0 %v1666
        %1684 = vmatpush.msra.mxu0 %v1665
        %1685 = vmatpush.msra.mxu0 %v1664
        %1686 = vmatpush.msra.mxu0 %v1663
        %1687 = vmatpush.msra.mxu0 %v1662
        %1688 = vmatpush.msra.mxu0 %v1661
        %1689 = vmatpush.msra.mxu0 %v1660
        %1690 = vmatpush.msra.mxu0 %v1659
        %1691 = vmatmul.f32.gmra.mxu0 %v1656
        %v1692 = vpop.f32.mrf.mxu0
        %v1693 = vadd.f32 0.0, %v1692
        %1694 = vmatmul.f32.gmra.mxu0 %v1657
        %v1695 = vpop.f32.mrf.mxu0
        %v1696 = vadd.f32 0.0, %v1695
        %1697 = vdwg.mxu0
        %v1698 = vadd.f32 %v1612, %v1693
        %v1699 = vadd.f32 %v1613, %v1696
        %s1700 = scalar_lea.vmem [#allocation11], 512
        %v1701 = vld [vmem:[%s1700] sm:$0xff]
        %v1702 = vld [vmem:[%s1700 + $0x8] sm:$0xff]
        %v1703 = vld [vmem:[%s1700 + $0x10] sm:$0xff]
        %v1704 = vld [vmem:[%s1700 + $0x18] sm:$0xff]
        %v1705 = vld [vmem:[%s1700 + $0x20] sm:$0xff]
        %v1706 = vld [vmem:[%s1700 + $0x28] sm:$0xff]
        %v1707 = vld [vmem:[%s1700 + $0x30] sm:$0xff]
        %v1708 = vld [vmem:[%s1700 + $0x38] sm:$0xff]
        %v1709 = vld [vmem:[%s1700 + $0x40] sm:$0xff]
        %v1710 = vld [vmem:[%s1700 + $0x48] sm:$0xff]
        %v1711 = vld [vmem:[%s1700 + $0x50] sm:$0xff]
        %v1712 = vld [vmem:[%s1700 + $0x58] sm:$0xff]
        %v1713 = vld [vmem:[%s1700 + $0x60] sm:$0xff]
        %v1714 = vld [vmem:[%s1700 + $0x68] sm:$0xff]
        %v1715 = vld [vmem:[%s1700 + $0x70] sm:$0xff]
        %v1716 = vld [vmem:[%s1700 + $0x78] sm:$0xff]
        %1717 = vmatpush.msra.mxu0 %v1716
        %1718 = vmatpush.msra.mxu0 %v1715
        %1719 = vmatpush.msra.mxu0 %v1714
        %1720 = vmatpush.msra.mxu0 %v1713
        %1721 = vmatpush.msra.mxu0 %v1712
        %1722 = vmatpush.msra.mxu0 %v1711
        %1723 = vmatpush.msra.mxu0 %v1710
        %1724 = vmatpush.msra.mxu0 %v1709
        %1725 = vmatpush.msra.mxu0 %v1708
        %1726 = vmatpush.msra.mxu0 %v1707
        %1727 = vmatpush.msra.mxu0 %v1706
        %1728 = vmatpush.msra.mxu0 %v1705
        %1729 = vmatpush.msra.mxu0 %v1704
        %1730 = vmatpush.msra.mxu0 %v1703
        %1731 = vmatpush.msra.mxu0 %v1702
        %1732 = vmatpush.msra.mxu0 %v1701
        %1733 = vmatmul.f32.gmra.mxu0 %v1656
        %v1734 = vpop.f32.mrf.mxu0
        %v1735 = vadd.f32 0.0, %v1734
        %1736 = vmatmul.f32.gmra.mxu0 %v1657
        %v1737 = vpop.f32.mrf.mxu0
        %v1738 = vadd.f32 0.0, %v1737
        %1739 = vdwg.mxu0
        %v1740 = vadd.f32 %v1654, %v1735
        %v1741 = vadd.f32 %v1655, %v1738
        %v1742 = vld [vmem:[%s6] sm:$0x1]
        %v1744 = vperm.slane %v1742, 0
        %v1746 = vadd.f32 %v1698, %v1744
        %v1747 = vadd.f32 %v1699, %v1744
        %v1748 = vmax.f32 %v1746, 0.0
        %v1749 = vmax.f32 %v1747, 0.0
        %v1750 = vadd.f32 %v1740, %v1744
        %v1751 = vadd.f32 %v1741, %v1744
        %v1752 = vmax.f32 %v1750, 0.0
        %v1753 = vmax.f32 %v1751, 0.0
        %v1754 = vmax.f32 %v1748, %v1752
        %v1755 = vmax.f32 %v1749, %v1753
        %1756 = vst [vmem:[#allocation4] sm:$0xff] %v1754
        %1757 = vst [vmem:[#allocation4 + $0x8] sm:$0x3] %v1755
        %v1758 = vld [vmem:[#allocation4] sm:$0x1]
        %v1759 = vld [vmem:[#allocation4 + $0x1] sm:$0x1]
        %v1760 = vmax.f32 %v1758, %v1759
        %1761 = vst [vmem:[#allocation5] sm:$0x1] %v1760
        %v1762 = vld [vmem:[#allocation4 + $0x2] sm:$0x1]
        %v1763 = vld [vmem:[#allocation4 + $0x3] sm:$0x1]
        %v1764 = vmax.f32 %v1762, %v1763
        %1765 = vst [vmem:[#allocation5 + $0x1] sm:$0x1] %v1764
        %v1766 = vld [vmem:[#allocation4 + $0x4] sm:$0x1]
        %v1767 = vld [vmem:[#allocation4 + $0x5] sm:$0x1]
        %v1768 = vmax.f32 %v1766, %v1767
        %1769 = vst [vmem:[#allocation5 + $0x2] sm:$0x1] %v1768
        %v1770 = vld [vmem:[#allocation4 + $0x6] sm:$0x1]
        %v1771 = vld [vmem:[#allocation4 + $0x7] sm:$0x1]
        %v1772 = vmax.f32 %v1770, %v1771
        %1773 = vst [vmem:[#allocation5 + $0x3] sm:$0x1] %v1772
        %v1774 = vld [vmem:[#allocation4 + $0x8] sm:$0x1]
        %v1775 = vld [vmem:[#allocation4 + $0x9] sm:$0x1]
        %v1776 = vmax.f32 %v1774, %v1775
        %1777 = vst [vmem:[#allocation5 + $0x4] sm:$0x1] %v1776
        %v1778 = vld [vmem:[#allocation5] sm:$0x1]
        %v1779 = vld [vmem:[#allocation12] sm:$0xff]
        %v1780 = vld [vmem:[#allocation12 + $0x8] sm:$0xff]
        %v1781 = vld [vmem:[#allocation12 + $0x10] sm:$0xff]
        %v1782 = vld [vmem:[#allocation12 + $0x18] sm:$0xff]
        %v1783 = vld [vmem:[#allocation12 + $0x20] sm:$0xff]
        %v1784 = vld [vmem:[#allocation12 + $0x28] sm:$0xff]
        %v1785 = vld [vmem:[#allocation12 + $0x30] sm:$0xff]
        %v1786 = vld [vmem:[#allocation12 + $0x38] sm:$0xff]
        %v1787 = vld [vmem:[#allocation12 + $0x40] sm:$0xff]
        %v1788 = vld [vmem:[#allocation12 + $0x48] sm:$0xff]
        %v1789 = vld [vmem:[#allocation12 + $0x50] sm:$0xff]
        %v1790 = vld [vmem:[#allocation12 + $0x58] sm:$0xff]
        %v1791 = vld [vmem:[#allocation12 + $0x60] sm:$0xff]
        %v1792 = vld [vmem:[#allocation12 + $0x68] sm:$0xff]
        %v1793 = vld [vmem:[#allocation12 + $0x70] sm:$0xff]
        %v1794 = vld [vmem:[#allocation12 + $0x78] sm:$0xff]
        %v1795 = vld [vmem:[#allocation5 + $0x1] sm:$0x1]
        %s1796 = scalar_lea.vmem [#allocation12], 128
        %v1797 = vld [vmem:[%s1796] sm:$0xff]
        %v1798 = vld [vmem:[%s1796 + $0x8] sm:$0xff]
        %v1799 = vld [vmem:[%s1796 + $0x10] sm:$0xff]
        %v1800 = vld [vmem:[%s1796 + $0x18] sm:$0xff]
        %v1801 = vld [vmem:[%s1796 + $0x20] sm:$0xff]
        %v1802 = vld [vmem:[%s1796 + $0x28] sm:$0xff]
        %v1803 = vld [vmem:[%s1796 + $0x30] sm:$0xff]
        %v1804 = vld [vmem:[%s1796 + $0x38] sm:$0xff]
        %v1805 = vld [vmem:[%s1796 + $0x40] sm:$0xff]
        %v1806 = vld [vmem:[%s1796 + $0x48] sm:$0xff]
        %v1807 = vld [vmem:[%s1796 + $0x50] sm:$0xff]
        %v1808 = vld [vmem:[%s1796 + $0x58] sm:$0xff]
        %v1809 = vld [vmem:[%s1796 + $0x60] sm:$0xff]
        %v1810 = vld [vmem:[%s1796 + $0x68] sm:$0xff]
        %v1811 = vld [vmem:[%s1796 + $0x70] sm:$0xff]
        %v1812 = vld [vmem:[%s1796 + $0x78] sm:$0xff]
        %1813 = vmatpush.msra.mxu0 %v1812
        %1814 = vmatpush.msra.mxu0 %v1811
        %1815 = vmatpush.msra.mxu0 %v1810
        %1816 = vmatpush.msra.mxu0 %v1809
        %1817 = vmatpush.msra.mxu0 %v1808
        %1818 = vmatpush.msra.mxu0 %v1807
        %1819 = vmatpush.msra.mxu0 %v1806
        %1820 = vmatpush.msra.mxu0 %v1805
        %1821 = vmatpush.msra.mxu0 %v1804
        %1822 = vmatpush.msra.mxu0 %v1803
        %1823 = vmatpush.msra.mxu0 %v1802
        %1824 = vmatpush.msra.mxu0 %v1801
        %1825 = vmatpush.msra.mxu0 %v1800
        %1826 = vmatpush.msra.mxu0 %v1799
        %1827 = vmatpush.msra.mxu0 %v1798
        %1828 = vmatpush.msra.mxu0 %v1797
        %1829 = vmatmul.f32.gmra.mxu0 %v1795
        %v1830 = vpop.f32.mrf.mxu0
        %v1831 = vadd.f32 0.0, %v1830
        %1832 = vdwg.mxu0
        %1833 = vmatpush.msra.mxu0 %v1794
        %1834 = vmatpush.msra.mxu0 %v1793
        %1835 = vmatpush.msra.mxu0 %v1792
        %1836 = vmatpush.msra.mxu0 %v1791
        %1837 = vmatpush.msra.mxu0 %v1790
        %1838 = vmatpush.msra.mxu0 %v1789
        %1839 = vmatpush.msra.mxu0 %v1788
        %1840 = vmatpush.msra.mxu0 %v1787
        %1841 = vmatpush.msra.mxu0 %v1786
        %1842 = vmatpush.msra.mxu0 %v1785
        %1843 = vmatpush.msra.mxu0 %v1784
        %1844 = vmatpush.msra.mxu0 %v1783
        %1845 = vmatpush.msra.mxu0 %v1782
        %1846 = vmatpush.msra.mxu0 %v1781
        %1847 = vmatpush.msra.mxu0 %v1780
        %1848 = vmatpush.msra.mxu0 %v1779
        %1849 = vmatmul.f32.gmra.mxu0 %v1778
        %v1850 = vpop.f32.mrf.mxu0
        %v1851 = vadd.f32 %v1831, %v1850
        %1852 = vdwg.mxu0
        %v1853 = vld [vmem:[#allocation5 + $0x2] sm:$0x1]
        %s1854 = scalar_lea.vmem [#allocation12], 256
        %v1855 = vld [vmem:[%s1854] sm:$0xff]
        %v1856 = vld [vmem:[%s1854 + $0x8] sm:$0xff]
        %v1857 = vld [vmem:[%s1854 + $0x10] sm:$0xff]
        %v1858 = vld [vmem:[%s1854 + $0x18] sm:$0xff]
        %v1859 = vld [vmem:[%s1854 + $0x20] sm:$0xff]
        %v1860 = vld [vmem:[%s1854 + $0x28] sm:$0xff]
        %v1861 = vld [vmem:[%s1854 + $0x30] sm:$0xff]
        %v1862 = vld [vmem:[%s1854 + $0x38] sm:$0xff]
        %v1863 = vld [vmem:[%s1854 + $0x40] sm:$0xff]
        %v1864 = vld [vmem:[%s1854 + $0x48] sm:$0xff]
        %v1865 = vld [vmem:[%s1854 + $0x50] sm:$0xff]
        %v1866 = vld [vmem:[%s1854 + $0x58] sm:$0xff]
        %v1867 = vld [vmem:[%s1854 + $0x60] sm:$0xff]
        %v1868 = vld [vmem:[%s1854 + $0x68] sm:$0xff]
        %v1869 = vld [vmem:[%s1854 + $0x70] sm:$0xff]
        %v1870 = vld [vmem:[%s1854 + $0x78] sm:$0xff]
        %1871 = vmatpush.msra.mxu0 %v1870
        %1872 = vmatpush.msra.mxu0 %v1869
        %1873 = vmatpush.msra.mxu0 %v1868
        %1874 = vmatpush.msra.mxu0 %v1867
        %1875 = vmatpush.msra.mxu0 %v1866
        %1876 = vmatpush.msra.mxu0 %v1865
        %1877 = vmatpush.msra.mxu0 %v1864
        %1878 = vmatpush.msra.mxu0 %v1863
        %1879 = vmatpush.msra.mxu0 %v1862
        %1880 = vmatpush.msra.mxu0 %v1861
        %1881 = vmatpush.msra.mxu0 %v1860
        %1882 = vmatpush.msra.mxu0 %v1859
        %1883 = vmatpush.msra.mxu0 %v1858
        %1884 = vmatpush.msra.mxu0 %v1857
        %1885 = vmatpush.msra.mxu0 %v1856
        %1886 = vmatpush.msra.mxu0 %v1855
        %1887 = vmatmul.f32.gmra.mxu0 %v1853
        %v1888 = vpop.f32.mrf.mxu0
        %v1889 = vadd.f32 0.0, %v1888
        %1890 = vdwg.mxu0
        %v1891 = vadd.f32 %v1851, %v1889
        %v1892 = vld [vmem:[#allocation5 + $0x3] sm:$0x1]
        %s1893 = scalar_lea.vmem [#allocation12], 384
        %v1894 = vld [vmem:[%s1893] sm:$0xff]
        %v1895 = vld [vmem:[%s1893 + $0x8] sm:$0xff]
        %v1896 = vld [vmem:[%s1893 + $0x10] sm:$0xff]
        %v1897 = vld [vmem:[%s1893 + $0x18] sm:$0xff]
        %v1898 = vld [vmem:[%s1893 + $0x20] sm:$0xff]
        %v1899 = vld [vmem:[%s1893 + $0x28] sm:$0xff]
        %v1900 = vld [vmem:[%s1893 + $0x30] sm:$0xff]
        %v1901 = vld [vmem:[%s1893 + $0x38] sm:$0xff]
        %v1902 = vld [vmem:[%s1893 + $0x40] sm:$0xff]
        %v1903 = vld [vmem:[%s1893 + $0x48] sm:$0xff]
        %v1904 = vld [vmem:[%s1893 + $0x50] sm:$0xff]
        %v1905 = vld [vmem:[%s1893 + $0x58] sm:$0xff]
        %v1906 = vld [vmem:[%s1893 + $0x60] sm:$0xff]
        %v1907 = vld [vmem:[%s1893 + $0x68] sm:$0xff]
        %v1908 = vld [vmem:[%s1893 + $0x70] sm:$0xff]
        %v1909 = vld [vmem:[%s1893 + $0x78] sm:$0xff]
        %1910 = vmatpush.msra.mxu0 %v1909
        %1911 = vmatpush.msra.mxu0 %v1908
        %1912 = vmatpush.msra.mxu0 %v1907
        %1913 = vmatpush.msra.mxu0 %v1906
        %1914 = vmatpush.msra.mxu0 %v1905
        %1915 = vmatpush.msra.mxu0 %v1904
        %1916 = vmatpush.msra.mxu0 %v1903
        %1917 = vmatpush.msra.mxu0 %v1902
        %1918 = vmatpush.msra.mxu0 %v1901
        %1919 = vmatpush.msra.mxu0 %v1900
        %1920 = vmatpush.msra.mxu0 %v1899
        %1921 = vmatpush.msra.mxu0 %v1898
        %1922 = vmatpush.msra.mxu0 %v1897
        %1923 = vmatpush.msra.mxu0 %v1896
        %1924 = vmatpush.msra.mxu0 %v1895
        %1925 = vmatpush.msra.mxu0 %v1894
        %1926 = vmatmul.f32.gmra.mxu0 %v1892
        %v1927 = vpop.f32.mrf.mxu0
        %v1928 = vadd.f32 0.0, %v1927
        %1929 = vdwg.mxu0
        %v1930 = vadd.f32 %v1891, %v1928
        %v1931 = vld [vmem:[#allocation5 + $0x4] sm:$0x1]
        %s1932 = scalar_lea.vmem [#allocation12], 512
        %v1933 = vld [vmem:[%s1932] sm:$0xff]
        %v1934 = vld [vmem:[%s1932 + $0x8] sm:$0xff]
        %v1935 = vld [vmem:[%s1932 + $0x10] sm:$0xff]
        %v1936 = vld [vmem:[%s1932 + $0x18] sm:$0xff]
        %v1937 = vld [vmem:[%s1932 + $0x20] sm:$0xff]
        %v1938 = vld [vmem:[%s1932 + $0x28] sm:$0xff]
        %v1939 = vld [vmem:[%s1932 + $0x30] sm:$0xff]
        %v1940 = vld [vmem:[%s1932 + $0x38] sm:$0xff]
        %v1941 = vld [vmem:[%s1932 + $0x40] sm:$0xff]
        %v1942 = vld [vmem:[%s1932 + $0x48] sm:$0xff]
        %v1943 = vld [vmem:[%s1932 + $0x50] sm:$0xff]
        %v1944 = vld [vmem:[%s1932 + $0x58] sm:$0xff]
        %v1945 = vld [vmem:[%s1932 + $0x60] sm:$0xff]
        %v1946 = vld [vmem:[%s1932 + $0x68] sm:$0xff]
        %v1947 = vld [vmem:[%s1932 + $0x70] sm:$0xff]
        %v1948 = vld [vmem:[%s1932 + $0x78] sm:$0xff]
        %1949 = vmatpush.msra.mxu0 %v1948
        %1950 = vmatpush.msra.mxu0 %v1947
        %1951 = vmatpush.msra.mxu0 %v1946
        %1952 = vmatpush.msra.mxu0 %v1945
        %1953 = vmatpush.msra.mxu0 %v1944
        %1954 = vmatpush.msra.mxu0 %v1943
        %1955 = vmatpush.msra.mxu0 %v1942
        %1956 = vmatpush.msra.mxu0 %v1941
        %1957 = vmatpush.msra.mxu0 %v1940
        %1958 = vmatpush.msra.mxu0 %v1939
        %1959 = vmatpush.msra.mxu0 %v1938
        %1960 = vmatpush.msra.mxu0 %v1937
        %1961 = vmatpush.msra.mxu0 %v1936
        %1962 = vmatpush.msra.mxu0 %v1935
        %1963 = vmatpush.msra.mxu0 %v1934
        %1964 = vmatpush.msra.mxu0 %v1933
        %1965 = vmatmul.f32.gmra.mxu0 %v1931
        %v1966 = vpop.f32.mrf.mxu0
        %v1967 = vadd.f32 0.0, %v1966
        %1968 = vdwg.mxu0
        %v1969 = vadd.f32 %v1930, %v1967
        %v1970 = vld [vmem:[%s8] sm:$0x1]
        %v1971 = vadd.f32 %v1969, %v1970
        %v1972 = vmax.f32 %v1971, 0.0
        %v1973 = vld [vmem:[%s9] sm:$0xff]
        %v1974 = vld [vmem:[%s9 + $0x8] sm:$0xff]
        %v1975 = vld [vmem:[%s9 + $0x10] sm:$0xff]
        %v1976 = vld [vmem:[%s9 + $0x18] sm:$0xff]
        %v1977 = vld [vmem:[%s9 + $0x20] sm:$0xff]
        %v1978 = vld [vmem:[%s9 + $0x28] sm:$0xff]
        %v1979 = vld [vmem:[%s9 + $0x30] sm:$0xff]
        %v1980 = vld [vmem:[%s9 + $0x38] sm:$0xff]
        %v1981 = vld [vmem:[%s9 + $0x40] sm:$0xff]
        %v1982 = vld [vmem:[%s9 + $0x48] sm:$0xff]
        %v1983 = vld [vmem:[%s9 + $0x50] sm:$0xff]
        %v1984 = vld [vmem:[%s9 + $0x58] sm:$0xff]
        %v1985 = vld [vmem:[%s9 + $0x60] sm:$0xff]
        %v1986 = vld [vmem:[%s9 + $0x68] sm:$0xff]
        %v1987 = vld [vmem:[%s9 + $0x70] sm:$0xff]
        %v1988 = vld [vmem:[%s9 + $0x78] sm:$0xff]
        %v1989 = vld [vmem:[%s10] sm:$0x1]
        %1990 = vmatpush.msra.mxu0 %v1988
        %1991 = vmatpush.msra.mxu0 %v1987
        %1992 = vmatpush.msra.mxu0 %v1986
        %1993 = vmatpush.msra.mxu0 %v1985
        %1994 = vmatpush.msra.mxu0 %v1984
        %1995 = vmatpush.msra.mxu0 %v1983
        %1996 = vmatpush.msra.mxu0 %v1982
        %1997 = vmatpush.msra.mxu0 %v1981
        %1998 = vmatpush.msra.mxu0 %v1980
        %1999 = vmatpush.msra.mxu0 %v1979
        %2000 = vmatpush.msra.mxu0 %v1978
        %2001 = vmatpush.msra.mxu0 %v1977
        %2002 = vmatpush.msra.mxu0 %v1976
        %2003 = vmatpush.msra.mxu0 %v1975
        %2004 = vmatpush.msra.mxu0 %v1974
        %2005 = vmatpush.msra.mxu0 %v1973
        %2006 = vmatmul.f32.gmra.mxu0 %v1972
        %v2007 = vpop.f32.mrf.mxu0
        %v2008 = vadd.f32 %v1989, %v2007
        %2009 = vdwg.mxu0
        %v2010 = vmax.f32 %v2008, 0.0
        %v2011 = vld [vmem:[#allocation14] sm:$0xff]
        %v2012 = vld [vmem:[#allocation14 + $0x8] sm:$0xff]
        %v2013 = vld [vmem:[#allocation14 + $0x10] sm:$0xff]
        %v2014 = vld [vmem:[#allocation14 + $0x18] sm:$0xff]
        %v2015 = vld [vmem:[#allocation14 + $0x20] sm:$0xff]
        %v2016 = vld [vmem:[#allocation14 + $0x28] sm:$0xff]
        %v2017 = vld [vmem:[#allocation14 + $0x30] sm:$0xff]
        %v2018 = vld [vmem:[#allocation14 + $0x38] sm:$0xff]
        %v2019 = vld [vmem:[#allocation14 + $0x40] sm:$0xff]
        %v2020 = vld [vmem:[#allocation14 + $0x48] sm:$0xff]
        %v2021 = vld [vmem:[#allocation14 + $0x50] sm:$0xff]
        %v2022 = vld [vmem:[#allocation14 + $0x58] sm:$0xff]
        %v2023 = vld [vmem:[#allocation14 + $0x60] sm:$0xff]
        %v2024 = vld [vmem:[#allocation14 + $0x68] sm:$0xff]
        %v2025 = vld [vmem:[#allocation14 + $0x70] sm:$0xff]
        %v2026 = vld [vmem:[#allocation14 + $0x78] sm:$0xff]
        %v2027 = vld [vmem:[%s12] sm:$0x1]
        %2028 = vmatpush.msra.mxu0 %v2026
        %2029 = vmatpush.msra.mxu0 %v2025
        %2030 = vmatpush.msra.mxu0 %v2024
        %2031 = vmatpush.msra.mxu0 %v2023
        %2032 = vmatpush.msra.mxu0 %v2022
        %2033 = vmatpush.msra.mxu0 %v2021
        %2034 = vmatpush.msra.mxu0 %v2020
        %2035 = vmatpush.msra.mxu0 %v2019
        %2036 = vmatpush.msra.mxu0 %v2018
        %2037 = vmatpush.msra.mxu0 %v2017
        %2038 = vmatpush.msra.mxu0 %v2016
        %2039 = vmatpush.msra.mxu0 %v2015
        %2040 = vmatpush.msra.mxu0 %v2014
        %2041 = vmatpush.msra.mxu0 %v2013
        %2042 = vmatpush.msra.mxu0 %v2012
        %2043 = vmatpush.msra.mxu0 %v2011
        %2044 = vmatmul.f32.gmra.mxu0 %v2010
        %v2045 = vpop.f32.mrf.mxu0
        %v2046 = vadd.f32 %v2027, %v2045
        %2047 = vdwg.mxu0
        %v2048 = vmax.f32 %v2046, 0.0
        %v2049 = vld [vmem:[#allocation15] sm:$0xff]
        %v2050 = vld [vmem:[#allocation15 + $0x8] sm:$0xff]
        %v2051 = vld [vmem:[#allocation15 + $0x10] sm:$0xff]
        %v2052 = vld [vmem:[#allocation15 + $0x18] sm:$0xff]
        %v2053 = vld [vmem:[#allocation15 + $0x20] sm:$0xff]
        %v2054 = vld [vmem:[#allocation15 + $0x28] sm:$0xff]
        %v2055 = vld [vmem:[#allocation15 + $0x30] sm:$0xff]
        %v2056 = vld [vmem:[#allocation15 + $0x38] sm:$0xff]
        %v2057 = vld [vmem:[#allocation15 + $0x40] sm:$0xff]
        %v2058 = vld [vmem:[#allocation15 + $0x48] sm:$0xff]
        %v2059 = vld [vmem:[#allocation15 + $0x50] sm:$0xff]
        %v2060 = vld [vmem:[#allocation15 + $0x58] sm:$0xff]
        %v2061 = vld [vmem:[#allocation15 + $0x60] sm:$0xff]
        %v2062 = vld [vmem:[#allocation15 + $0x68] sm:$0xff]
        %v2063 = vld [vmem:[#allocation15 + $0x70] sm:$0xff]
        %v2064 = vld [vmem:[#allocation15 + $0x78] sm:$0xff]
        %v2065 = vld [vmem:[#allocation15 + $0x80] sm:$0xff]
        %v2066 = vld [vmem:[#allocation15 + $0x88] sm:$0xff]
        %v2067 = vld [vmem:[#allocation15 + $0x90] sm:$0xff]
        %v2068 = vld [vmem:[#allocation15 + $0x98] sm:$0xff]
        %v2069 = vld [vmem:[#allocation15 + $0xa0] sm:$0xff]
        %v2070 = vld [vmem:[#allocation15 + $0xa8] sm:$0xff]
        %v2071 = vld [vmem:[#allocation15 + $0xb0] sm:$0xff]
        %v2072 = vld [vmem:[#allocation15 + $0xb8] sm:$0xff]
        %v2073 = vld [vmem:[#allocation15 + $0xc0] sm:$0xff]
        %v2074 = vld [vmem:[#allocation15 + $0xc8] sm:$0xff]
        %v2075 = vld [vmem:[#allocation15 + $0xd0] sm:$0xff]
        %v2076 = vld [vmem:[#allocation15 + $0xd8] sm:$0xff]
        %v2077 = vld [vmem:[#allocation15 + $0xe0] sm:$0xff]
        %v2078 = vld [vmem:[#allocation15 + $0xe8] sm:$0xff]
        %v2079 = vld [vmem:[#allocation15 + $0xf0] sm:$0xff]
        %v2080 = vld [vmem:[#allocation15 + $0xf8] sm:$0xff]
        %v2081 = vld [vmem:[%s14] sm:$0x3]
        %v2083 = vperm.slane %v2081, 0
        %v2084 = vperm.slane %v2081, 1
        %2087 = vmatpush.msra.mxu0 %v2079
        %2088 = vmatpush.msra.mxu0 %v2077
        %2089 = vmatpush.msra.mxu0 %v2075
        %2090 = vmatpush.msra.mxu0 %v2073
        %2091 = vmatpush.msra.mxu0 %v2071
        %2092 = vmatpush.msra.mxu0 %v2069
        %2093 = vmatpush.msra.mxu0 %v2067
        %2094 = vmatpush.msra.mxu0 %v2065
        %2095 = vmatpush.msra.mxu0 %v2063
        %2096 = vmatpush.msra.mxu0 %v2061
        %2097 = vmatpush.msra.mxu0 %v2059
        %2098 = vmatpush.msra.mxu0 %v2057
        %2099 = vmatpush.msra.mxu0 %v2055
        %2100 = vmatpush.msra.mxu0 %v2053
        %2101 = vmatpush.msra.mxu0 %v2051
        %2102 = vmatpush.msra.mxu0 %v2049
        %2103 = vmatmul.f32.gmra.mxu0 %v2048
        %v2104 = vpop.f32.mrf.mxu0
        %v2105 = vadd.f32 %v2083, %v2104
        %2106 = vdwg.mxu0
        %2107 = vmatpush.msra.mxu0 %v2080
        %2108 = vmatpush.msra.mxu0 %v2078
        %2109 = vmatpush.msra.mxu0 %v2076
        %2110 = vmatpush.msra.mxu0 %v2074
        %2111 = vmatpush.msra.mxu0 %v2072
        %2112 = vmatpush.msra.mxu0 %v2070
        %2113 = vmatpush.msra.mxu0 %v2068
        %2114 = vmatpush.msra.mxu0 %v2066
        %2115 = vmatpush.msra.mxu0 %v2064
        %2116 = vmatpush.msra.mxu0 %v2062
        %2117 = vmatpush.msra.mxu0 %v2060
        %2118 = vmatpush.msra.mxu0 %v2058
        %2119 = vmatpush.msra.mxu0 %v2056
        %2120 = vmatpush.msra.mxu0 %v2054
        %2121 = vmatpush.msra.mxu0 %v2052
        %2122 = vmatpush.msra.mxu0 %v2050
        %2123 = vmatmul.f32.gmra.mxu0 %v2048
        %v2124 = vpop.f32.mrf.mxu0
        %v2125 = vadd.f32 %v2084, %v2124
        %2126 = vdwg.mxu0
        %v2127 = vld [vmem:[#allocation17] sm:$0xff]
        %v2128 = vld [vmem:[#allocation17 + $0x8] sm:$0xff]
        %v2129 = vld [vmem:[#allocation17 + $0x10] sm:$0xff]
        %v2130 = vld [vmem:[#allocation17 + $0x18] sm:$0xff]
        %v2131 = vld [vmem:[#allocation17 + $0x20] sm:$0xff]
        %v2132 = vld [vmem:[#allocation17 + $0x28] sm:$0xff]
        %v2133 = vld [vmem:[#allocation17 + $0x30] sm:$0xff]
        %v2134 = vld [vmem:[#allocation17 + $0x38] sm:$0xff]
        %v2135 = vld [vmem:[#allocation17 + $0x40] sm:$0xff]
        %v2136 = vld [vmem:[#allocation17 + $0x48] sm:$0xff]
        %v2137 = vld [vmem:[#allocation17 + $0x50] sm:$0xff]
        %v2138 = vld [vmem:[#allocation17 + $0x58] sm:$0xff]
        %v2139 = vld [vmem:[#allocation17 + $0x60] sm:$0xff]
        %v2140 = vld [vmem:[#allocation17 + $0x68] sm:$0xff]
        %v2141 = vld [vmem:[#allocation17 + $0x70] sm:$0xff]
        %v2142 = vld [vmem:[#allocation17 + $0x78] sm:$0xff]
        %v2143 = vld [vmem:[#allocation17 + $0x80] sm:$0xff]
        %v2144 = vld [vmem:[#allocation17 + $0x88] sm:$0xff]
        %v2145 = vld [vmem:[#allocation17 + $0x90] sm:$0xff]
        %v2146 = vld [vmem:[#allocation17 + $0x98] sm:$0xff]
        %v2147 = vld [vmem:[#allocation17 + $0xa0] sm:$0xff]
        %v2148 = vld [vmem:[#allocation17 + $0xa8] sm:$0xff]
        %v2149 = vld [vmem:[#allocation17 + $0xb0] sm:$0xff]
        %v2150 = vld [vmem:[#allocation17 + $0xb8] sm:$0xff]
        %v2151 = vld [vmem:[#allocation17 + $0xc0] sm:$0xff]
        %v2152 = vld [vmem:[#allocation17 + $0xc8] sm:$0xff]
        %v2153 = vld [vmem:[#allocation17 + $0xd0] sm:$0xff]
        %v2154 = vld [vmem:[#allocation17 + $0xd8] sm:$0xff]
        %v2155 = vld [vmem:[#allocation17 + $0xe0] sm:$0xff]
        %v2156 = vld [vmem:[#allocation17 + $0xe8] sm:$0xff]
        %v2157 = vld [vmem:[#allocation17 + $0xf0] sm:$0xff]
        %v2158 = vld [vmem:[#allocation17 + $0xf8] sm:$0xff]
        %v2159 = vld [vmem:[%s16] sm:$0x1]
        %2160 = vmatpush.msra.mxu0 %v2142
        %2161 = vmatpush.msra.mxu0 %v2141
        %2162 = vmatpush.msra.mxu0 %v2140
        %2163 = vmatpush.msra.mxu0 %v2139
        %2164 = vmatpush.msra.mxu0 %v2138
        %2165 = vmatpush.msra.mxu0 %v2137
        %2166 = vmatpush.msra.mxu0 %v2136
        %2167 = vmatpush.msra.mxu0 %v2135
        %2168 = vmatpush.msra.mxu0 %v2134
        %2169 = vmatpush.msra.mxu0 %v2133
        %2170 = vmatpush.msra.mxu0 %v2132
        %2171 = vmatpush.msra.mxu0 %v2131
        %2172 = vmatpush.msra.mxu0 %v2130
        %2173 = vmatpush.msra.mxu0 %v2129
        %2174 = vmatpush.msra.mxu0 %v2128
        %2175 = vmatpush.msra.mxu0 %v2127
        %2176 = vmatmul.f32.gmra.mxu0 %v2105
        %v2177 = vpop.f32.mrf.mxu0
        %v2178 = vadd.f32 %v2159, %v2177
        %2179 = vdwg.mxu0
        %2180 = vmatpush.msra.mxu0 %v2158
        %2181 = vmatpush.msra.mxu0 %v2157
        %2182 = vmatpush.msra.mxu0 %v2156
        %2183 = vmatpush.msra.mxu0 %v2155
        %2184 = vmatpush.msra.mxu0 %v2154
        %2185 = vmatpush.msra.mxu0 %v2153
        %2186 = vmatpush.msra.mxu0 %v2152
        %2187 = vmatpush.msra.mxu0 %v2151
        %2188 = vmatpush.msra.mxu0 %v2150
        %2189 = vmatpush.msra.mxu0 %v2149
        %2190 = vmatpush.msra.mxu0 %v2148
        %2191 = vmatpush.msra.mxu0 %v2147
        %2192 = vmatpush.msra.mxu0 %v2146
        %2193 = vmatpush.msra.mxu0 %v2145
        %2194 = vmatpush.msra.mxu0 %v2144
        %2195 = vmatpush.msra.mxu0 %v2143
        %2196 = vmatmul.f32.gmra.mxu0 %v2125
        %v2197 = vpop.f32.mrf.mxu0
        %v2198 = vadd.f32 %v2178, %v2197
        %2199 = vdwg.mxu0
        %2200 = vst [vmem:[%s714] sm:$0x1] %v2010
        %v2203 = vrot.slane %v2125, 7
        %vm2204 = vcmask 1040384
        %v2205 = vsel %vm2204, %v2105, %v2203
        %v2207 = vlaneseq
        %vm2208 = vcmp.ge.s32.totalorder %v2207, 0
        %vm2209 = vcmp.lt.s32.totalorder %v2207, 256
        %vm2210 = vmand %vm2208, %vm2209
        %2211 = vst.msk [vmem:[%s735] sm:$0x3] %vm2210, %v2205
        %2212 = vst [vmem:[%s726] sm:$0x1] %v2198
        %s2213 = sand.u32 %s411, 1
        %s2214 = scalar_lea.sflag [#allocation8], %s2213
        %s2215 = sand.u32 %s411, 1
        %s2216 = scalar_lea.vmem [#allocation18], %s2215
        %p2217 = scmp.lt.s32.totalorder %s41, 1
        %s2218 = scalar_select %p2217, %s41, 1
        %s2219 = smul.addr %s2218, 2
        %s2220 = scalar_lea.vmem %s18, %s2219
        %s2221 = sand.u32 %s463, 1
        %s2222 = scalar_lea.sflag [#allocation20], %s2221
        %s2223 = sand.u32 %s463, 1
        %s2224 = scalar_lea.vmem [#allocation19], %s2223
        // Predicated region
        $region117: #{mooncnn_forward.1} parent=87 // pred_check
          %p2225 = pneg %p421
        $region118: #{mooncnn_forward.1} parent=87 // pred_check_branch
          %2227 = sbr.rel (%p2225) target = $region120
        $region119: #{mooncnn_forward.1} parent=87 // pred_region
          %2229 = vsyncadd %s2214, 0
          %s2230 = scalar_lea.hbm %s17, %s41
          %s2232 = sshll.u32 %s2216, 4
          %s2233 = int_to_ptr.vmem [resolvable:$true] %s2232
          %s2234 = sshll.u32 %s2230, 4
          %s2235 = int_to_ptr.hbm [resolvable:$true] %s2234
          %2237 = dma.vmem_to_hbm [thread:$0]  %s2233, 16, %s2235, %s2214
        $region120: #{mooncnn_forward.1} parent=87 // pred_fallthru
          _
        // Predicated region
        $region121: #{mooncnn_forward.1} parent=87 // pred_check
          %p2238 = pneg %p447
        $region122: #{mooncnn_forward.1} parent=87 // pred_check_branch
          %2240 = sbr.rel (%p2238) target = $region124
        $region123: #{mooncnn_forward.1} parent=87 // pred_region
          _
        $region124: #{mooncnn_forward.1} parent=87 // pred_fallthru
          _
        // Predicated region
        $region125: #{mooncnn_forward.1} parent=87 // pred_check
          %p2241 = pneg %p473
        $region126: #{mooncnn_forward.1} parent=87 // pred_check_branch
          %2243 = sbr.rel (%p2241) target = $region128
        $region127: #{mooncnn_forward.1} parent=87 // pred_region
          %2245 = vsyncadd %s2222, 0
          %s2246 = scalar_lea.hbm %s19, %s41
          %s2248 = sshll.u32 %s2224, 4
          %s2249 = int_to_ptr.vmem [resolvable:$true] %s2248
          %s2250 = sshll.u32 %s2246, 4
          %s2251 = int_to_ptr.hbm [resolvable:$true] %s2250
          %2253 = dma.vmem_to_hbm [thread:$0]  %s2249, 16, %s2251, %s2222
        $region128: #{mooncnn_forward.1} parent=87 // pred_fallthru
          _
      $region88: #{mooncnn_forward.1} parent=5 // pred_fallthru
        _
      %p2254 = scmp.le.s32.totalorder 2, %s36
      // Predicated region
      $region129: #{mooncnn_forward.1} parent=5 // pred_check
        %p2255 = pneg %p2254
      $region130: #{mooncnn_forward.1} parent=5 // pred_check_branch
        %2257 = sbr.rel (%p2255) target = $region132
      $region131: #{mooncnn_forward.1} parent=5 // pred_region
        %s2258 = ssub.s32 %s36, 2
        // Predicated region
        $region133: #{mooncnn_forward.1} parent=131 // pred_check
          %p2259 = pneg %p427
        $region134: #{mooncnn_forward.1} parent=131 // pred_check_branch
          %2261 = sbr.rel (%p2259) target = $region136
        $region135: #{mooncnn_forward.1} parent=131 // pred_region
          %s2262 = sand.u32 %s412, 1
          %s2263 = scalar_lea.sflag [#allocation8], %s2262
          %s2264 = sand.u32 %s412, 1
          %s2265 = scalar_lea.vmem [#allocation18], %s2264
          %2267 = dma.done %s2263, 16
        $region136: #{mooncnn_forward.1} parent=131 // pred_fallthru
          _
        // Predicated region
        $region137: #{mooncnn_forward.1} parent=131 // pred_check
          %p2268 = pneg %p453
        $region138: #{mooncnn_forward.1} parent=131 // pred_check_branch
          %2270 = sbr.rel (%p2268) target = $region140
        $region139: #{mooncnn_forward.1} parent=131 // pred_region
          %p2271 = scmp.lt.s32.totalorder %s42, 1
          %s2272 = scalar_select %p2271, %s42, 1
          %s2273 = smul.addr %s2272, 2
          %s2274 = scalar_lea.vmem %s18, %s2273
        $region140: #{mooncnn_forward.1} parent=131 // pred_fallthru
          _
        // Predicated region
        $region141: #{mooncnn_forward.1} parent=131 // pred_check
          %p2275 = pneg %p479
        $region142: #{mooncnn_forward.1} parent=131 // pred_check_branch
          %2277 = sbr.rel (%p2275) target = $region144
        $region143: #{mooncnn_forward.1} parent=131 // pred_region
          %s2278 = sand.u32 %s464, 1
          %s2279 = scalar_lea.sflag [#allocation20], %s2278
          %s2280 = sand.u32 %s464, 1
          %s2281 = scalar_lea.vmem [#allocation19], %s2280
          %2283 = dma.done %s2279, 16
        $region144: #{mooncnn_forward.1} parent=131 // pred_fallthru
          _
      $region132: #{mooncnn_forward.1} parent=5 // pred_fallthru
        _
    $region6: #{mooncnn_forward.1} parent=1 // loop_footer
      %s40 = sadd.s32 1, %s36
    $region7: #{mooncnn_forward.1} parent=1 // loop_footer_branch
      %35 = sbr.rel target = $region3
    $region8: #{mooncnn_forward.1} parent=1 // loop_exit
      _
    %2284 = vsyncpa [#allocation7], 1
    %s2285 = scalar_lea.sflag [#allocation7], 1
    %2286 = vsyncpa %s2285, 1
    %2287 = vsyncpa [#allocation10], 1
    %2288 = vsyncpa [#allocation13], 1
    %2289 = vsyncpa [#allocation16], 1
    %2290 = vsyncpa [#allocation8], 1
    %s2291 = scalar_lea.sflag [#allocation8], 1
    %2292 = vsyncpa %s2291, 1
    %2293 = vsyncpa [#allocation20], 1
    %s2294 = scalar_lea.sflag [#allocation20], 1
    %2295 = vsyncpa %s2294, 1

</llo_original>
